<compile_context>
chip_gen: v7x
topology: tpu7x:2x2x1
jax: 0.10.0
libtpu: 0.0.40
codegen_flags: <defaults>
</compile_context>

<pallas_src>
import numpy as np
import jax
import jax.numpy as jnp
from jax.experimental import pallas as pl
from jax.experimental.pallas import tpu as pltpu

_K = 5   # conv kernel size (all three layers)
_S = 2   # conv stride      (all three layers)

_WEIGHT_KEYS = ("sh1", "gh1", "b1", "sh2", "gh2", "b2",
                "sh3", "gh3", "b3", "wfc", "bfc")


def _conv_out(n):
    return (n - _K) // _S + 1


# ---------------------------------------------------------------------------
# One-time weight packing (numpy, runs once outside the jitted hot path)
# ---------------------------------------------------------------------------
def _build_sh(h_in, h_out):
    """Row-gather matrix: SH[kh*Ho + ho, h] = 1  iff  h == S*ho + kh."""
    sh = np.zeros((_K * h_out, h_in), np.float32)
    for kh in range(_K):
        for ho in range(h_out):
            sh[kh * h_out + ho, _S * ho + kh] = 1.0
    return sh


def _build_gh(w_oihw, w_in, w_out):
    """GH[kh, w*Cin+ci, wo*Cout+co] = w[co, ci, kh, w - S*wo] (0 off-tap).

    Folds the stride-2 W-gather and the conv weights into one matrix, so a
    whole conv layer becomes   Y2d = sum_kh (SH_kh @ X2d) @ GH_kh + b.
    """
    w = np.asarray(w_oihw, np.float32)              # (Cout, Cin, K, K)
    cout, cin = w.shape[0], w.shape[1]
    w_t = np.transpose(w, (2, 3, 1, 0))             # (kh, kw, ci, co)
    gh = np.zeros((_K, w_in, cin, w_out, cout), np.float32)
    for kw in range(_K):
        for wo in range(w_out):
            gh[:, _S * wo + kw, :, wo, :] = w_t[:, kw]
    return gh.reshape(_K, w_in * cin, w_out * cout)


def prepare_params(params, img_hw):
    """Pack PyTorch-layout params into the fused-kernel operand set (run once)."""
    h0, w0 = img_hw
    h1, w1 = _conv_out(h0), _conv_out(w0)
    h2, w2 = _conv_out(h1), _conv_out(w1)
    h3, w3 = _conv_out(h2), _conv_out(w2)

    def pack_conv(wname, bname, w_in, w_out, h_in, h_out):
        w = np.asarray(params[wname], np.float32)
        b = np.asarray(params[bname], np.float32)
        return (jnp.asarray(_build_sh(h_in, h_out), jnp.bfloat16),
                jnp.asarray(_build_gh(w, w_in, w_out), jnp.bfloat16),
                # bias row in (wo, co)-minor order matching the (H, W*Cout) slab
                jnp.asarray(np.tile(b, w_out)[None, :], jnp.float32))

    sh1, gh1, b1 = pack_conv("w1", "b1", w0, w1, h0, h1)
    sh2, gh2, b2 = pack_conv("w2", "b2", w1, w2, h1, h2)
    sh3, gh3, b3 = pack_conv("w3", "b3", w2, w3, h2, h3)

    # fc: PyTorch flattens conv3 output NCHW -> (co, ho, wo).  Permute the fc
    # weight once so the kernel can consume the (ho, wo*C3+co) slab directly.
    fcw = np.asarray(params["fc_w"], np.float32)     # (ncls, C3*H3*W3)
    fcb = np.asarray(params["fc_b"], np.float32)
    c3 = int(np.asarray(params["w3"]).shape[0])
    ncls = fcw.shape[0]
    assert fcw.shape[1] == c3 * h3 * w3
    wfc = (fcw.reshape(ncls, c3, h3, w3)
              .transpose(2, 3, 1, 0)                 # (ho, wo, co, k)
              .reshape(h3, w3 * c3, ncls))

    return {"sh1": sh1, "gh1": gh1, "b1": b1,
            "sh2": sh2, "gh2": gh2, "b2": b2,
            "sh3": sh3, "gh3": gh3, "b3": b3,
            "wfc": jnp.asarray(wfc, jnp.bfloat16),
            "bfc": jnp.asarray(fcb[None, :], jnp.float32)}


# ---------------------------------------------------------------------------
# Fused Pallas kernel: one grid step == one sample's full forward pass.
# All activations are in-kernel values in a lane-dense (H, W*C) layout.
# ---------------------------------------------------------------------------
def _fused_cnn_kernel(x_ref, sh1, gh1, b1, sh2, gh2, b2, sh3, gh3, b3,
                      wfc, bfc, o_ref):

    def conv_relu(x2d, sh_ref, gh_ref, b_ref):
        taps = gh_ref.shape[0]                 # KH (=5)
        ho = sh_ref.shape[0] // taps           # output height
        # H-gather: rows (kh, ho) -> input row S*ho+kh   (exact: 0/1 matrix)
        xh = jnp.dot(sh_ref[...], x2d, preferred_element_type=jnp.float32)
        xh = xh.astype(jnp.bfloat16)
        # Per-kh tap: folded W-gather + conv weights, accumulate in f32.
        acc = jnp.dot(xh[0:ho, :], gh_ref[0], preferred_element_type=jnp.float32)
        for t in range(1, taps):
            acc = acc + jnp.dot(xh[t * ho:(t + 1) * ho, :], gh_ref[t],
                                preferred_element_type=jnp.float32)
        return jnp.maximum(acc + b_ref[...], 0.0).astype(jnp.bfloat16)

    x0 = x_ref[...].astype(jnp.bfloat16)       # (H0, W0), Cin = 1
    y = conv_relu(x0, sh1, gh1, b1)            # (18, 30*12)
    y = conv_relu(y, sh2, gh2, b2)             # ( 7, 13*24)
    y = conv_relu(y, sh3, gh3, b3)             # ( 2,  5*24)

    # fc over the NCHW-flatten order (permutation folded into wfc).
    out = bfc[...]                             # (1, ncls) f32
    for h in range(wfc.shape[0]):
        out = out + jnp.dot(y[h:h + 1, :], wfc[h],
                            preferred_element_type=jnp.float32)

    # Output block is the full (N, ncls) array kept resident across the grid;
    # each step writes its own row.
    o_ref[pl.ds(pl.program_id(0), 1), :] = out


def model_forward(image_nchw, prep):
    n, c, h, w = image_nchw.shape
    assert c == 1
    ncls = prep["bfc"].shape[-1]
    weights = [prep[k] for k in _WEIGHT_KEYS]

    def full_block(a):
        return pl.BlockSpec(a.shape, lambda i, _nd=a.ndim: (0,) * _nd)

    in_specs = [pl.BlockSpec((None, None, h, w), lambda i: (i, 0, 0, 0))]
    in_specs += [full_block(a) for a in weights]

    return pl.pallas_call(
        _fused_cnn_kernel,
        grid=(n,),
        out_shape=jax.ShapeDtypeStruct((n, ncls), jnp.float32),
        in_specs=in_specs,
        out_specs=pl.BlockSpec((n, ncls), lambda i: (0, 0)),
        compiler_params=pltpu.CompilerParams(
            dimension_semantics=("arbitrary",)),
    )(image_nchw, *weights)


# ---------------------------------------------------------------------------
# Pure-JAX f32 reference (correctness check only)
# ---------------------------------------------------------------------------
def reference_forward(image_nchw, params):
    x = image_nchw
    for w, b in ((params["w1"], params["b1"]),
                 (params["w2"], params["b2"]),
                 (params["w3"], params["b3"])):
        x = jax.lax.conv_general_dilated(
            x, w, window_strides=(_S, _S), padding="VALID",
            dimension_numbers=("NCHW", "OIHW", "NCHW"))
        x = jnp.maximum(x + b[None, :, None, None], 0.0)
    x = x.reshape(x.shape[0], -1)
    return x @ params["fc_w"].T + params["fc_b"]


def init_params(key, num_classes):
    ks = jax.random.split(key, 8)
    s = 0.05
    return {
        "w1": s * jax.random.normal(ks[0], (12, 1, 5, 5), jnp.float32),
        "b1": s * jax.random.normal(ks[1], (12,), jnp.float32),
        "w2": s * jax.random.normal(ks[2], (24, 12, 5, 5), jnp.float32),
        "b2": s * jax.random.normal(ks[3], (24,), jnp.float32),
        "w3": s * jax.random.normal(ks[4], (24, 24, 5, 5), jnp.float32),
        "b3": s * jax.random.normal(ks[5], (24,), jnp.float32),
        "fc_w": s * jax.random.normal(ks[6], (num_classes, 24 * 2 * 5), jnp.float32),
        "fc_b": s * jax.random.normal(ks[7], (num_classes,), jnp.float32),
    }


if __name__ == "__main__":
    num_classes = 3          # Pong actions
    batch = 2
    # Input spatial size is fixed by fc = Linear(24*2*5, .):
    # 40x64 -> conv1 -> 18x30 -> conv2 -> 7x13 -> conv3 -> 2x5.
    img_h, img_w = 40, 64

    key = jax.random.PRNGKey(0)
    k_img, k_params = jax.random.split(key)
    image = jax.random.normal(k_img, (batch, 1, img_h, img_w), jnp.float32)
    params = init_params(k_params, num_classes)
    prep = prepare_params(params, (img_h, img_w))   # one-time weight packing

    fwd = jax.jit(model_forward)                    # hot path: ONE pallas_call
    out = jax.block_until_ready(fwd(image, prep))
    assert out.shape == (batch, num_classes), out.shape

    ref = jax.block_until_ready(reference_forward(image, params))
    # bf16 MXU inputs (f32 accumulation) -> use a bf16-appropriate tolerance.
    np.testing.assert_allclose(np.asarray(out), np.asarray(ref),
                               rtol=1e-2, atol=1e-2)

    print("KERNEL_OK")
</pallas_src>

<mosaic_0001>
module attributes {stable_mosaic.version = 11 : i64} {
  func.func @_fused_cnn_kernel(%arg0: i32, %arg1: memref<1x1x40x64xf32, #tpu.memory_space<vmem>>, %arg2: memref<90x40xbf16, #tpu.memory_space<vmem>>, %arg3: memref<5x64x360xbf16, #tpu.memory_space<vmem>>, %arg4: memref<1x360xf32, #tpu.memory_space<vmem>>, %arg5: memref<35x18xbf16, #tpu.memory_space<vmem>>, %arg6: memref<5x360x312xbf16, #tpu.memory_space<vmem>>, %arg7: memref<1x312xf32, #tpu.memory_space<vmem>>, %arg8: memref<10x7xbf16, #tpu.memory_space<vmem>>, %arg9: memref<5x312x120xbf16, #tpu.memory_space<vmem>>, %arg10: memref<1x120xf32, #tpu.memory_space<vmem>>, %arg11: memref<2x120x3xbf16, #tpu.memory_space<vmem>>, %arg12: memref<1x3xf32, #tpu.memory_space<vmem>>, %arg13: memref<2x3xf32, #tpu.memory_space<vmem>>) attributes {dimension_semantics = [#tpu.dimension_semantics<arbitrary>], iteration_bounds = array<i64: 2>, scalar_prefetch = 0 : i64, scratch_operands = 0 : i64, tpu.core_type = #tpu.core_type<tc>, window_params = [{transform_indices = @transform_0, window_bounds = array<i64: 1, 1, 40, 64>}, {pipeline_mode = #tpu.pipeline_mode<synchronous>, transform_indices = @transform_1, window_bounds = array<i64: 90, 40>}, {pipeline_mode = #tpu.pipeline_mode<synchronous>, transform_indices = @transform_2, window_bounds = array<i64: 5, 64, 360>}, {pipeline_mode = #tpu.pipeline_mode<synchronous>, transform_indices = @transform_3, window_bounds = array<i64: 1, 360>}, {pipeline_mode = #tpu.pipeline_mode<synchronous>, transform_indices = @transform_4, window_bounds = array<i64: 35, 18>}, {pipeline_mode = #tpu.pipeline_mode<synchronous>, transform_indices = @transform_5, window_bounds = array<i64: 5, 360, 312>}, {pipeline_mode = #tpu.pipeline_mode<synchronous>, transform_indices = @transform_6, window_bounds = array<i64: 1, 312>}, {pipeline_mode = #tpu.pipeline_mode<synchronous>, transform_indices = @transform_7, window_bounds = array<i64: 10, 7>}, {pipeline_mode = #tpu.pipeline_mode<synchronous>, transform_indices = @transform_8, window_bounds = array<i64: 5, 312, 120>}, {pipeline_mode = #tpu.pipeline_mode<synchronous>, transform_indices = @transform_9, window_bounds = array<i64: 1, 120>}, {pipeline_mode = #tpu.pipeline_mode<synchronous>, transform_indices = @transform_10, window_bounds = array<i64: 2, 120, 3>}, {pipeline_mode = #tpu.pipeline_mode<synchronous>, transform_indices = @transform_11, window_bounds = array<i64: 1, 3>}, {pipeline_mode = #tpu.pipeline_mode<synchronous>, transform_indices = @transform_12, window_bounds = array<i64: 2, 3>}]} {
    %c0 = arith.constant 0 : index
    %c0_0 = arith.constant 0 : index
    %c0_1 = arith.constant 0 : index
    %c0_2 = arith.constant 0 : index
    %0 = vector.load %arg1[%c0, %c0_0, %c0_1, %c0_2] : memref<1x1x40x64xf32, #tpu.memory_space<vmem>>, vector<1x1x40x64xf32>
    %1 = vector.shape_cast %0 : vector<1x1x40x64xf32> to vector<40x64xf32>
    %2 = arith.truncf %1 : vector<40x64xf32> to vector<40x64xbf16>
    %c0_3 = arith.constant 0 : index
    %c0_4 = arith.constant 0 : index
    %3 = vector.load %arg2[%c0_3, %c0_4] : memref<90x40xbf16, #tpu.memory_space<vmem>>, vector<90x40xbf16>
    %cst = arith.constant dense<0.000000e+00> : vector<90x64xf32>
    %4 = tpu.matmul %3, %2, %cst {dimension_numbers = #tpu.dot_dimension_numbers<[1], [0], [0], [1], [0, 0, 1, 1], [], []>} : vector<90x40xbf16>, vector<40x64xbf16>, vector<90x64xf32> -> vector<90x64xf32>
    %5 = arith.truncf %4 : vector<90x64xf32> to vector<90x64xbf16>
    %6 = vector.extract_strided_slice %5 {offsets = [0, 0], sizes = [18, 64], strides = [1, 1]} : vector<90x64xbf16> to vector<18x64xbf16>
    %c0_5 = arith.constant 0 : index
    %c0_6 = arith.constant 0 : index
    %c0_7 = arith.constant 0 : index
    %7 = vector.load %arg3[%c0_5, %c0_6, %c0_7] : memref<5x64x360xbf16, #tpu.memory_space<vmem>>, vector<1x64x360xbf16>
    %8 = vector.shape_cast %7 : vector<1x64x360xbf16> to vector<64x360xbf16>
    %cst_8 = arith.constant dense<0.000000e+00> : vector<18x360xf32>
    %9 = tpu.matmul %6, %8, %cst_8 {dimension_numbers = #tpu.dot_dimension_numbers<[1], [0], [0], [1], [0, 0, 1, 1], [], []>} : vector<18x64xbf16>, vector<64x360xbf16>, vector<18x360xf32> -> vector<18x360xf32>
    %10 = vector.extract_strided_slice %5 {offsets = [18, 0], sizes = [18, 64], strides = [1, 1]} : vector<90x64xbf16> to vector<18x64xbf16>
    %c1 = arith.constant 1 : index
    %c0_9 = arith.constant 0 : index
    %c0_10 = arith.constant 0 : index
    %11 = vector.load %arg3[%c1, %c0_9, %c0_10] : memref<5x64x360xbf16, #tpu.memory_space<vmem>>, vector<1x64x360xbf16>
    %12 = vector.shape_cast %11 : vector<1x64x360xbf16> to vector<64x360xbf16>
    %cst_11 = arith.constant dense<0.000000e+00> : vector<18x360xf32>
    %13 = tpu.matmul %10, %12, %cst_11 {dimension_numbers = #tpu.dot_dimension_numbers<[1], [0], [0], [1], [0, 0, 1, 1], [], []>} : vector<18x64xbf16>, vector<64x360xbf16>, vector<18x360xf32> -> vector<18x360xf32>
    %14 = arith.addf %9, %13 : vector<18x360xf32>
    %15 = vector.extract_strided_slice %5 {offsets = [36, 0], sizes = [18, 64], strides = [1, 1]} : vector<90x64xbf16> to vector<18x64xbf16>
    %c2 = arith.constant 2 : index
    %c0_12 = arith.constant 0 : index
    %c0_13 = arith.constant 0 : index
    %16 = vector.load %arg3[%c2, %c0_12, %c0_13] : memref<5x64x360xbf16, #tpu.memory_space<vmem>>, vector<1x64x360xbf16>
    %17 = vector.shape_cast %16 : vector<1x64x360xbf16> to vector<64x360xbf16>
    %cst_14 = arith.constant dense<0.000000e+00> : vector<18x360xf32>
    %18 = tpu.matmul %15, %17, %cst_14 {dimension_numbers = #tpu.dot_dimension_numbers<[1], [0], [0], [1], [0, 0, 1, 1], [], []>} : vector<18x64xbf16>, vector<64x360xbf16>, vector<18x360xf32> -> vector<18x360xf32>
    %19 = arith.addf %14, %18 : vector<18x360xf32>
    %20 = vector.extract_strided_slice %5 {offsets = [54, 0], sizes = [18, 64], strides = [1, 1]} : vector<90x64xbf16> to vector<18x64xbf16>
    %c3 = arith.constant 3 : index
    %c0_15 = arith.constant 0 : index
    %c0_16 = arith.constant 0 : index
    %21 = vector.load %arg3[%c3, %c0_15, %c0_16] : memref<5x64x360xbf16, #tpu.memory_space<vmem>>, vector<1x64x360xbf16>
    %22 = vector.shape_cast %21 : vector<1x64x360xbf16> to vector<64x360xbf16>
    %cst_17 = arith.constant dense<0.000000e+00> : vector<18x360xf32>
    %23 = tpu.matmul %20, %22, %cst_17 {dimension_numbers = #tpu.dot_dimension_numbers<[1], [0], [0], [1], [0, 0, 1, 1], [], []>} : vector<18x64xbf16>, vector<64x360xbf16>, vector<18x360xf32> -> vector<18x360xf32>
    %24 = arith.addf %19, %23 : vector<18x360xf32>
    %25 = vector.extract_strided_slice %5 {offsets = [72, 0], sizes = [18, 64], strides = [1, 1]} : vector<90x64xbf16> to vector<18x64xbf16>
    %c4 = arith.constant 4 : index
    %c0_18 = arith.constant 0 : index
    %c0_19 = arith.constant 0 : index
    %26 = vector.load %arg3[%c4, %c0_18, %c0_19] : memref<5x64x360xbf16, #tpu.memory_space<vmem>>, vector<1x64x360xbf16>
    %27 = vector.shape_cast %26 : vector<1x64x360xbf16> to vector<64x360xbf16>
    %cst_20 = arith.constant dense<0.000000e+00> : vector<18x360xf32>
    %28 = tpu.matmul %25, %27, %cst_20 {dimension_numbers = #tpu.dot_dimension_numbers<[1], [0], [0], [1], [0, 0, 1, 1], [], []>} : vector<18x64xbf16>, vector<64x360xbf16>, vector<18x360xf32> -> vector<18x360xf32>
    %29 = arith.addf %24, %28 : vector<18x360xf32>
    %c0_21 = arith.constant 0 : index
    %c0_22 = arith.constant 0 : index
    %30 = vector.load %arg4[%c0_21, %c0_22] : memref<1x360xf32, #tpu.memory_space<vmem>>, vector<1x360xf32>
    %31 = vector.broadcast %30 : vector<1x360xf32> to vector<18x360xf32>
    %32 = arith.addf %29, %31 : vector<18x360xf32>
    %cst_23 = arith.constant 0.000000e+00 : f32
    %33 = vector.broadcast %cst_23 : f32 to vector<18x360xf32>
    %34 = arith.maximumf %32, %33 : vector<18x360xf32>
    %35 = arith.truncf %34 : vector<18x360xf32> to vector<18x360xbf16>
    %c0_24 = arith.constant 0 : index
    %c0_25 = arith.constant 0 : index
    %36 = vector.load %arg5[%c0_24, %c0_25] : memref<35x18xbf16, #tpu.memory_space<vmem>>, vector<35x18xbf16>
    %cst_26 = arith.constant dense<0.000000e+00> : vector<35x360xf32>
    %37 = tpu.matmul %36, %35, %cst_26 {dimension_numbers = #tpu.dot_dimension_numbers<[1], [0], [0], [1], [0, 0, 1, 1], [], []>} : vector<35x18xbf16>, vector<18x360xbf16>, vector<35x360xf32> -> vector<35x360xf32>
    %38 = arith.truncf %37 : vector<35x360xf32> to vector<35x360xbf16>
    %39 = vector.extract_strided_slice %38 {offsets = [0, 0], sizes = [7, 360], strides = [1, 1]} : vector<35x360xbf16> to vector<7x360xbf16>
    %c0_27 = arith.constant 0 : index
    %c0_28 = arith.constant 0 : index
    %c0_29 = arith.constant 0 : index
    %40 = vector.load %arg6[%c0_27, %c0_28, %c0_29] : memref<5x360x312xbf16, #tpu.memory_space<vmem>>, vector<1x360x312xbf16>
    %41 = vector.shape_cast %40 : vector<1x360x312xbf16> to vector<360x312xbf16>
    %cst_30 = arith.constant dense<0.000000e+00> : vector<7x312xf32>
    %42 = tpu.matmul %39, %41, %cst_30 {dimension_numbers = #tpu.dot_dimension_numbers<[1], [0], [0], [1], [0, 0, 1, 1], [], []>} : vector<7x360xbf16>, vector<360x312xbf16>, vector<7x312xf32> -> vector<7x312xf32>
    %43 = vector.extract_strided_slice %38 {offsets = [7, 0], sizes = [7, 360], strides = [1, 1]} : vector<35x360xbf16> to vector<7x360xbf16>
    %c1_31 = arith.constant 1 : index
    %c0_32 = arith.constant 0 : index
    %c0_33 = arith.constant 0 : index
    %44 = vector.load %arg6[%c1_31, %c0_32, %c0_33] : memref<5x360x312xbf16, #tpu.memory_space<vmem>>, vector<1x360x312xbf16>
    %45 = vector.shape_cast %44 : vector<1x360x312xbf16> to vector<360x312xbf16>
    %cst_34 = arith.constant dense<0.000000e+00> : vector<7x312xf32>
    %46 = tpu.matmul %43, %45, %cst_34 {dimension_numbers = #tpu.dot_dimension_numbers<[1], [0], [0], [1], [0, 0, 1, 1], [], []>} : vector<7x360xbf16>, vector<360x312xbf16>, vector<7x312xf32> -> vector<7x312xf32>
    %47 = arith.addf %42, %46 : vector<7x312xf32>
    %48 = vector.extract_strided_slice %38 {offsets = [14, 0], sizes = [7, 360], strides = [1, 1]} : vector<35x360xbf16> to vector<7x360xbf16>
    %c2_35 = arith.constant 2 : index
    %c0_36 = arith.constant 0 : index
    %c0_37 = arith.constant 0 : index
    %49 = vector.load %arg6[%c2_35, %c0_36, %c0_37] : memref<5x360x312xbf16, #tpu.memory_space<vmem>>, vector<1x360x312xbf16>
    %50 = vector.shape_cast %49 : vector<1x360x312xbf16> to vector<360x312xbf16>
    %cst_38 = arith.constant dense<0.000000e+00> : vector<7x312xf32>
    %51 = tpu.matmul %48, %50, %cst_38 {dimension_numbers = #tpu.dot_dimension_numbers<[1], [0], [0], [1], [0, 0, 1, 1], [], []>} : vector<7x360xbf16>, vector<360x312xbf16>, vector<7x312xf32> -> vector<7x312xf32>
    %52 = arith.addf %47, %51 : vector<7x312xf32>
    %53 = vector.extract_strided_slice %38 {offsets = [21, 0], sizes = [7, 360], strides = [1, 1]} : vector<35x360xbf16> to vector<7x360xbf16>
    %c3_39 = arith.constant 3 : index
    %c0_40 = arith.constant 0 : index
    %c0_41 = arith.constant 0 : index
    %54 = vector.load %arg6[%c3_39, %c0_40, %c0_41] : memref<5x360x312xbf16, #tpu.memory_space<vmem>>, vector<1x360x312xbf16>
    %55 = vector.shape_cast %54 : vector<1x360x312xbf16> to vector<360x312xbf16>
    %cst_42 = arith.constant dense<0.000000e+00> : vector<7x312xf32>
    %56 = tpu.matmul %53, %55, %cst_42 {dimension_numbers = #tpu.dot_dimension_numbers<[1], [0], [0], [1], [0, 0, 1, 1], [], []>} : vector<7x360xbf16>, vector<360x312xbf16>, vector<7x312xf32> -> vector<7x312xf32>
    %57 = arith.addf %52, %56 : vector<7x312xf32>
    %58 = vector.extract_strided_slice %38 {offsets = [28, 0], sizes = [7, 360], strides = [1, 1]} : vector<35x360xbf16> to vector<7x360xbf16>
    %c4_43 = arith.constant 4 : index
    %c0_44 = arith.constant 0 : index
    %c0_45 = arith.constant 0 : index
    %59 = vector.load %arg6[%c4_43, %c0_44, %c0_45] : memref<5x360x312xbf16, #tpu.memory_space<vmem>>, vector<1x360x312xbf16>
    %60 = vector.shape_cast %59 : vector<1x360x312xbf16> to vector<360x312xbf16>
    %cst_46 = arith.constant dense<0.000000e+00> : vector<7x312xf32>
    %61 = tpu.matmul %58, %60, %cst_46 {dimension_numbers = #tpu.dot_dimension_numbers<[1], [0], [0], [1], [0, 0, 1, 1], [], []>} : vector<7x360xbf16>, vector<360x312xbf16>, vector<7x312xf32> -> vector<7x312xf32>
    %62 = arith.addf %57, %61 : vector<7x312xf32>
    %c0_47 = arith.constant 0 : index
    %c0_48 = arith.constant 0 : index
    %63 = vector.load %arg7[%c0_47, %c0_48] : memref<1x312xf32, #tpu.memory_space<vmem>>, vector<1x312xf32>
    %64 = vector.broadcast %63 : vector<1x312xf32> to vector<7x312xf32>
    %65 = arith.addf %62, %64 : vector<7x312xf32>
    %cst_49 = arith.constant 0.000000e+00 : f32
    %66 = vector.broadcast %cst_49 : f32 to vector<7x312xf32>
    %67 = arith.maximumf %65, %66 : vector<7x312xf32>
    %68 = arith.truncf %67 : vector<7x312xf32> to vector<7x312xbf16>
    %c0_50 = arith.constant 0 : index
    %c0_51 = arith.constant 0 : index
    %69 = vector.load %arg8[%c0_50, %c0_51] : memref<10x7xbf16, #tpu.memory_space<vmem>>, vector<10x7xbf16>
    %cst_52 = arith.constant dense<0.000000e+00> : vector<10x312xf32>
    %70 = tpu.matmul %69, %68, %cst_52 {dimension_numbers = #tpu.dot_dimension_numbers<[1], [0], [0], [1], [0, 0, 1, 1], [], []>} : vector<10x7xbf16>, vector<7x312xbf16>, vector<10x312xf32> -> vector<10x312xf32>
    %71 = arith.truncf %70 : vector<10x312xf32> to vector<10x312xbf16>
    %72 = vector.extract_strided_slice %71 {offsets = [0, 0], sizes = [2, 312], strides = [1, 1]} : vector<10x312xbf16> to vector<2x312xbf16>
    %c0_53 = arith.constant 0 : index
    %c0_54 = arith.constant 0 : index
    %c0_55 = arith.constant 0 : index
    %73 = vector.load %arg9[%c0_53, %c0_54, %c0_55] : memref<5x312x120xbf16, #tpu.memory_space<vmem>>, vector<1x312x120xbf16>
    %74 = vector.shape_cast %73 : vector<1x312x120xbf16> to vector<312x120xbf16>
    %cst_56 = arith.constant dense<0.000000e+00> : vector<2x120xf32>
    %75 = tpu.matmul %72, %74, %cst_56 {dimension_numbers = #tpu.dot_dimension_numbers<[1], [0], [0], [1], [0, 0, 1, 1], [], []>} : vector<2x312xbf16>, vector<312x120xbf16>, vector<2x120xf32> -> vector<2x120xf32>
    %76 = vector.extract_strided_slice %71 {offsets = [2, 0], sizes = [2, 312], strides = [1, 1]} : vector<10x312xbf16> to vector<2x312xbf16>
    %c1_57 = arith.constant 1 : index
    %c0_58 = arith.constant 0 : index
    %c0_59 = arith.constant 0 : index
    %77 = vector.load %arg9[%c1_57, %c0_58, %c0_59] : memref<5x312x120xbf16, #tpu.memory_space<vmem>>, vector<1x312x120xbf16>
    %78 = vector.shape_cast %77 : vector<1x312x120xbf16> to vector<312x120xbf16>
    %cst_60 = arith.constant dense<0.000000e+00> : vector<2x120xf32>
    %79 = tpu.matmul %76, %78, %cst_60 {dimension_numbers = #tpu.dot_dimension_numbers<[1], [0], [0], [1], [0, 0, 1, 1], [], []>} : vector<2x312xbf16>, vector<312x120xbf16>, vector<2x120xf32> -> vector<2x120xf32>
    %80 = arith.addf %75, %79 : vector<2x120xf32>
    %81 = vector.extract_strided_slice %71 {offsets = [4, 0], sizes = [2, 312], strides = [1, 1]} : vector<10x312xbf16> to vector<2x312xbf16>
    %c2_61 = arith.constant 2 : index
    %c0_62 = arith.constant 0 : index
    %c0_63 = arith.constant 0 : index
    %82 = vector.load %arg9[%c2_61, %c0_62, %c0_63] : memref<5x312x120xbf16, #tpu.memory_space<vmem>>, vector<1x312x120xbf16>
    %83 = vector.shape_cast %82 : vector<1x312x120xbf16> to vector<312x120xbf16>
    %cst_64 = arith.constant dense<0.000000e+00> : vector<2x120xf32>
    %84 = tpu.matmul %81, %83, %cst_64 {dimension_numbers = #tpu.dot_dimension_numbers<[1], [0], [0], [1], [0, 0, 1, 1], [], []>} : vector<2x312xbf16>, vector<312x120xbf16>, vector<2x120xf32> -> vector<2x120xf32>
    %85 = arith.addf %80, %84 : vector<2x120xf32>
    %86 = vector.extract_strided_slice %71 {offsets = [6, 0], sizes = [2, 312], strides = [1, 1]} : vector<10x312xbf16> to vector<2x312xbf16>
    %c3_65 = arith.constant 3 : index
    %c0_66 = arith.constant 0 : index
    %c0_67 = arith.constant 0 : index
    %87 = vector.load %arg9[%c3_65, %c0_66, %c0_67] : memref<5x312x120xbf16, #tpu.memory_space<vmem>>, vector<1x312x120xbf16>
    %88 = vector.shape_cast %87 : vector<1x312x120xbf16> to vector<312x120xbf16>
    %cst_68 = arith.constant dense<0.000000e+00> : vector<2x120xf32>
    %89 = tpu.matmul %86, %88, %cst_68 {dimension_numbers = #tpu.dot_dimension_numbers<[1], [0], [0], [1], [0, 0, 1, 1], [], []>} : vector<2x312xbf16>, vector<312x120xbf16>, vector<2x120xf32> -> vector<2x120xf32>
    %90 = arith.addf %85, %89 : vector<2x120xf32>
    %91 = vector.extract_strided_slice %71 {offsets = [8, 0], sizes = [2, 312], strides = [1, 1]} : vector<10x312xbf16> to vector<2x312xbf16>
    %c4_69 = arith.constant 4 : index
    %c0_70 = arith.constant 0 : index
    %c0_71 = arith.constant 0 : index
    %92 = vector.load %arg9[%c4_69, %c0_70, %c0_71] : memref<5x312x120xbf16, #tpu.memory_space<vmem>>, vector<1x312x120xbf16>
    %93 = vector.shape_cast %92 : vector<1x312x120xbf16> to vector<312x120xbf16>
    %cst_72 = arith.constant dense<0.000000e+00> : vector<2x120xf32>
    %94 = tpu.matmul %91, %93, %cst_72 {dimension_numbers = #tpu.dot_dimension_numbers<[1], [0], [0], [1], [0, 0, 1, 1], [], []>} : vector<2x312xbf16>, vector<312x120xbf16>, vector<2x120xf32> -> vector<2x120xf32>
    %95 = arith.addf %90, %94 : vector<2x120xf32>
    %c0_73 = arith.constant 0 : index
    %c0_74 = arith.constant 0 : index
    %96 = vector.load %arg10[%c0_73, %c0_74] : memref<1x120xf32, #tpu.memory_space<vmem>>, vector<1x120xf32>
    %97 = vector.broadcast %96 : vector<1x120xf32> to vector<2x120xf32>
    %98 = arith.addf %95, %97 : vector<2x120xf32>
    %cst_75 = arith.constant 0.000000e+00 : f32
    %99 = vector.broadcast %cst_75 : f32 to vector<2x120xf32>
    %100 = arith.maximumf %98, %99 : vector<2x120xf32>
    %101 = arith.truncf %100 : vector<2x120xf32> to vector<2x120xbf16>
    %c0_76 = arith.constant 0 : index
    %c0_77 = arith.constant 0 : index
    %102 = vector.load %arg12[%c0_76, %c0_77] : memref<1x3xf32, #tpu.memory_space<vmem>>, vector<1x3xf32>
    %103 = vector.extract_strided_slice %101 {offsets = [0, 0], sizes = [1, 120], strides = [1, 1]} : vector<2x120xbf16> to vector<1x120xbf16>
    %c0_78 = arith.constant 0 : index
    %c0_79 = arith.constant 0 : index
    %c0_80 = arith.constant 0 : index
    %104 = vector.load %arg11[%c0_78, %c0_79, %c0_80] : memref<2x120x3xbf16, #tpu.memory_space<vmem>>, vector<1x120x3xbf16>
    %105 = vector.shape_cast %104 : vector<1x120x3xbf16> to vector<120x3xbf16>
    %cst_81 = arith.constant dense<0.000000e+00> : vector<1x3xf32>
    %106 = tpu.matmul %103, %105, %cst_81 {dimension_numbers = #tpu.dot_dimension_numbers<[1], [0], [0], [1], [0, 0, 1, 1], [], []>} : vector<1x120xbf16>, vector<120x3xbf16>, vector<1x3xf32> -> vector<1x3xf32>
    %107 = arith.addf %102, %106 : vector<1x3xf32>
    %108 = vector.extract_strided_slice %101 {offsets = [1, 0], sizes = [1, 120], strides = [1, 1]} : vector<2x120xbf16> to vector<1x120xbf16>
    %c1_82 = arith.constant 1 : index
    %c0_83 = arith.constant 0 : index
    %c0_84 = arith.constant 0 : index
    %109 = vector.load %arg11[%c1_82, %c0_83, %c0_84] : memref<2x120x3xbf16, #tpu.memory_space<vmem>>, vector<1x120x3xbf16>
    %110 = vector.shape_cast %109 : vector<1x120x3xbf16> to vector<120x3xbf16>
    %cst_85 = arith.constant dense<0.000000e+00> : vector<1x3xf32>
    %111 = tpu.matmul %108, %110, %cst_85 {dimension_numbers = #tpu.dot_dimension_numbers<[1], [0], [0], [1], [0, 0, 1, 1], [], []>} : vector<1x120xbf16>, vector<120x3xbf16>, vector<1x3xf32> -> vector<1x3xf32>
    %112 = arith.addf %107, %111 : vector<1x3xf32>
    %113 = arith.index_cast %arg0 : i32 to index
    %c0_86 = arith.constant 0 : index
    %114 = vector.load %arg13[%113, %c0_86] : memref<2x3xf32, #tpu.memory_space<vmem>>, vector<1x3xf32>
    tpu.vector_store %arg13[%113, %c0_86], %112 {strides = array<i32>} : memref<2x3xf32, #tpu.memory_space<vmem>>, vector<1x3xf32>,
    return
  }
  func.func @transform_0(%arg0: i32) -> (i32, i32, i32, i32) {
    %c0_i32 = arith.constant 0 : i32
    %c0_i32_0 = arith.constant 0 : i32
    %c0_i32_1 = arith.constant 0 : i32
    %c0_i32_2 = arith.constant 0 : i32
    return %arg0, %c0_i32, %c0_i32_0, %c0_i32_1 : i32, i32, i32, i32
  }
  func.func @transform_1(%arg0: i32) -> (i32, i32) {
    %c0_i32 = arith.constant 0 : i32
    %c0_i32_0 = arith.constant 0 : i32
    %c0_i32_1 = arith.constant 0 : i32
    return %c0_i32, %c0_i32_0 : i32, i32
  }
  func.func @transform_2(%arg0: i32) -> (i32, i32, i32) {
    %c0_i32 = arith.constant 0 : i32
    %c0_i32_0 = arith.constant 0 : i32
    %c0_i32_1 = arith.constant 0 : i32
    %c0_i32_2 = arith.constant 0 : i32
    return %c0_i32, %c0_i32_0, %c0_i32_1 : i32, i32, i32
  }
  func.func @transform_3(%arg0: i32) -> (i32, i32) {
    %c0_i32 = arith.constant 0 : i32
    %c0_i32_0 = arith.constant 0 : i32
    %c0_i32_1 = arith.constant 0 : i32
    return %c0_i32, %c0_i32_0 : i32, i32
  }
  func.func @transform_4(%arg0: i32) -> (i32, i32) {
    %c0_i32 = arith.constant 0 : i32
    %c0_i32_0 = arith.constant 0 : i32
    %c0_i32_1 = arith.constant 0 : i32
    return %c0_i32, %c0_i32_0 : i32, i32
  }
  func.func @transform_5(%arg0: i32) -> (i32, i32, i32) {
    %c0_i32 = arith.constant 0 : i32
    %c0_i32_0 = arith.constant 0 : i32
    %c0_i32_1 = arith.constant 0 : i32
    %c0_i32_2 = arith.constant 0 : i32
    return %c0_i32, %c0_i32_0, %c0_i32_1 : i32, i32, i32
  }
  func.func @transform_6(%arg0: i32) -> (i32, i32) {
    %c0_i32 = arith.constant 0 : i32
    %c0_i32_0 = arith.constant 0 : i32
    %c0_i32_1 = arith.constant 0 : i32
    return %c0_i32, %c0_i32_0 : i32, i32
  }
  func.func @transform_7(%arg0: i32) -> (i32, i32) {
    %c0_i32 = arith.constant 0 : i32
    %c0_i32_0 = arith.constant 0 : i32
    %c0_i32_1 = arith.constant 0 : i32
    return %c0_i32, %c0_i32_0 : i32, i32
  }
  func.func @transform_8(%arg0: i32) -> (i32, i32, i32) {
    %c0_i32 = arith.constant 0 : i32
    %c0_i32_0 = arith.constant 0 : i32
    %c0_i32_1 = arith.constant 0 : i32
    %c0_i32_2 = arith.constant 0 : i32
    return %c0_i32, %c0_i32_0, %c0_i32_1 : i32, i32, i32
  }
  func.func @transform_9(%arg0: i32) -> (i32, i32) {
    %c0_i32 = arith.constant 0 : i32
    %c0_i32_0 = arith.constant 0 : i32
    %c0_i32_1 = arith.constant 0 : i32
    return %c0_i32, %c0_i32_0 : i32, i32
  }
  func.func @transform_10(%arg0: i32) -> (i32, i32, i32) {
    %c0_i32 = arith.constant 0 : i32
    %c0_i32_0 = arith.constant 0 : i32
    %c0_i32_1 = arith.constant 0 : i32
    %c0_i32_2 = arith.constant 0 : i32
    return %c0_i32, %c0_i32_0, %c0_i32_1 : i32, i32, i32
  }
  func.func @transform_11(%arg0: i32) -> (i32, i32) {
    %c0_i32 = arith.constant 0 : i32
    %c0_i32_0 = arith.constant 0 : i32
    %c0_i32_1 = arith.constant 0 : i32
    return %c0_i32, %c0_i32_0 : i32, i32
  }
  func.func @transform_12(%arg0: i32) -> (i32, i32) {
    %c0_i32 = arith.constant 0 : i32
    %c0_i32_0 = arith.constant 0 : i32
    %c0_i32_1 = arith.constant 0 : i32
    return %c0_i32, %c0_i32_0 : i32, i32
  }
}

</mosaic_0001>

<llo_original>
// kernel: model_forward.1
$region0: #{model_forward.1}
  #allocation0 [shape = 'u32[]', space=smem, size = 0x4, offset = 0x4, fixed_abs, tag = 'smem constant byte address 0x4 - core index']
  #allocation1 [shape = 'u32[144,128]{1,0:T(1,128)}', space=vmem, size = 0x12000, scoped, tag = 'internal scratch']
  %s0 = inlined_call_operand.vmem [shape: f32[2,1,40,64], index: 0, kind: input, shape index: {}]
  %s1 = inlined_call_operand.vmem [shape: bf16[90,40], index: 1, kind: input, shape index: {}]
  %s2 = inlined_call_operand.vmem [shape: bf16[5,64,360], index: 2, kind: input, shape index: {}]
  %s3 = inlined_call_operand.vmem [shape: f32[1,360], index: 3, kind: input, shape index: {}]
  %s4 = inlined_call_operand.vmem [shape: bf16[35,18], index: 4, kind: input, shape index: {}]
  %s5 = inlined_call_operand.vmem [shape: bf16[5,360,312], index: 5, kind: input, shape index: {}]
  %s6 = inlined_call_operand.vmem [shape: f32[1,312], index: 6, kind: input, shape index: {}]
  %s7 = inlined_call_operand.vmem [shape: bf16[10,7], index: 7, kind: input, shape index: {}]
  %s8 = inlined_call_operand.vmem [shape: bf16[5,312,120], index: 8, kind: input, shape index: {}]
  %s9 = inlined_call_operand.vmem [shape: f32[1,120], index: 9, kind: input, shape index: {}]
  %s10 = inlined_call_operand.vmem [shape: bf16[2,120,3], index: 10, kind: input, shape index: {}]
  %s11 = inlined_call_operand.vmem [shape: f32[1,3], index: 11, kind: input, shape index: {}]
  %s12 = inlined_call_operand.hbm [shape: f32[2,3], index: 12, kind: output, shape index: {}]
  %s13 = sld [smem:[#allocation0]]
  $region81: #{model_forward.1} parent=0
    _
  %s15 = ssub.s32 1, %s13
  %s16 = scalar_select 0, %s15, %s13
  $region1: #{model_forward.1} parent=0
    #allocation2 [shape = 'u8[1024]{0}', space=vmem, size = 0x400, scoped, tag = 'output window, operand 0, single buffered']
    #allocation3 [shape = 's32[2]{0}', space=sflag, size = 0x8, scoped, tag = 'scoped memory for model_forward.1']
    %17 = vsyncpa [#allocation3], 0
    loop: start=0, step=1, limit=4
    $region2: #{model_forward.1} parent=1 // loop_pre_header
      _
    $region3: #{model_forward.1} parent=1 // loop_header
      %s19 = sphi 0, %s23
      %p20 = scmp.ge.s32.totalorder %s19, 4
      %s29 = sphi 0, %s31
      %s32 = sphi 0, %s29
      %s33 = sphi 0, %s32
      %s49 = sphi 0, %s33
      %s53 = sphi 0, %s53
      %s55 = sphi 0, %s53
      %s56 = sphi 0, %s55
      %s70 = sphi 0, %s56
      %s74 = sphi 0, %s74
      %s76 = sphi 0, %s74
      %s77 = sphi 0, %s76
      %s91 = sphi 0, %s77
      %s95 = sphi 0, %s95
      %s97 = sphi 0, %s95
      %s98 = sphi 0, %s97
      %s112 = sphi 0, %s98
      %s116 = sphi 0, %s116
      %s118 = sphi 0, %s116
      %s119 = sphi 0, %s118
      %s133 = sphi 0, %s119
      %s137 = sphi 0, %s137
      %s139 = sphi 0, %s137
      %s140 = sphi 0, %s139
      %s154 = sphi 0, %s140
      %s158 = sphi 0, %s158
      %s160 = sphi 0, %s158
      %s161 = sphi 0, %s160
      %s175 = sphi 0, %s161
      %s179 = sphi 0, %s179
      %s181 = sphi 0, %s179
      %s182 = sphi 0, %s181
      %s196 = sphi 0, %s182
      %s200 = sphi 0, %s200
      %s202 = sphi 0, %s200
      %s203 = sphi 0, %s202
      %s217 = sphi 0, %s203
      %s221 = sphi 0, %s221
      %s223 = sphi 0, %s221
      %s224 = sphi 0, %s223
      %s238 = sphi 0, %s224
      %s242 = sphi 0, %s242
      %s244 = sphi 0, %s242
      %s245 = sphi 0, %s244
      %s259 = sphi 0, %s245
      %s263 = sphi 0, %s263
      %s265 = sphi 0, %s263
      %s266 = sphi 0, %s265
      %s280 = sphi 0, %s266
      %s284 = sphi 0, %s284
      %s286 = sphi 0, %s284
      %s287 = sphi 0, %s286
      %s301 = sphi 0, %s287
    $region4: #{model_forward.1} parent=1 // loop_header_branch
      %22 = sbr.rel (%p20) target = $region8
    $region5: #{model_forward.1} parent=1 // loop_body
      %s24 = ssub.s32 %s19, 1
      %s25 = ssub.s32 %s19, 2
      %s26 = sadd.s32 %s19, 1
      %s27 = ssub.s32 %s19, %s26
      %p28 = scmp.eq.s32.totalorder %s27, 0
      %s30 = sadd.s32 %s29, 1
      %s31 = scalar_select %p28, %s29, %s30
      %p34 = pneg %p28
      %p35 = scmp.eq.s32.totalorder %s19, 1
      %p36 = por %p34, %p35
      %p37 = scmp.ne.s32.totalorder %s29, %s32
      %p38 = scmp.eq.s32.totalorder %s19, 0
      %p39 = por %p37, %p38
      %p40 = scmp.ne.s32.totalorder %s29, %s32
      %p41 = scmp.eq.s32.totalorder %s24, 1
      %p42 = por %p40, %p41
      %p43 = scmp.ne.s32.totalorder %s32, %s33
      %p44 = scmp.eq.s32.totalorder %s24, 0
      %p45 = por %p43, %p44
      %p46 = scmp.ne.s32.totalorder %s32, %s33
      %p47 = scmp.eq.s32.totalorder %s25, 1
      %p48 = por %p46, %p47
      %p50 = scmp.ne.s32.totalorder %s33, %s49
      %p51 = scmp.eq.s32.totalorder %s25, 0
      %p52 = por %p50, %p51
      %s54 = sadd.s32 %s53, 1
      %p57 = scmp.eq.s32.totalorder %s19, 1
      %p58 = scmp.ne.s32.totalorder %s53, %s55
      %p59 = scmp.eq.s32.totalorder %s19, 0
      %p60 = por %p58, %p59
      %p61 = scmp.ne.s32.totalorder %s53, %s55
      %p62 = scmp.eq.s32.totalorder %s24, 1
      %p63 = por %p61, %p62
      %p64 = scmp.ne.s32.totalorder %s55, %s56
      %p65 = scmp.eq.s32.totalorder %s24, 0
      %p66 = por %p64, %p65
      %p67 = scmp.ne.s32.totalorder %s55, %s56
      %p68 = scmp.eq.s32.totalorder %s25, 1
      %p69 = por %p67, %p68
      %p71 = scmp.ne.s32.totalorder %s56, %s70
      %p72 = scmp.eq.s32.totalorder %s25, 0
      %p73 = por %p71, %p72
      %s75 = sadd.s32 %s74, 1
      %p78 = scmp.eq.s32.totalorder %s19, 1
      %p79 = scmp.ne.s32.totalorder %s74, %s76
      %p80 = scmp.eq.s32.totalorder %s19, 0
      %p81 = por %p79, %p80
      %p82 = scmp.ne.s32.totalorder %s74, %s76
      %p83 = scmp.eq.s32.totalorder %s24, 1
      %p84 = por %p82, %p83
      %p85 = scmp.ne.s32.totalorder %s76, %s77
      %p86 = scmp.eq.s32.totalorder %s24, 0
      %p87 = por %p85, %p86
      %p88 = scmp.ne.s32.totalorder %s76, %s77
      %p89 = scmp.eq.s32.totalorder %s25, 1
      %p90 = por %p88, %p89
      %p92 = scmp.ne.s32.totalorder %s77, %s91
      %p93 = scmp.eq.s32.totalorder %s25, 0
      %p94 = por %p92, %p93
      %s96 = sadd.s32 %s95, 1
      %p99 = scmp.eq.s32.totalorder %s19, 1
      %p100 = scmp.ne.s32.totalorder %s95, %s97
      %p101 = scmp.eq.s32.totalorder %s19, 0
      %p102 = por %p100, %p101
      %p103 = scmp.ne.s32.totalorder %s95, %s97
      %p104 = scmp.eq.s32.totalorder %s24, 1
      %p105 = por %p103, %p104
      %p106 = scmp.ne.s32.totalorder %s97, %s98
      %p107 = scmp.eq.s32.totalorder %s24, 0
      %p108 = por %p106, %p107
      %p109 = scmp.ne.s32.totalorder %s97, %s98
      %p110 = scmp.eq.s32.totalorder %s25, 1
      %p111 = por %p109, %p110
      %p113 = scmp.ne.s32.totalorder %s98, %s112
      %p114 = scmp.eq.s32.totalorder %s25, 0
      %p115 = por %p113, %p114
      %s117 = sadd.s32 %s116, 1
      %p120 = scmp.eq.s32.totalorder %s19, 1
      %p121 = scmp.ne.s32.totalorder %s116, %s118
      %p122 = scmp.eq.s32.totalorder %s19, 0
      %p123 = por %p121, %p122
      %p124 = scmp.ne.s32.totalorder %s116, %s118
      %p125 = scmp.eq.s32.totalorder %s24, 1
      %p126 = por %p124, %p125
      %p127 = scmp.ne.s32.totalorder %s118, %s119
      %p128 = scmp.eq.s32.totalorder %s24, 0
      %p129 = por %p127, %p128
      %p130 = scmp.ne.s32.totalorder %s118, %s119
      %p131 = scmp.eq.s32.totalorder %s25, 1
      %p132 = por %p130, %p131
      %p134 = scmp.ne.s32.totalorder %s119, %s133
      %p135 = scmp.eq.s32.totalorder %s25, 0
      %p136 = por %p134, %p135
      %s138 = sadd.s32 %s137, 1
      %p141 = scmp.eq.s32.totalorder %s19, 1
      %p142 = scmp.ne.s32.totalorder %s137, %s139
      %p143 = scmp.eq.s32.totalorder %s19, 0
      %p144 = por %p142, %p143
      %p145 = scmp.ne.s32.totalorder %s137, %s139
      %p146 = scmp.eq.s32.totalorder %s24, 1
      %p147 = por %p145, %p146
      %p148 = scmp.ne.s32.totalorder %s139, %s140
      %p149 = scmp.eq.s32.totalorder %s24, 0
      %p150 = por %p148, %p149
      %p151 = scmp.ne.s32.totalorder %s139, %s140
      %p152 = scmp.eq.s32.totalorder %s25, 1
      %p153 = por %p151, %p152
      %p155 = scmp.ne.s32.totalorder %s140, %s154
      %p156 = scmp.eq.s32.totalorder %s25, 0
      %p157 = por %p155, %p156
      %s159 = sadd.s32 %s158, 1
      %p162 = scmp.eq.s32.totalorder %s19, 1
      %p163 = scmp.ne.s32.totalorder %s158, %s160
      %p164 = scmp.eq.s32.totalorder %s19, 0
      %p165 = por %p163, %p164
      %p166 = scmp.ne.s32.totalorder %s158, %s160
      %p167 = scmp.eq.s32.totalorder %s24, 1
      %p168 = por %p166, %p167
      %p169 = scmp.ne.s32.totalorder %s160, %s161
      %p170 = scmp.eq.s32.totalorder %s24, 0
      %p171 = por %p169, %p170
      %p172 = scmp.ne.s32.totalorder %s160, %s161
      %p173 = scmp.eq.s32.totalorder %s25, 1
      %p174 = por %p172, %p173
      %p176 = scmp.ne.s32.totalorder %s161, %s175
      %p177 = scmp.eq.s32.totalorder %s25, 0
      %p178 = por %p176, %p177
      %s180 = sadd.s32 %s179, 1
      %p183 = scmp.eq.s32.totalorder %s19, 1
      %p184 = scmp.ne.s32.totalorder %s179, %s181
      %p185 = scmp.eq.s32.totalorder %s19, 0
      %p186 = por %p184, %p185
      %p187 = scmp.ne.s32.totalorder %s179, %s181
      %p188 = scmp.eq.s32.totalorder %s24, 1
      %p189 = por %p187, %p188
      %p190 = scmp.ne.s32.totalorder %s181, %s182
      %p191 = scmp.eq.s32.totalorder %s24, 0
      %p192 = por %p190, %p191
      %p193 = scmp.ne.s32.totalorder %s181, %s182
      %p194 = scmp.eq.s32.totalorder %s25, 1
      %p195 = por %p193, %p194
      %p197 = scmp.ne.s32.totalorder %s182, %s196
      %p198 = scmp.eq.s32.totalorder %s25, 0
      %p199 = por %p197, %p198
      %s201 = sadd.s32 %s200, 1
      %p204 = scmp.eq.s32.totalorder %s19, 1
      %p205 = scmp.ne.s32.totalorder %s200, %s202
      %p206 = scmp.eq.s32.totalorder %s19, 0
      %p207 = por %p205, %p206
      %p208 = scmp.ne.s32.totalorder %s200, %s202
      %p209 = scmp.eq.s32.totalorder %s24, 1
      %p210 = por %p208, %p209
      %p211 = scmp.ne.s32.totalorder %s202, %s203
      %p212 = scmp.eq.s32.totalorder %s24, 0
      %p213 = por %p211, %p212
      %p214 = scmp.ne.s32.totalorder %s202, %s203
      %p215 = scmp.eq.s32.totalorder %s25, 1
      %p216 = por %p214, %p215
      %p218 = scmp.ne.s32.totalorder %s203, %s217
      %p219 = scmp.eq.s32.totalorder %s25, 0
      %p220 = por %p218, %p219
      %s222 = sadd.s32 %s221, 1
      %p225 = scmp.eq.s32.totalorder %s19, 1
      %p226 = scmp.ne.s32.totalorder %s221, %s223
      %p227 = scmp.eq.s32.totalorder %s19, 0
      %p228 = por %p226, %p227
      %p229 = scmp.ne.s32.totalorder %s221, %s223
      %p230 = scmp.eq.s32.totalorder %s24, 1
      %p231 = por %p229, %p230
      %p232 = scmp.ne.s32.totalorder %s223, %s224
      %p233 = scmp.eq.s32.totalorder %s24, 0
      %p234 = por %p232, %p233
      %p235 = scmp.ne.s32.totalorder %s223, %s224
      %p236 = scmp.eq.s32.totalorder %s25, 1
      %p237 = por %p235, %p236
      %p239 = scmp.ne.s32.totalorder %s224, %s238
      %p240 = scmp.eq.s32.totalorder %s25, 0
      %p241 = por %p239, %p240
      %s243 = sadd.s32 %s242, 1
      %p246 = scmp.eq.s32.totalorder %s19, 1
      %p247 = scmp.ne.s32.totalorder %s242, %s244
      %p248 = scmp.eq.s32.totalorder %s19, 0
      %p249 = por %p247, %p248
      %p250 = scmp.ne.s32.totalorder %s242, %s244
      %p251 = scmp.eq.s32.totalorder %s24, 1
      %p252 = por %p250, %p251
      %p253 = scmp.ne.s32.totalorder %s244, %s245
      %p254 = scmp.eq.s32.totalorder %s24, 0
      %p255 = por %p253, %p254
      %p256 = scmp.ne.s32.totalorder %s244, %s245
      %p257 = scmp.eq.s32.totalorder %s25, 1
      %p258 = por %p256, %p257
      %p260 = scmp.ne.s32.totalorder %s245, %s259
      %p261 = scmp.eq.s32.totalorder %s25, 0
      %p262 = por %p260, %p261
      %s264 = sadd.s32 %s263, 1
      %p267 = scmp.eq.s32.totalorder %s19, 1
      %p268 = scmp.ne.s32.totalorder %s263, %s265
      %p269 = scmp.eq.s32.totalorder %s19, 0
      %p270 = por %p268, %p269
      %p271 = scmp.ne.s32.totalorder %s263, %s265
      %p272 = scmp.eq.s32.totalorder %s24, 1
      %p273 = por %p271, %p272
      %p274 = scmp.ne.s32.totalorder %s265, %s266
      %p275 = scmp.eq.s32.totalorder %s24, 0
      %p276 = por %p274, %p275
      %p277 = scmp.ne.s32.totalorder %s265, %s266
      %p278 = scmp.eq.s32.totalorder %s25, 1
      %p279 = por %p277, %p278
      %p281 = scmp.ne.s32.totalorder %s266, %s280
      %p282 = scmp.eq.s32.totalorder %s25, 0
      %p283 = por %p281, %p282
      %s285 = sadd.s32 %s284, 1
      %p288 = scmp.eq.s32.totalorder %s19, 1
      %p289 = scmp.ne.s32.totalorder %s284, %s286
      %p290 = scmp.eq.s32.totalorder %s19, 0
      %p291 = por %p289, %p290
      %p292 = scmp.ne.s32.totalorder %s284, %s286
      %p293 = scmp.eq.s32.totalorder %s24, 1
      %p294 = por %p292, %p293
      %p295 = scmp.ne.s32.totalorder %s286, %s287
      %p296 = scmp.eq.s32.totalorder %s24, 0
      %p297 = por %p295, %p296
      %p298 = scmp.ne.s32.totalorder %s286, %s287
      %p299 = scmp.eq.s32.totalorder %s25, 1
      %p300 = por %p298, %p299
      %p302 = scmp.ne.s32.totalorder %s287, %s301
      %p303 = scmp.eq.s32.totalorder %s25, 0
      %p304 = por %p302, %p303
      %p305 = scmp.le.s32.totalorder 1, %s19
      %p306 = scmp.lt.s32.totalorder %s19, 3
      %p307 = pnand %p305, %p306
      %p308 = pneg %p307
      // Predicated region
      $region9: #{model_forward.1} parent=5 // pred_check
        _
      $region10: #{model_forward.1} parent=5 // pred_check_branch
        %310 = sbr.rel (%p307) target = $region12
      $region11: #{model_forward.1} parent=5 // pred_region
        %s311 = ssub.s32 %s19, 1
        // Predicated region
        $region13: #{model_forward.1} parent=11 // pred_check
          %p312 = pneg %p66
        $region14: #{model_forward.1} parent=11 // pred_check_branch
          %314 = sbr.rel (%p312) target = $region16
        $region15: #{model_forward.1} parent=11 // pred_region
          _
        $region16: #{model_forward.1} parent=11 // pred_fallthru
          _
        // Predicated region
        $region17: #{model_forward.1} parent=11 // pred_check
          %p315 = pneg %p87
        $region18: #{model_forward.1} parent=11 // pred_check_branch
          %317 = sbr.rel (%p315) target = $region20
        $region19: #{model_forward.1} parent=11 // pred_region
          _
        $region20: #{model_forward.1} parent=11 // pred_fallthru
          _
        // Predicated region
        $region21: #{model_forward.1} parent=11 // pred_check
          %p318 = pneg %p108
        $region22: #{model_forward.1} parent=11 // pred_check_branch
          %320 = sbr.rel (%p318) target = $region24
        $region23: #{model_forward.1} parent=11 // pred_region
          _
        $region24: #{model_forward.1} parent=11 // pred_fallthru
          _
        // Predicated region
        $region25: #{model_forward.1} parent=11 // pred_check
          %p321 = pneg %p129
        $region26: #{model_forward.1} parent=11 // pred_check_branch
          %323 = sbr.rel (%p321) target = $region28
        $region27: #{model_forward.1} parent=11 // pred_region
          _
        $region28: #{model_forward.1} parent=11 // pred_fallthru
          _
        // Predicated region
        $region29: #{model_forward.1} parent=11 // pred_check
          %p324 = pneg %p150
        $region30: #{model_forward.1} parent=11 // pred_check_branch
          %326 = sbr.rel (%p324) target = $region32
        $region31: #{model_forward.1} parent=11 // pred_region
          _
        $region32: #{model_forward.1} parent=11 // pred_fallthru
          _
        // Predicated region
        $region33: #{model_forward.1} parent=11 // pred_check
          %p327 = pneg %p171
        $region34: #{model_forward.1} parent=11 // pred_check_branch
          %329 = sbr.rel (%p327) target = $region36
        $region35: #{model_forward.1} parent=11 // pred_region
          _
        $region36: #{model_forward.1} parent=11 // pred_fallthru
          _
        // Predicated region
        $region37: #{model_forward.1} parent=11 // pred_check
          %p330 = pneg %p192
        $region38: #{model_forward.1} parent=11 // pred_check_branch
          %332 = sbr.rel (%p330) target = $region40
        $region39: #{model_forward.1} parent=11 // pred_region
          _
        $region40: #{model_forward.1} parent=11 // pred_fallthru
          _
        // Predicated region
        $region41: #{model_forward.1} parent=11 // pred_check
          %p333 = pneg %p213
        $region42: #{model_forward.1} parent=11 // pred_check_branch
          %335 = sbr.rel (%p333) target = $region44
        $region43: #{model_forward.1} parent=11 // pred_region
          _
        $region44: #{model_forward.1} parent=11 // pred_fallthru
          _
        // Predicated region
        $region45: #{model_forward.1} parent=11 // pred_check
          %p336 = pneg %p234
        $region46: #{model_forward.1} parent=11 // pred_check_branch
          %338 = sbr.rel (%p336) target = $region48
        $region47: #{model_forward.1} parent=11 // pred_region
          _
        $region48: #{model_forward.1} parent=11 // pred_fallthru
          _
        // Predicated region
        $region49: #{model_forward.1} parent=11 // pred_check
          %p339 = pneg %p255
        $region50: #{model_forward.1} parent=11 // pred_check_branch
          %341 = sbr.rel (%p339) target = $region52
        $region51: #{model_forward.1} parent=11 // pred_region
          _
        $region52: #{model_forward.1} parent=11 // pred_fallthru
          _
        // Predicated region
        $region53: #{model_forward.1} parent=11 // pred_check
          %p342 = pneg %p276
        $region54: #{model_forward.1} parent=11 // pred_check_branch
          %344 = sbr.rel (%p342) target = $region56
        $region55: #{model_forward.1} parent=11 // pred_region
          _
        $region56: #{model_forward.1} parent=11 // pred_fallthru
          _
      $region12: #{model_forward.1} parent=5 // pred_fallthru
        _
      %p345 = scmp.lt.s32.totalorder %s19, 2
      // Predicated region
      $region57: #{model_forward.1} parent=5 // pred_check
        %p346 = pneg %p345
      $region58: #{model_forward.1} parent=5 // pred_check_branch
        %348 = sbr.rel (%p346) target = $region60
      $region59: #{model_forward.1} parent=5 // pred_region
        // Predicated region
        $region61: #{model_forward.1} parent=59 // pred_check
          %p349 = pneg %p39
        $region62: #{model_forward.1} parent=59 // pred_check_branch
          %351 = sbr.rel (%p349) target = $region64
        $region63: #{model_forward.1} parent=59 // pred_region
          %p352 = scmp.lt.s32.totalorder %s19, 1
          %s353 = scalar_select %p352, %s19, 1
          %s354 = smul.addr %s353, 5
          %s355 = smul.addr %s354, 8
          %s356 = scalar_lea.vmem %s0, %s355
        $region64: #{model_forward.1} parent=59 // pred_fallthru
          _
      $region60: #{model_forward.1} parent=5 // pred_fallthru
        _
      %p357 = scmp.le.s32.totalorder 1, %s19
      %p358 = scmp.lt.s32.totalorder %s19, 3
      %p359 = pnand %p357, %p358
      %p360 = pneg %p359
      // Predicated region
      $region65: #{model_forward.1} parent=5 // pred_check
        _
      $region66: #{model_forward.1} parent=5 // pred_check_branch
        %362 = sbr.rel (%p359) target = $region68
      $region67: #{model_forward.1} parent=5 // pred_region
        %s363 = ssub.s32 %s19, 1
        %p364 = scmp.lt.s32.totalorder %s24, 1
        %s365 = scalar_select %p364, %s24, 1
        %s366 = smul.addr %s365, 5
        %s367 = smul.addr %s366, 8
        %s368 = scalar_lea.vmem %s0, %s367
        %p369 = pneg %p45
        %p370 = pneg %p42
        %p371 = pneg %p66
        %p372 = pneg %p63
        %p373 = pneg %p87
        %p374 = pneg %p84
        %p375 = pneg %p108
        %p376 = pneg %p105
        %p377 = pneg %p129
        %p378 = pneg %p126
        %p379 = pneg %p150
        %p380 = pneg %p147
        %p381 = pneg %p171
        %p382 = pneg %p168
        %p383 = pneg %p192
        %p384 = pneg %p189
        %p385 = pneg %p213
        %p386 = pneg %p210
        %p387 = pneg %p234
        %p388 = pneg %p231
        %p389 = pneg %p255
        %p390 = pneg %p252
        %p391 = pneg %p276
        %p392 = pneg %p273
        %p393 = pneg %p297
        %p394 = pneg %p294
        %p395 = scmp.lt.s32.totalorder %s24, 1
        %s396 = scalar_select %p395, %s24, 1
        %s397 = smul.addr %s396, 5
        %s398 = smul.addr %s397, 8
        %s399 = scalar_lea.vmem %s0, %s398
        %v401 = vld [vmem:[%s399] sm:$0xff]
        %v402 = vld [vmem:[%s399 + $0x8] sm:$0xff]
        %v403 = vld [vmem:[%s399 + $0x10] sm:$0xff]
        %v404 = vld [vmem:[%s399 + $0x18] sm:$0xff]
        %v405 = vld [vmem:[%s399 + $0x20] sm:$0xff]
        %v406 = vpack.c.bf16 %v402, %v401
        %v407 = vpack.c.bf16 %v404, %v403
        %v408 = vpack.c.bf16 %v405, %v405
        %v409 = vld [vmem:[%s1] sm:$0xf]
        %v410 = vld [vmem:[%s1 + $0x4] sm:$0xf]
        %v411 = vld [vmem:[%s1 + $0x8] sm:$0xf]
        %v412 = vld [vmem:[%s1 + $0xc] sm:$0xf]
        %v413 = vld [vmem:[%s1 + $0x10] sm:$0xf]
        %v414 = vld [vmem:[%s1 + $0x14] sm:$0xf]
        %v415 = vld [vmem:[%s1 + $0x18] sm:$0xf]
        %v416 = vld [vmem:[%s1 + $0x1c] sm:$0xf]
        %v417 = vld [vmem:[%s1 + $0x20] sm:$0xf]
        %v418 = vld [vmem:[%s1 + $0x24] sm:$0xf]
        %v419 = vld [vmem:[%s1 + $0x28] sm:$0xf]
        %v420 = vld [vmem:[%s1 + $0x2c] sm:$0x1]
        %v433 = vunpack.c.l.b16 %v409
        %v434 = vunpack.c.l.b16 %v410
        %v435 = vunpack.c.l.b16 %v411
        %v436 = vunpack.c.l.b16 %v412
        %v437 = vunpack.c.l.b16 %v413
        %v438 = vunpack.c.l.b16 %v414
        %v439 = vunpack.c.l.b16 %v415
        %v440 = vunpack.c.l.b16 %v416
        %v441 = vunpack.c.l.b16 %v417
        %v442 = vunpack.c.l.b16 %v418
        %v443 = vunpack.c.l.b16 %v419
        %v444 = vunpack.c.l.b16 %v420
        %v445 = vpack.c.b16 %v434, %v433
        %v446 = vpack.c.b16 %v436, %v435
        %v447 = vpack.c.b16 %v438, %v437
        %v448 = vpack.c.b16 %v440, %v439
        %v449 = vpack.c.b16 %v442, %v441
        %v450 = vpack.c.b16 %v444, %v443
        %vm451 = vcmask 326656
        %v453 = vsel %vm451, %v445, 0
        %v456 = vsel %vm451, %v446, 0
        %v459 = vsel %vm451, %v447, 0
        %v462 = vsel %vm451, %v448, 0
        %v465 = vsel %vm451, %v449, 0
        %v468 = vsel %vm451, %v450, 0
        %vm470 = vcmask 1043456
        %v472 = vsel %vm470, %v408, 0
        %474 = vmatprep.subr.bf16.mxu0 0
        %475 = vmatpush1.bf16.msra.mxu0 %v406
        %476 = vmatprep.subr.bf16.mxu0 0
        %477 = vmatpush1.bf16.msra.mxu0 %v407
        %478 = vmatprep.subr.bf16.mxu0 0
        %479 = vmatpush1.bf16.msra.mxu0 %v472
        %480 = vmatprep.subr.bf16.mxu0 0
        %481 = vmatpush1.bf16.msra.mxu0 0
        %482 = vmatprep.subr.bf16.mxu0 0
        %483 = vmatpush1.bf16.msra.mxu0 0
        %484 = vmatprep.subr.bf16.mxu0 0
        %485 = vmatpush1.bf16.msra.mxu0 0
        %486 = vmatprep.subr.bf16.mxu0 0
        %487 = vmatpush1.bf16.msra.mxu0 0
        %488 = vmatprep.subr.bf16.mxu0 0
        %489 = vmatpush1.bf16.msra.mxu0 0
        %490 = vmatprep.subr.bf16.mxu0 0
        %491 = vmatpush1.bf16.msra.mxu0 0
        %492 = vmatprep.subr.bf16.mxu0 0
        %493 = vmatpush1.bf16.msra.mxu0 0
        %494 = vmatprep.subr.bf16.mxu0 0
        %495 = vmatpush1.bf16.msra.mxu0 0
        %496 = vmatprep.subr.bf16.mxu0 0
        %497 = vmatpush1.bf16.msra.mxu0 0
        %498 = vmatprep.subr.bf16.mxu0 0
        %499 = vmatpush1.bf16.msra.mxu0 0
        %500 = vmatprep.subr.bf16.mxu0 0
        %501 = vmatpush1.bf16.msra.mxu0 0
        %502 = vmatprep.subr.bf16.mxu0 0
        %503 = vmatpush1.bf16.msra.mxu0 0
        %504 = vmatprep.subr.bf16.mxu0 0
        %505 = vmatpush1.bf16.msra.mxu0 0
        %506 = vmatprep.mubr.bf16.mxu0 0
        %507 = vmatmul.mubr.bf16.gmra.mrb[0].mxu0 %v453
        %v508 = vpop.f32.mrb[0].mxu0
        %v509 = vadd.f32 0.0, %v508
        %v510 = vpop.f32.mrb[0].mxu0
        %v511 = vpop.f32.mrb[0].mxu0
        %v512 = vadd.f32 0.0, %v511
        %v513 = vpop.f32.mrb[0].mxu0
        %514 = vmatprep.mubr.bf16.mxu0 0
        %515 = vmatmul.mubr.bf16.gmra.mrb[0].mxu0 %v456
        %v516 = vpop.f32.mrb[0].mxu0
        %v517 = vadd.f32 0.0, %v516
        %v518 = vpop.f32.mrb[0].mxu0
        %v519 = vpop.f32.mrb[0].mxu0
        %v520 = vadd.f32 0.0, %v519
        %v521 = vpop.f32.mrb[0].mxu0
        %522 = vmatprep.mubr.bf16.mxu0 0
        %523 = vmatmul.mubr.bf16.gmra.mrb[0].mxu0 %v459
        %v524 = vpop.f32.mrb[0].mxu0
        %v525 = vadd.f32 0.0, %v524
        %v526 = vpop.f32.mrb[0].mxu0
        %v527 = vpop.f32.mrb[0].mxu0
        %v528 = vadd.f32 0.0, %v527
        %v529 = vpop.f32.mrb[0].mxu0
        %530 = vmatprep.mubr.bf16.mxu0 0
        %531 = vmatmul.mubr.bf16.gmra.mrb[0].mxu0 %v462
        %v532 = vpop.f32.mrb[0].mxu0
        %v533 = vadd.f32 0.0, %v532
        %v534 = vpop.f32.mrb[0].mxu0
        %v535 = vpop.f32.mrb[0].mxu0
        %v536 = vadd.f32 0.0, %v535
        %v537 = vpop.f32.mrb[0].mxu0
        %538 = vmatprep.mubr.bf16.mxu0 0
        %539 = vmatmul.mubr.bf16.gmra.mrb[0].mxu0 %v465
        %v540 = vpop.f32.mrb[0].mxu0
        %v541 = vadd.f32 0.0, %v540
        %v542 = vpop.f32.mrb[0].mxu0
        %v543 = vpop.f32.mrb[0].mxu0
        %v544 = vadd.f32 0.0, %v543
        %v545 = vpop.f32.mrb[0].mxu0
        %546 = vmatprep.mubr.bf16.mxu0 0
        %547 = vmatmul.mubr.bf16.gmra.mrb[0].mxu0 %v468
        %v548 = vpop.f32.mrb[0].mxu0
        %v549 = vadd.f32 0.0, %v548
        %v550 = vpop.f32.mrb[0].mxu0
        %v551 = vpop.f32.mrb[0].mxu0
        %v552 = vadd.f32 0.0, %v551
        %v553 = vpop.f32.mrb[0].mxu0
        %554 = vdwg.mxu0
        %v555 = vpack.c.bf16 %v512, %v509
        %v556 = vpack.c.bf16 %v520, %v517
        %v557 = vpack.c.bf16 %v528, %v525
        %v558 = vpack.c.bf16 %v536, %v533
        %v559 = vpack.c.bf16 %v544, %v541
        %v560 = vpack.c.bf16 %v552, %v549
        %v561 = vld [vmem:[%s2] sm:$0xff]
        %v562 = vld [vmem:[%s2 + $0x8] sm:$0xf]
        %v563 = vld [vmem:[%s2 + $0xc] sm:$0xff]
        %v564 = vld [vmem:[%s2 + $0x14] sm:$0xf]
        %v565 = vld [vmem:[%s2 + $0x18] sm:$0xff]
        %v566 = vld [vmem:[%s2 + $0x20] sm:$0xf]
        %v567 = vld [vmem:[%s2 + $0x24] sm:$0xff]
        %v568 = vld [vmem:[%s2 + $0x2c] sm:$0xf]
        %v569 = vld [vmem:[%s2 + $0x30] sm:$0xff]
        %v570 = vld [vmem:[%s2 + $0x38] sm:$0xf]
        %v571 = vld [vmem:[%s2 + $0x3c] sm:$0xff]
        %v572 = vld [vmem:[%s2 + $0x44] sm:$0xf]
        %v573 = vld [vmem:[%s2 + $0x48] sm:$0xff]
        %v574 = vld [vmem:[%s2 + $0x50] sm:$0xf]
        %v575 = vld [vmem:[%s2 + $0x54] sm:$0xff]
        %v576 = vld [vmem:[%s2 + $0x5c] sm:$0xf]
        %s577 = scalar_lea.vmem %s2, 96
        %v578 = vld [vmem:[%s577] sm:$0xff]
        %v579 = vld [vmem:[%s577 + $0x8] sm:$0xf]
        %v580 = vld [vmem:[%s577 + $0xc] sm:$0xff]
        %v581 = vld [vmem:[%s577 + $0x14] sm:$0xf]
        %v582 = vld [vmem:[%s577 + $0x18] sm:$0xff]
        %v583 = vld [vmem:[%s577 + $0x20] sm:$0xf]
        %v584 = vld [vmem:[%s577 + $0x24] sm:$0xff]
        %v585 = vld [vmem:[%s577 + $0x2c] sm:$0xf]
        %v586 = vld [vmem:[%s577 + $0x30] sm:$0xff]
        %v587 = vld [vmem:[%s577 + $0x38] sm:$0xf]
        %v588 = vld [vmem:[%s577 + $0x3c] sm:$0xff]
        %v589 = vld [vmem:[%s577 + $0x44] sm:$0xf]
        %v590 = vld [vmem:[%s577 + $0x48] sm:$0xff]
        %v591 = vld [vmem:[%s577 + $0x50] sm:$0xf]
        %v592 = vld [vmem:[%s577 + $0x54] sm:$0xff]
        %v593 = vld [vmem:[%s577 + $0x5c] sm:$0xf]
        %vm596 = vcmask 1046528
        %v597 = vrot.slane %v556, 1
        %v598 = vrot.slane %v557, 1
        %v599 = vsel %vm596, %v597, %v598
        %v616 = vunpack.c.l.b16 %v578
        %v617 = vunpack.c.h.b16 %v578
        %v618 = vunpack.c.l.b16 %v579
        %v619 = vunpack.c.l.b16 %v580
        %v620 = vunpack.c.h.b16 %v580
        %v621 = vunpack.c.l.b16 %v581
        %v622 = vunpack.c.l.b16 %v582
        %v623 = vunpack.c.h.b16 %v582
        %v624 = vunpack.c.l.b16 %v583
        %v625 = vunpack.c.l.b16 %v584
        %v626 = vunpack.c.h.b16 %v584
        %v627 = vunpack.c.l.b16 %v585
        %v628 = vunpack.c.l.b16 %v586
        %v629 = vunpack.c.h.b16 %v586
        %v630 = vunpack.c.l.b16 %v587
        %v631 = vunpack.c.l.b16 %v588
        %v632 = vunpack.c.h.b16 %v588
        %v633 = vunpack.c.l.b16 %v589
        %v634 = vunpack.c.l.b16 %v590
        %v635 = vunpack.c.h.b16 %v590
        %v636 = vunpack.c.l.b16 %v591
        %v637 = vunpack.c.l.b16 %v592
        %v638 = vunpack.c.h.b16 %v592
        %v639 = vunpack.c.l.b16 %v593
        %v640 = vpack.c.b16 %v619, %v616
        %v641 = vpack.c.b16 %v620, %v617
        %v642 = vpack.c.b16 %v621, %v618
        %v643 = vpack.c.b16 %v625, %v622
        %v644 = vpack.c.b16 %v626, %v623
        %v645 = vpack.c.b16 %v627, %v624
        %v646 = vpack.c.b16 %v631, %v628
        %v647 = vpack.c.b16 %v632, %v629
        %v648 = vpack.c.b16 %v633, %v630
        %v649 = vpack.c.b16 %v637, %v634
        %v650 = vpack.c.b16 %v638, %v635
        %v651 = vpack.c.b16 %v639, %v636
        %vm664 = vcmask 523264
        %v666 = vsel %vm664, %v599, 0
        %v669 = vsel %vm664, %v598, 0
        %671 = vmatprep.subr.bf16.mxu0 %v641
        %672 = vmatpush1.bf16.msra.mxu0 %v640
        %673 = vmatprep.subr.bf16.mxu0 %v644
        %674 = vmatpush1.bf16.msra.mxu0 %v643
        %675 = vmatprep.subr.bf16.mxu0 %v647
        %676 = vmatpush1.bf16.msra.mxu0 %v646
        %677 = vmatprep.subr.bf16.mxu0 %v650
        %678 = vmatpush1.bf16.msra.mxu0 %v649
        %679 = vmatprep.subr.bf16.mxu0 0
        %680 = vmatpush1.bf16.msra.mxu0 0
        %681 = vmatprep.subr.bf16.mxu0 0
        %682 = vmatpush1.bf16.msra.mxu0 0
        %683 = vmatprep.subr.bf16.mxu0 0
        %684 = vmatpush1.bf16.msra.mxu0 0
        %685 = vmatprep.subr.bf16.mxu0 0
        %686 = vmatpush1.bf16.msra.mxu0 0
        %687 = vmatprep.subr.bf16.mxu0 0
        %688 = vmatpush1.bf16.msra.mxu0 0
        %689 = vmatprep.subr.bf16.mxu0 0
        %690 = vmatpush1.bf16.msra.mxu0 0
        %691 = vmatprep.subr.bf16.mxu0 0
        %692 = vmatpush1.bf16.msra.mxu0 0
        %693 = vmatprep.subr.bf16.mxu0 0
        %694 = vmatpush1.bf16.msra.mxu0 0
        %695 = vmatprep.subr.bf16.mxu0 0
        %696 = vmatpush1.bf16.msra.mxu0 0
        %697 = vmatprep.subr.bf16.mxu0 0
        %698 = vmatpush1.bf16.msra.mxu0 0
        %699 = vmatprep.subr.bf16.mxu0 0
        %700 = vmatpush1.bf16.msra.mxu0 0
        %701 = vmatprep.subr.bf16.mxu0 0
        %702 = vmatpush1.bf16.msra.mxu0 0
        %703 = vmatprep.mubr.bf16.mxu0 0
        %704 = vmatmul.mubr.bf16.gmra.mrb[0].mxu0 %v666
        %v705 = vpop.f32.mrb[0].mxu0
        %v706 = vadd.f32 0.0, %v705
        %v707 = vpop.f32.mrb[0].mxu0
        %v708 = vadd.f32 0.0, %v707
        %v709 = vpop.f32.mrb[0].mxu0
        %v710 = vadd.f32 0.0, %v709
        %v711 = vpop.f32.mrb[0].mxu0
        %v712 = vadd.f32 0.0, %v711
        %713 = vmatprep.mubr.bf16.mxu0 0
        %714 = vmatmul.mubr.bf16.gmra.mrb[0].mxu0 %v669
        %v715 = vpop.f32.mrb[0].mxu0
        %v716 = vadd.f32 0.0, %v715
        %v717 = vpop.f32.mrb[0].mxu0
        %v718 = vadd.f32 0.0, %v717
        %v719 = vpop.f32.mrb[0].mxu0
        %v720 = vpop.f32.mrb[0].mxu0
        %721 = vdwg.mxu0
        %722 = vmatprep.subr.bf16.mxu0 0
        %723 = vmatpush1.bf16.msra.mxu0 %v642
        %724 = vmatprep.subr.bf16.mxu0 0
        %725 = vmatpush1.bf16.msra.mxu0 %v645
        %726 = vmatprep.subr.bf16.mxu0 0
        %727 = vmatpush1.bf16.msra.mxu0 %v648
        %728 = vmatprep.subr.bf16.mxu0 0
        %729 = vmatpush1.bf16.msra.mxu0 %v651
        %730 = vmatprep.subr.bf16.mxu0 0
        %731 = vmatpush1.bf16.msra.mxu0 0
        %732 = vmatprep.subr.bf16.mxu0 0
        %733 = vmatpush1.bf16.msra.mxu0 0
        %734 = vmatprep.subr.bf16.mxu0 0
        %735 = vmatpush1.bf16.msra.mxu0 0
        %736 = vmatprep.subr.bf16.mxu0 0
        %737 = vmatpush1.bf16.msra.mxu0 0
        %738 = vmatprep.subr.bf16.mxu0 0
        %739 = vmatpush1.bf16.msra.mxu0 0
        %740 = vmatprep.subr.bf16.mxu0 0
        %741 = vmatpush1.bf16.msra.mxu0 0
        %742 = vmatprep.subr.bf16.mxu0 0
        %743 = vmatpush1.bf16.msra.mxu0 0
        %744 = vmatprep.subr.bf16.mxu0 0
        %745 = vmatpush1.bf16.msra.mxu0 0
        %746 = vmatprep.subr.bf16.mxu0 0
        %747 = vmatpush1.bf16.msra.mxu0 0
        %748 = vmatprep.subr.bf16.mxu0 0
        %749 = vmatpush1.bf16.msra.mxu0 0
        %750 = vmatprep.subr.bf16.mxu0 0
        %751 = vmatpush1.bf16.msra.mxu0 0
        %752 = vmatprep.subr.bf16.mxu0 0
        %753 = vmatpush1.bf16.msra.mxu0 0
        %754 = vmatprep.mubr.bf16.mxu0 0
        %755 = vmatmul.mubr.bf16.gmra.mrb[0].mxu0 %v666
        %v756 = vpop.f32.mrb[0].mxu0
        %v757 = vadd.f32 0.0, %v756
        %v758 = vpop.f32.mrb[0].mxu0
        %v759 = vpop.f32.mrb[0].mxu0
        %v760 = vadd.f32 0.0, %v759
        %v761 = vpop.f32.mrb[0].mxu0
        %762 = vmatprep.mubr.bf16.mxu0 0
        %763 = vmatmul.mubr.bf16.gmra.mrb[0].mxu0 %v669
        %v764 = vpop.f32.mrb[0].mxu0
        %v765 = vadd.f32 0.0, %v764
        %v766 = vpop.f32.mrb[0].mxu0
        %v767 = vpop.f32.mrb[0].mxu0
        %v768 = vpop.f32.mrb[0].mxu0
        %769 = vdwg.mxu0
        %v786 = vunpack.c.l.b16 %v561
        %v787 = vunpack.c.h.b16 %v561
        %v788 = vunpack.c.l.b16 %v562
        %v789 = vunpack.c.l.b16 %v563
        %v790 = vunpack.c.h.b16 %v563
        %v791 = vunpack.c.l.b16 %v564
        %v792 = vunpack.c.l.b16 %v565
        %v793 = vunpack.c.h.b16 %v565
        %v794 = vunpack.c.l.b16 %v566
        %v795 = vunpack.c.l.b16 %v567
        %v796 = vunpack.c.h.b16 %v567
        %v797 = vunpack.c.l.b16 %v568
        %v798 = vunpack.c.l.b16 %v569
        %v799 = vunpack.c.h.b16 %v569
        %v800 = vunpack.c.l.b16 %v570
        %v801 = vunpack.c.l.b16 %v571
        %v802 = vunpack.c.h.b16 %v571
        %v803 = vunpack.c.l.b16 %v572
        %v804 = vunpack.c.l.b16 %v573
        %v805 = vunpack.c.h.b16 %v573
        %v806 = vunpack.c.l.b16 %v574
        %v807 = vunpack.c.l.b16 %v575
        %v808 = vunpack.c.h.b16 %v575
        %v809 = vunpack.c.l.b16 %v576
        %v810 = vpack.c.b16 %v789, %v786
        %v811 = vpack.c.b16 %v790, %v787
        %v812 = vpack.c.b16 %v791, %v788
        %v813 = vpack.c.b16 %v795, %v792
        %v814 = vpack.c.b16 %v796, %v793
        %v815 = vpack.c.b16 %v797, %v794
        %v816 = vpack.c.b16 %v801, %v798
        %v817 = vpack.c.b16 %v802, %v799
        %v818 = vpack.c.b16 %v803, %v800
        %v819 = vpack.c.b16 %v807, %v804
        %v820 = vpack.c.b16 %v808, %v805
        %v821 = vpack.c.b16 %v809, %v806
        %v835 = vsel %vm664, %v555, 0
        %v838 = vsel %vm664, %v556, 0
        %840 = vmatprep.subr.bf16.mxu0 %v811
        %841 = vmatpush1.bf16.msra.mxu0 %v810
        %842 = vmatprep.subr.bf16.mxu0 %v814
        %843 = vmatpush1.bf16.msra.mxu0 %v813
        %844 = vmatprep.subr.bf16.mxu0 %v817
        %845 = vmatpush1.bf16.msra.mxu0 %v816
        %846 = vmatprep.subr.bf16.mxu0 %v820
        %847 = vmatpush1.bf16.msra.mxu0 %v819
        %848 = vmatprep.subr.bf16.mxu0 0
        %849 = vmatpush1.bf16.msra.mxu0 0
        %850 = vmatprep.subr.bf16.mxu0 0
        %851 = vmatpush1.bf16.msra.mxu0 0
        %852 = vmatprep.subr.bf16.mxu0 0
        %853 = vmatpush1.bf16.msra.mxu0 0
        %854 = vmatprep.subr.bf16.mxu0 0
        %855 = vmatpush1.bf16.msra.mxu0 0
        %856 = vmatprep.subr.bf16.mxu0 0
        %857 = vmatpush1.bf16.msra.mxu0 0
        %858 = vmatprep.subr.bf16.mxu0 0
        %859 = vmatpush1.bf16.msra.mxu0 0
        %860 = vmatprep.subr.bf16.mxu0 0
        %861 = vmatpush1.bf16.msra.mxu0 0
        %862 = vmatprep.subr.bf16.mxu0 0
        %863 = vmatpush1.bf16.msra.mxu0 0
        %864 = vmatprep.subr.bf16.mxu0 0
        %865 = vmatpush1.bf16.msra.mxu0 0
        %866 = vmatprep.subr.bf16.mxu0 0
        %867 = vmatpush1.bf16.msra.mxu0 0
        %868 = vmatprep.subr.bf16.mxu0 0
        %869 = vmatpush1.bf16.msra.mxu0 0
        %870 = vmatprep.subr.bf16.mxu0 0
        %871 = vmatpush1.bf16.msra.mxu0 0
        %872 = vmatprep.mubr.bf16.mxu0 0
        %873 = vmatmul.mubr.bf16.gmra.mrb[0].mxu0 %v835
        %v874 = vpop.f32.mrb[0].mxu0
        %v875 = vadd.f32 %v706, %v874
        %v876 = vpop.f32.mrb[0].mxu0
        %v877 = vadd.f32 %v708, %v876
        %v878 = vpop.f32.mrb[0].mxu0
        %v879 = vadd.f32 %v710, %v878
        %v880 = vpop.f32.mrb[0].mxu0
        %v881 = vadd.f32 %v712, %v880
        %882 = vmatprep.mubr.bf16.mxu0 0
        %883 = vmatmul.mubr.bf16.gmra.mrb[0].mxu0 %v838
        %v884 = vpop.f32.mrb[0].mxu0
        %v885 = vadd.f32 %v716, %v884
        %v886 = vpop.f32.mrb[0].mxu0
        %v887 = vadd.f32 %v718, %v886
        %v888 = vpop.f32.mrb[0].mxu0
        %v889 = vpop.f32.mrb[0].mxu0
        %890 = vdwg.mxu0
        %891 = vmatprep.subr.bf16.mxu0 0
        %892 = vmatpush1.bf16.msra.mxu0 %v812
        %893 = vmatprep.subr.bf16.mxu0 0
        %894 = vmatpush1.bf16.msra.mxu0 %v815
        %895 = vmatprep.subr.bf16.mxu0 0
        %896 = vmatpush1.bf16.msra.mxu0 %v818
        %897 = vmatprep.subr.bf16.mxu0 0
        %898 = vmatpush1.bf16.msra.mxu0 %v821
        %899 = vmatprep.subr.bf16.mxu0 0
        %900 = vmatpush1.bf16.msra.mxu0 0
        %901 = vmatprep.subr.bf16.mxu0 0
        %902 = vmatpush1.bf16.msra.mxu0 0
        %903 = vmatprep.subr.bf16.mxu0 0
        %904 = vmatpush1.bf16.msra.mxu0 0
        %905 = vmatprep.subr.bf16.mxu0 0
        %906 = vmatpush1.bf16.msra.mxu0 0
        %907 = vmatprep.subr.bf16.mxu0 0
        %908 = vmatpush1.bf16.msra.mxu0 0
        %909 = vmatprep.subr.bf16.mxu0 0
        %910 = vmatpush1.bf16.msra.mxu0 0
        %911 = vmatprep.subr.bf16.mxu0 0
        %912 = vmatpush1.bf16.msra.mxu0 0
        %913 = vmatprep.subr.bf16.mxu0 0
        %914 = vmatpush1.bf16.msra.mxu0 0
        %915 = vmatprep.subr.bf16.mxu0 0
        %916 = vmatpush1.bf16.msra.mxu0 0
        %917 = vmatprep.subr.bf16.mxu0 0
        %918 = vmatpush1.bf16.msra.mxu0 0
        %919 = vmatprep.subr.bf16.mxu0 0
        %920 = vmatpush1.bf16.msra.mxu0 0
        %921 = vmatprep.subr.bf16.mxu0 0
        %922 = vmatpush1.bf16.msra.mxu0 0
        %923 = vmatprep.mubr.bf16.mxu0 0
        %924 = vmatmul.mubr.bf16.gmra.mrb[0].mxu0 %v835
        %v925 = vpop.f32.mrb[0].mxu0
        %v926 = vadd.f32 %v757, %v925
        %v927 = vpop.f32.mrb[0].mxu0
        %v928 = vpop.f32.mrb[0].mxu0
        %v929 = vadd.f32 %v760, %v928
        %v930 = vpop.f32.mrb[0].mxu0
        %931 = vmatprep.mubr.bf16.mxu0 0
        %932 = vmatmul.mubr.bf16.gmra.mrb[0].mxu0 %v838
        %v933 = vpop.f32.mrb[0].mxu0
        %v934 = vadd.f32 %v765, %v933
        %v935 = vpop.f32.mrb[0].mxu0
        %v936 = vpop.f32.mrb[0].mxu0
        %v937 = vpop.f32.mrb[0].mxu0
        %938 = vdwg.mxu0
        %s939 = scalar_lea.vmem %s2, 192
        %v940 = vld [vmem:[%s939] sm:$0xff]
        %v941 = vld [vmem:[%s939 + $0x8] sm:$0xf]
        %v942 = vld [vmem:[%s939 + $0xc] sm:$0xff]
        %v943 = vld [vmem:[%s939 + $0x14] sm:$0xf]
        %v944 = vld [vmem:[%s939 + $0x18] sm:$0xff]
        %v945 = vld [vmem:[%s939 + $0x20] sm:$0xf]
        %v946 = vld [vmem:[%s939 + $0x24] sm:$0xff]
        %v947 = vld [vmem:[%s939 + $0x2c] sm:$0xf]
        %v948 = vld [vmem:[%s939 + $0x30] sm:$0xff]
        %v949 = vld [vmem:[%s939 + $0x38] sm:$0xf]
        %v950 = vld [vmem:[%s939 + $0x3c] sm:$0xff]
        %v951 = vld [vmem:[%s939 + $0x44] sm:$0xf]
        %v952 = vld [vmem:[%s939 + $0x48] sm:$0xff]
        %v953 = vld [vmem:[%s939 + $0x50] sm:$0xf]
        %v954 = vld [vmem:[%s939 + $0x54] sm:$0xff]
        %v955 = vld [vmem:[%s939 + $0x5c] sm:$0xf]
        %vm957 = vcmask 1045504
        %v958 = vrot.slane %v557, 2
        %v959 = vrot.slane %v558, 2
        %v960 = vsel %vm957, %v958, %v959
        %v977 = vunpack.c.l.b16 %v940
        %v978 = vunpack.c.h.b16 %v940
        %v979 = vunpack.c.l.b16 %v941
        %v980 = vunpack.c.l.b16 %v942
        %v981 = vunpack.c.h.b16 %v942
        %v982 = vunpack.c.l.b16 %v943
        %v983 = vunpack.c.l.b16 %v944
        %v984 = vunpack.c.h.b16 %v944
        %v985 = vunpack.c.l.b16 %v945
        %v986 = vunpack.c.l.b16 %v946
        %v987 = vunpack.c.h.b16 %v946
        %v988 = vunpack.c.l.b16 %v947
        %v989 = vunpack.c.l.b16 %v948
        %v990 = vunpack.c.h.b16 %v948
        %v991 = vunpack.c.l.b16 %v949
        %v992 = vunpack.c.l.b16 %v950
        %v993 = vunpack.c.h.b16 %v950
        %v994 = vunpack.c.l.b16 %v951
        %v995 = vunpack.c.l.b16 %v952
        %v996 = vunpack.c.h.b16 %v952
        %v997 = vunpack.c.l.b16 %v953
        %v998 = vunpack.c.l.b16 %v954
        %v999 = vunpack.c.h.b16 %v954
        %v1000 = vunpack.c.l.b16 %v955
        %v1001 = vpack.c.b16 %v980, %v977
        %v1002 = vpack.c.b16 %v981, %v978
        %v1003 = vpack.c.b16 %v982, %v979
        %v1004 = vpack.c.b16 %v986, %v983
        %v1005 = vpack.c.b16 %v987, %v984
        %v1006 = vpack.c.b16 %v988, %v985
        %v1007 = vpack.c.b16 %v992, %v989
        %v1008 = vpack.c.b16 %v993, %v990
        %v1009 = vpack.c.b16 %v994, %v991
        %v1010 = vpack.c.b16 %v998, %v995
        %v1011 = vpack.c.b16 %v999, %v996
        %v1012 = vpack.c.b16 %v1000, %v997
        %v1026 = vsel %vm664, %v960, 0
        %v1029 = vsel %vm664, %v959, 0
        %1031 = vmatprep.subr.bf16.mxu0 %v1002
        %1032 = vmatpush1.bf16.msra.mxu0 %v1001
        %1033 = vmatprep.subr.bf16.mxu0 %v1005
        %1034 = vmatpush1.bf16.msra.mxu0 %v1004
        %1035 = vmatprep.subr.bf16.mxu0 %v1008
        %1036 = vmatpush1.bf16.msra.mxu0 %v1007
        %1037 = vmatprep.subr.bf16.mxu0 %v1011
        %1038 = vmatpush1.bf16.msra.mxu0 %v1010
        %1039 = vmatprep.subr.bf16.mxu0 0
        %1040 = vmatpush1.bf16.msra.mxu0 0
        %1041 = vmatprep.subr.bf16.mxu0 0
        %1042 = vmatpush1.bf16.msra.mxu0 0
        %1043 = vmatprep.subr.bf16.mxu0 0
        %1044 = vmatpush1.bf16.msra.mxu0 0
        %1045 = vmatprep.subr.bf16.mxu0 0
        %1046 = vmatpush1.bf16.msra.mxu0 0
        %1047 = vmatprep.subr.bf16.mxu0 0
        %1048 = vmatpush1.bf16.msra.mxu0 0
        %1049 = vmatprep.subr.bf16.mxu0 0
        %1050 = vmatpush1.bf16.msra.mxu0 0
        %1051 = vmatprep.subr.bf16.mxu0 0
        %1052 = vmatpush1.bf16.msra.mxu0 0
        %1053 = vmatprep.subr.bf16.mxu0 0
        %1054 = vmatpush1.bf16.msra.mxu0 0
        %1055 = vmatprep.subr.bf16.mxu0 0
        %1056 = vmatpush1.bf16.msra.mxu0 0
        %1057 = vmatprep.subr.bf16.mxu0 0
        %1058 = vmatpush1.bf16.msra.mxu0 0
        %1059 = vmatprep.subr.bf16.mxu0 0
        %1060 = vmatpush1.bf16.msra.mxu0 0
        %1061 = vmatprep.subr.bf16.mxu0 0
        %1062 = vmatpush1.bf16.msra.mxu0 0
        %1063 = vmatprep.mubr.bf16.mxu0 0
        %1064 = vmatmul.mubr.bf16.gmra.mrb[0].mxu0 %v1026
        %v1065 = vpop.f32.mrb[0].mxu0
        %v1066 = vadd.f32 0.0, %v1065
        %v1067 = vpop.f32.mrb[0].mxu0
        %v1068 = vadd.f32 0.0, %v1067
        %v1069 = vpop.f32.mrb[0].mxu0
        %v1070 = vadd.f32 0.0, %v1069
        %v1071 = vpop.f32.mrb[0].mxu0
        %v1072 = vadd.f32 0.0, %v1071
        %1073 = vmatprep.mubr.bf16.mxu0 0
        %1074 = vmatmul.mubr.bf16.gmra.mrb[0].mxu0 %v1029
        %v1075 = vpop.f32.mrb[0].mxu0
        %v1076 = vadd.f32 0.0, %v1075
        %v1077 = vpop.f32.mrb[0].mxu0
        %v1078 = vadd.f32 0.0, %v1077
        %v1079 = vpop.f32.mrb[0].mxu0
        %v1080 = vpop.f32.mrb[0].mxu0
        %1081 = vdwg.mxu0
        %1082 = vmatprep.subr.bf16.mxu0 0
        %1083 = vmatpush1.bf16.msra.mxu0 %v1003
        %1084 = vmatprep.subr.bf16.mxu0 0
        %1085 = vmatpush1.bf16.msra.mxu0 %v1006
        %1086 = vmatprep.subr.bf16.mxu0 0
        %1087 = vmatpush1.bf16.msra.mxu0 %v1009
        %1088 = vmatprep.subr.bf16.mxu0 0
        %1089 = vmatpush1.bf16.msra.mxu0 %v1012
        %1090 = vmatprep.subr.bf16.mxu0 0
        %1091 = vmatpush1.bf16.msra.mxu0 0
        %1092 = vmatprep.subr.bf16.mxu0 0
        %1093 = vmatpush1.bf16.msra.mxu0 0
        %1094 = vmatprep.subr.bf16.mxu0 0
        %1095 = vmatpush1.bf16.msra.mxu0 0
        %1096 = vmatprep.subr.bf16.mxu0 0
        %1097 = vmatpush1.bf16.msra.mxu0 0
        %1098 = vmatprep.subr.bf16.mxu0 0
        %1099 = vmatpush1.bf16.msra.mxu0 0
        %1100 = vmatprep.subr.bf16.mxu0 0
        %1101 = vmatpush1.bf16.msra.mxu0 0
        %1102 = vmatprep.subr.bf16.mxu0 0
        %1103 = vmatpush1.bf16.msra.mxu0 0
        %1104 = vmatprep.subr.bf16.mxu0 0
        %1105 = vmatpush1.bf16.msra.mxu0 0
        %1106 = vmatprep.subr.bf16.mxu0 0
        %1107 = vmatpush1.bf16.msra.mxu0 0
        %1108 = vmatprep.subr.bf16.mxu0 0
        %1109 = vmatpush1.bf16.msra.mxu0 0
        %1110 = vmatprep.subr.bf16.mxu0 0
        %1111 = vmatpush1.bf16.msra.mxu0 0
        %1112 = vmatprep.subr.bf16.mxu0 0
        %1113 = vmatpush1.bf16.msra.mxu0 0
        %1114 = vmatprep.mubr.bf16.mxu0 0
        %1115 = vmatmul.mubr.bf16.gmra.mrb[0].mxu0 %v1026
        %v1116 = vpop.f32.mrb[0].mxu0
        %v1117 = vadd.f32 0.0, %v1116
        %v1118 = vpop.f32.mrb[0].mxu0
        %v1119 = vpop.f32.mrb[0].mxu0
        %v1120 = vadd.f32 0.0, %v1119
        %v1121 = vpop.f32.mrb[0].mxu0
        %1122 = vmatprep.mubr.bf16.mxu0 0
        %1123 = vmatmul.mubr.bf16.gmra.mrb[0].mxu0 %v1029
        %v1124 = vpop.f32.mrb[0].mxu0
        %v1125 = vadd.f32 0.0, %v1124
        %v1126 = vpop.f32.mrb[0].mxu0
        %v1127 = vpop.f32.mrb[0].mxu0
        %v1128 = vpop.f32.mrb[0].mxu0
        %1129 = vdwg.mxu0
        %v1130 = vadd.f32 %v875, %v1066
        %v1131 = vadd.f32 %v877, %v1068
        %v1132 = vadd.f32 %v926, %v1117
        %v1133 = vadd.f32 %v879, %v1070
        %v1134 = vadd.f32 %v881, %v1072
        %v1135 = vadd.f32 %v929, %v1120
        %v1136 = vadd.f32 %v885, %v1076
        %v1137 = vadd.f32 %v887, %v1078
        %v1138 = vadd.f32 %v934, %v1125
        %s1139 = scalar_lea.vmem %s2, 288
        %v1140 = vld [vmem:[%s1139] sm:$0xff]
        %v1141 = vld [vmem:[%s1139 + $0x8] sm:$0xf]
        %v1142 = vld [vmem:[%s1139 + $0xc] sm:$0xff]
        %v1143 = vld [vmem:[%s1139 + $0x14] sm:$0xf]
        %v1144 = vld [vmem:[%s1139 + $0x18] sm:$0xff]
        %v1145 = vld [vmem:[%s1139 + $0x20] sm:$0xf]
        %v1146 = vld [vmem:[%s1139 + $0x24] sm:$0xff]
        %v1147 = vld [vmem:[%s1139 + $0x2c] sm:$0xf]
        %v1148 = vld [vmem:[%s1139 + $0x30] sm:$0xff]
        %v1149 = vld [vmem:[%s1139 + $0x38] sm:$0xf]
        %v1150 = vld [vmem:[%s1139 + $0x3c] sm:$0xff]
        %v1151 = vld [vmem:[%s1139 + $0x44] sm:$0xf]
        %v1152 = vld [vmem:[%s1139 + $0x48] sm:$0xff]
        %v1153 = vld [vmem:[%s1139 + $0x50] sm:$0xf]
        %v1154 = vld [vmem:[%s1139 + $0x54] sm:$0xff]
        %v1155 = vld [vmem:[%s1139 + $0x5c] sm:$0xf]
        %vm1157 = vcmask 1044480
        %v1158 = vrot.slane %v558, 3
        %v1159 = vrot.slane %v559, 3
        %v1160 = vsel %vm1157, %v1158, %v1159
        %v1177 = vunpack.c.l.b16 %v1140
        %v1178 = vunpack.c.h.b16 %v1140
        %v1179 = vunpack.c.l.b16 %v1141
        %v1180 = vunpack.c.l.b16 %v1142
        %v1181 = vunpack.c.h.b16 %v1142
        %v1182 = vunpack.c.l.b16 %v1143
        %v1183 = vunpack.c.l.b16 %v1144
        %v1184 = vunpack.c.h.b16 %v1144
        %v1185 = vunpack.c.l.b16 %v1145
        %v1186 = vunpack.c.l.b16 %v1146
        %v1187 = vunpack.c.h.b16 %v1146
        %v1188 = vunpack.c.l.b16 %v1147
        %v1189 = vunpack.c.l.b16 %v1148
        %v1190 = vunpack.c.h.b16 %v1148
        %v1191 = vunpack.c.l.b16 %v1149
        %v1192 = vunpack.c.l.b16 %v1150
        %v1193 = vunpack.c.h.b16 %v1150
        %v1194 = vunpack.c.l.b16 %v1151
        %v1195 = vunpack.c.l.b16 %v1152
        %v1196 = vunpack.c.h.b16 %v1152
        %v1197 = vunpack.c.l.b16 %v1153
        %v1198 = vunpack.c.l.b16 %v1154
        %v1199 = vunpack.c.h.b16 %v1154
        %v1200 = vunpack.c.l.b16 %v1155
        %v1201 = vpack.c.b16 %v1180, %v1177
        %v1202 = vpack.c.b16 %v1181, %v1178
        %v1203 = vpack.c.b16 %v1182, %v1179
        %v1204 = vpack.c.b16 %v1186, %v1183
        %v1205 = vpack.c.b16 %v1187, %v1184
        %v1206 = vpack.c.b16 %v1188, %v1185
        %v1207 = vpack.c.b16 %v1192, %v1189
        %v1208 = vpack.c.b16 %v1193, %v1190
        %v1209 = vpack.c.b16 %v1194, %v1191
        %v1210 = vpack.c.b16 %v1198, %v1195
        %v1211 = vpack.c.b16 %v1199, %v1196
        %v1212 = vpack.c.b16 %v1200, %v1197
        %v1226 = vsel %vm664, %v1160, 0
        %v1229 = vsel %vm664, %v1159, 0
        %1231 = vmatprep.subr.bf16.mxu0 %v1202
        %1232 = vmatpush1.bf16.msra.mxu0 %v1201
        %1233 = vmatprep.subr.bf16.mxu0 %v1205
        %1234 = vmatpush1.bf16.msra.mxu0 %v1204
        %1235 = vmatprep.subr.bf16.mxu0 %v1208
        %1236 = vmatpush1.bf16.msra.mxu0 %v1207
        %1237 = vmatprep.subr.bf16.mxu0 %v1211
        %1238 = vmatpush1.bf16.msra.mxu0 %v1210
        %1239 = vmatprep.subr.bf16.mxu0 0
        %1240 = vmatpush1.bf16.msra.mxu0 0
        %1241 = vmatprep.subr.bf16.mxu0 0
        %1242 = vmatpush1.bf16.msra.mxu0 0
        %1243 = vmatprep.subr.bf16.mxu0 0
        %1244 = vmatpush1.bf16.msra.mxu0 0
        %1245 = vmatprep.subr.bf16.mxu0 0
        %1246 = vmatpush1.bf16.msra.mxu0 0
        %1247 = vmatprep.subr.bf16.mxu0 0
        %1248 = vmatpush1.bf16.msra.mxu0 0
        %1249 = vmatprep.subr.bf16.mxu0 0
        %1250 = vmatpush1.bf16.msra.mxu0 0
        %1251 = vmatprep.subr.bf16.mxu0 0
        %1252 = vmatpush1.bf16.msra.mxu0 0
        %1253 = vmatprep.subr.bf16.mxu0 0
        %1254 = vmatpush1.bf16.msra.mxu0 0
        %1255 = vmatprep.subr.bf16.mxu0 0
        %1256 = vmatpush1.bf16.msra.mxu0 0
        %1257 = vmatprep.subr.bf16.mxu0 0
        %1258 = vmatpush1.bf16.msra.mxu0 0
        %1259 = vmatprep.subr.bf16.mxu0 0
        %1260 = vmatpush1.bf16.msra.mxu0 0
        %1261 = vmatprep.subr.bf16.mxu0 0
        %1262 = vmatpush1.bf16.msra.mxu0 0
        %1263 = vmatprep.mubr.bf16.mxu0 0
        %1264 = vmatmul.mubr.bf16.gmra.mrb[0].mxu0 %v1226
        %v1265 = vpop.f32.mrb[0].mxu0
        %v1266 = vadd.f32 0.0, %v1265
        %v1267 = vpop.f32.mrb[0].mxu0
        %v1268 = vadd.f32 0.0, %v1267
        %v1269 = vpop.f32.mrb[0].mxu0
        %v1270 = vadd.f32 0.0, %v1269
        %v1271 = vpop.f32.mrb[0].mxu0
        %v1272 = vadd.f32 0.0, %v1271
        %1273 = vmatprep.mubr.bf16.mxu0 0
        %1274 = vmatmul.mubr.bf16.gmra.mrb[0].mxu0 %v1229
        %v1275 = vpop.f32.mrb[0].mxu0
        %v1276 = vadd.f32 0.0, %v1275
        %v1277 = vpop.f32.mrb[0].mxu0
        %v1278 = vadd.f32 0.0, %v1277
        %v1279 = vpop.f32.mrb[0].mxu0
        %v1280 = vpop.f32.mrb[0].mxu0
        %1281 = vdwg.mxu0
        %1282 = vmatprep.subr.bf16.mxu0 0
        %1283 = vmatpush1.bf16.msra.mxu0 %v1203
        %1284 = vmatprep.subr.bf16.mxu0 0
        %1285 = vmatpush1.bf16.msra.mxu0 %v1206
        %1286 = vmatprep.subr.bf16.mxu0 0
        %1287 = vmatpush1.bf16.msra.mxu0 %v1209
        %1288 = vmatprep.subr.bf16.mxu0 0
        %1289 = vmatpush1.bf16.msra.mxu0 %v1212
        %1290 = vmatprep.subr.bf16.mxu0 0
        %1291 = vmatpush1.bf16.msra.mxu0 0
        %1292 = vmatprep.subr.bf16.mxu0 0
        %1293 = vmatpush1.bf16.msra.mxu0 0
        %1294 = vmatprep.subr.bf16.mxu0 0
        %1295 = vmatpush1.bf16.msra.mxu0 0
        %1296 = vmatprep.subr.bf16.mxu0 0
        %1297 = vmatpush1.bf16.msra.mxu0 0
        %1298 = vmatprep.subr.bf16.mxu0 0
        %1299 = vmatpush1.bf16.msra.mxu0 0
        %1300 = vmatprep.subr.bf16.mxu0 0
        %1301 = vmatpush1.bf16.msra.mxu0 0
        %1302 = vmatprep.subr.bf16.mxu0 0
        %1303 = vmatpush1.bf16.msra.mxu0 0
        %1304 = vmatprep.subr.bf16.mxu0 0
        %1305 = vmatpush1.bf16.msra.mxu0 0
        %1306 = vmatprep.subr.bf16.mxu0 0
        %1307 = vmatpush1.bf16.msra.mxu0 0
        %1308 = vmatprep.subr.bf16.mxu0 0
        %1309 = vmatpush1.bf16.msra.mxu0 0
        %1310 = vmatprep.subr.bf16.mxu0 0
        %1311 = vmatpush1.bf16.msra.mxu0 0
        %1312 = vmatprep.subr.bf16.mxu0 0
        %1313 = vmatpush1.bf16.msra.mxu0 0
        %1314 = vmatprep.mubr.bf16.mxu0 0
        %1315 = vmatmul.mubr.bf16.gmra.mrb[0].mxu0 %v1226
        %v1316 = vpop.f32.mrb[0].mxu0
        %v1317 = vadd.f32 0.0, %v1316
        %v1318 = vpop.f32.mrb[0].mxu0
        %v1319 = vpop.f32.mrb[0].mxu0
        %v1320 = vadd.f32 0.0, %v1319
        %v1321 = vpop.f32.mrb[0].mxu0
        %1322 = vmatprep.mubr.bf16.mxu0 0
        %1323 = vmatmul.mubr.bf16.gmra.mrb[0].mxu0 %v1229
        %v1324 = vpop.f32.mrb[0].mxu0
        %v1325 = vadd.f32 0.0, %v1324
        %v1326 = vpop.f32.mrb[0].mxu0
        %v1327 = vpop.f32.mrb[0].mxu0
        %v1328 = vpop.f32.mrb[0].mxu0
        %1329 = vdwg.mxu0
        %v1330 = vadd.f32 %v1130, %v1266
        %v1331 = vadd.f32 %v1131, %v1268
        %v1332 = vadd.f32 %v1132, %v1317
        %v1333 = vadd.f32 %v1133, %v1270
        %v1334 = vadd.f32 %v1134, %v1272
        %v1335 = vadd.f32 %v1135, %v1320
        %v1336 = vadd.f32 %v1136, %v1276
        %v1337 = vadd.f32 %v1137, %v1278
        %v1338 = vadd.f32 %v1138, %v1325
        %s1339 = scalar_lea.vmem %s2, 384
        %v1340 = vld [vmem:[%s1339] sm:$0xff]
        %v1341 = vld [vmem:[%s1339 + $0x8] sm:$0xf]
        %v1342 = vld [vmem:[%s1339 + $0xc] sm:$0xff]
        %v1343 = vld [vmem:[%s1339 + $0x14] sm:$0xf]
        %v1344 = vld [vmem:[%s1339 + $0x18] sm:$0xff]
        %v1345 = vld [vmem:[%s1339 + $0x20] sm:$0xf]
        %v1346 = vld [vmem:[%s1339 + $0x24] sm:$0xff]
        %v1347 = vld [vmem:[%s1339 + $0x2c] sm:$0xf]
        %v1348 = vld [vmem:[%s1339 + $0x30] sm:$0xff]
        %v1349 = vld [vmem:[%s1339 + $0x38] sm:$0xf]
        %v1350 = vld [vmem:[%s1339 + $0x3c] sm:$0xff]
        %v1351 = vld [vmem:[%s1339 + $0x44] sm:$0xf]
        %v1352 = vld [vmem:[%s1339 + $0x48] sm:$0xff]
        %v1353 = vld [vmem:[%s1339 + $0x50] sm:$0xf]
        %v1354 = vld [vmem:[%s1339 + $0x54] sm:$0xff]
        %v1355 = vld [vmem:[%s1339 + $0x5c] sm:$0xf]
        %vm1357 = vcmask 1043456
        %v1358 = vrot.slane %v559, 4
        %v1359 = vrot.slane %v560, 4
        %v1360 = vsel %vm1357, %v1358, %v1359
        %v1377 = vunpack.c.l.b16 %v1340
        %v1378 = vunpack.c.h.b16 %v1340
        %v1379 = vunpack.c.l.b16 %v1341
        %v1380 = vunpack.c.l.b16 %v1342
        %v1381 = vunpack.c.h.b16 %v1342
        %v1382 = vunpack.c.l.b16 %v1343
        %v1383 = vunpack.c.l.b16 %v1344
        %v1384 = vunpack.c.h.b16 %v1344
        %v1385 = vunpack.c.l.b16 %v1345
        %v1386 = vunpack.c.l.b16 %v1346
        %v1387 = vunpack.c.h.b16 %v1346
        %v1388 = vunpack.c.l.b16 %v1347
        %v1389 = vunpack.c.l.b16 %v1348
        %v1390 = vunpack.c.h.b16 %v1348
        %v1391 = vunpack.c.l.b16 %v1349
        %v1392 = vunpack.c.l.b16 %v1350
        %v1393 = vunpack.c.h.b16 %v1350
        %v1394 = vunpack.c.l.b16 %v1351
        %v1395 = vunpack.c.l.b16 %v1352
        %v1396 = vunpack.c.h.b16 %v1352
        %v1397 = vunpack.c.l.b16 %v1353
        %v1398 = vunpack.c.l.b16 %v1354
        %v1399 = vunpack.c.h.b16 %v1354
        %v1400 = vunpack.c.l.b16 %v1355
        %v1401 = vpack.c.b16 %v1380, %v1377
        %v1402 = vpack.c.b16 %v1381, %v1378
        %v1403 = vpack.c.b16 %v1382, %v1379
        %v1404 = vpack.c.b16 %v1386, %v1383
        %v1405 = vpack.c.b16 %v1387, %v1384
        %v1406 = vpack.c.b16 %v1388, %v1385
        %v1407 = vpack.c.b16 %v1392, %v1389
        %v1408 = vpack.c.b16 %v1393, %v1390
        %v1409 = vpack.c.b16 %v1394, %v1391
        %v1410 = vpack.c.b16 %v1398, %v1395
        %v1411 = vpack.c.b16 %v1399, %v1396
        %v1412 = vpack.c.b16 %v1400, %v1397
        %v1426 = vsel %vm664, %v1360, 0
        %v1429 = vsel %vm664, %v1359, 0
        %1431 = vmatprep.subr.bf16.mxu0 %v1402
        %1432 = vmatpush1.bf16.msra.mxu0 %v1401
        %1433 = vmatprep.subr.bf16.mxu0 %v1405
        %1434 = vmatpush1.bf16.msra.mxu0 %v1404
        %1435 = vmatprep.subr.bf16.mxu0 %v1408
        %1436 = vmatpush1.bf16.msra.mxu0 %v1407
        %1437 = vmatprep.subr.bf16.mxu0 %v1411
        %1438 = vmatpush1.bf16.msra.mxu0 %v1410
        %1439 = vmatprep.subr.bf16.mxu0 0
        %1440 = vmatpush1.bf16.msra.mxu0 0
        %1441 = vmatprep.subr.bf16.mxu0 0
        %1442 = vmatpush1.bf16.msra.mxu0 0
        %1443 = vmatprep.subr.bf16.mxu0 0
        %1444 = vmatpush1.bf16.msra.mxu0 0
        %1445 = vmatprep.subr.bf16.mxu0 0
        %1446 = vmatpush1.bf16.msra.mxu0 0
        %1447 = vmatprep.subr.bf16.mxu0 0
        %1448 = vmatpush1.bf16.msra.mxu0 0
        %1449 = vmatprep.subr.bf16.mxu0 0
        %1450 = vmatpush1.bf16.msra.mxu0 0
        %1451 = vmatprep.subr.bf16.mxu0 0
        %1452 = vmatpush1.bf16.msra.mxu0 0
        %1453 = vmatprep.subr.bf16.mxu0 0
        %1454 = vmatpush1.bf16.msra.mxu0 0
        %1455 = vmatprep.subr.bf16.mxu0 0
        %1456 = vmatpush1.bf16.msra.mxu0 0
        %1457 = vmatprep.subr.bf16.mxu0 0
        %1458 = vmatpush1.bf16.msra.mxu0 0
        %1459 = vmatprep.subr.bf16.mxu0 0
        %1460 = vmatpush1.bf16.msra.mxu0 0
        %1461 = vmatprep.subr.bf16.mxu0 0
        %1462 = vmatpush1.bf16.msra.mxu0 0
        %1463 = vmatprep.mubr.bf16.mxu0 0
        %1464 = vmatmul.mubr.bf16.gmra.mrb[0].mxu0 %v1426
        %v1465 = vpop.f32.mrb[0].mxu0
        %v1466 = vadd.f32 0.0, %v1465
        %v1467 = vpop.f32.mrb[0].mxu0
        %v1468 = vadd.f32 0.0, %v1467
        %v1469 = vpop.f32.mrb[0].mxu0
        %v1470 = vadd.f32 0.0, %v1469
        %v1471 = vpop.f32.mrb[0].mxu0
        %v1472 = vadd.f32 0.0, %v1471
        %1473 = vmatprep.mubr.bf16.mxu0 0
        %1474 = vmatmul.mubr.bf16.gmra.mrb[0].mxu0 %v1429
        %v1475 = vpop.f32.mrb[0].mxu0
        %v1476 = vadd.f32 0.0, %v1475
        %v1477 = vpop.f32.mrb[0].mxu0
        %v1478 = vadd.f32 0.0, %v1477
        %v1479 = vpop.f32.mrb[0].mxu0
        %v1480 = vpop.f32.mrb[0].mxu0
        %1481 = vdwg.mxu0
        %1482 = vmatprep.subr.bf16.mxu0 0
        %1483 = vmatpush1.bf16.msra.mxu0 %v1403
        %1484 = vmatprep.subr.bf16.mxu0 0
        %1485 = vmatpush1.bf16.msra.mxu0 %v1406
        %1486 = vmatprep.subr.bf16.mxu0 0
        %1487 = vmatpush1.bf16.msra.mxu0 %v1409
        %1488 = vmatprep.subr.bf16.mxu0 0
        %1489 = vmatpush1.bf16.msra.mxu0 %v1412
        %1490 = vmatprep.subr.bf16.mxu0 0
        %1491 = vmatpush1.bf16.msra.mxu0 0
        %1492 = vmatprep.subr.bf16.mxu0 0
        %1493 = vmatpush1.bf16.msra.mxu0 0
        %1494 = vmatprep.subr.bf16.mxu0 0
        %1495 = vmatpush1.bf16.msra.mxu0 0
        %1496 = vmatprep.subr.bf16.mxu0 0
        %1497 = vmatpush1.bf16.msra.mxu0 0
        %1498 = vmatprep.subr.bf16.mxu0 0
        %1499 = vmatpush1.bf16.msra.mxu0 0
        %1500 = vmatprep.subr.bf16.mxu0 0
        %1501 = vmatpush1.bf16.msra.mxu0 0
        %1502 = vmatprep.subr.bf16.mxu0 0
        %1503 = vmatpush1.bf16.msra.mxu0 0
        %1504 = vmatprep.subr.bf16.mxu0 0
        %1505 = vmatpush1.bf16.msra.mxu0 0
        %1506 = vmatprep.subr.bf16.mxu0 0
        %1507 = vmatpush1.bf16.msra.mxu0 0
        %1508 = vmatprep.subr.bf16.mxu0 0
        %1509 = vmatpush1.bf16.msra.mxu0 0
        %1510 = vmatprep.subr.bf16.mxu0 0
        %1511 = vmatpush1.bf16.msra.mxu0 0
        %1512 = vmatprep.subr.bf16.mxu0 0
        %1513 = vmatpush1.bf16.msra.mxu0 0
        %1514 = vmatprep.mubr.bf16.mxu0 0
        %1515 = vmatmul.mubr.bf16.gmra.mrb[0].mxu0 %v1426
        %v1516 = vpop.f32.mrb[0].mxu0
        %v1517 = vadd.f32 0.0, %v1516
        %v1518 = vpop.f32.mrb[0].mxu0
        %v1519 = vpop.f32.mrb[0].mxu0
        %v1520 = vadd.f32 0.0, %v1519
        %v1521 = vpop.f32.mrb[0].mxu0
        %1522 = vmatprep.mubr.bf16.mxu0 0
        %1523 = vmatmul.mubr.bf16.gmra.mrb[0].mxu0 %v1429
        %v1524 = vpop.f32.mrb[0].mxu0
        %v1525 = vadd.f32 0.0, %v1524
        %v1526 = vpop.f32.mrb[0].mxu0
        %v1527 = vpop.f32.mrb[0].mxu0
        %v1528 = vpop.f32.mrb[0].mxu0
        %1529 = vdwg.mxu0
        %v1530 = vadd.f32 %v1330, %v1466
        %v1531 = vadd.f32 %v1331, %v1468
        %v1532 = vadd.f32 %v1332, %v1517
        %v1533 = vadd.f32 %v1333, %v1470
        %v1534 = vadd.f32 %v1334, %v1472
        %v1535 = vadd.f32 %v1335, %v1520
        %v1536 = vadd.f32 %v1336, %v1476
        %v1537 = vadd.f32 %v1337, %v1478
        %v1538 = vadd.f32 %v1338, %v1525
        %v1539 = vld [vmem:[%s3] sm:$0x7]
        %v1541 = vlaneseq
        %v1542 = vshrl.u32 %v1541, 7
        %v1543 = vsub.s32 0, %v1542
        %v1544 = vrot.slane %v1539, %v1543
        %v1545 = vlaneseq
        %v1546 = vshrl.u32 %v1545, 7
        %v1547 = vsub.s32 1, %v1546
        %v1548 = vrot.slane %v1539, %v1547
        %v1549 = vlaneseq
        %v1550 = vshrl.u32 %v1549, 7
        %v1551 = vsub.s32 2, %v1550
        %v1552 = vrot.slane %v1539, %v1551
        %v1556 = vadd.f32 %v1530, %v1544
        %v1557 = vadd.f32 %v1531, %v1548
        %v1558 = vadd.f32 %v1532, %v1552
        %v1559 = vadd.f32 %v1533, %v1544
        %v1560 = vadd.f32 %v1534, %v1548
        %v1561 = vadd.f32 %v1535, %v1552
        %v1562 = vadd.f32 %v1536, %v1544
        %v1563 = vadd.f32 %v1537, %v1548
        %v1564 = vadd.f32 %v1538, %v1552
        %v1565 = vmax.f32 %v1556, 0.0
        %v1566 = vmax.f32 %v1557, 0.0
        %v1567 = vmax.f32 %v1558, 0.0
        %v1568 = vmax.f32 %v1559, 0.0
        %v1569 = vmax.f32 %v1560, 0.0
        %v1570 = vmax.f32 %v1561, 0.0
        %v1571 = vmax.f32 %v1562, 0.0
        %v1572 = vmax.f32 %v1563, 0.0
        %v1573 = vmax.f32 %v1564, 0.0
        %v1574 = vpack.c.bf16 %v1568, %v1565
        %v1575 = vpack.c.bf16 %v1569, %v1566
        %v1576 = vpack.c.bf16 %v1570, %v1567
        %v1577 = vpack.c.bf16 %v1571, %v1571
        %v1578 = vpack.c.bf16 %v1572, %v1572
        %v1579 = vpack.c.bf16 %v1573, %v1573
        %v1580 = vld [vmem:[%s4] sm:$0xf]
        %v1581 = vld [vmem:[%s4 + $0x4] sm:$0xf]
        %v1582 = vld [vmem:[%s4 + $0x8] sm:$0xf]
        %v1583 = vld [vmem:[%s4 + $0xc] sm:$0xf]
        %v1584 = vld [vmem:[%s4 + $0x10] sm:$0x3]
        %v1590 = vunpack.c.l.b16 %v1580
        %v1591 = vunpack.c.l.b16 %v1581
        %v1592 = vunpack.c.l.b16 %v1582
        %v1593 = vunpack.c.l.b16 %v1583
        %v1594 = vunpack.c.l.b16 %v1584
        %v1595 = vpack.c.b16 %v1591, %v1590
        %v1596 = vpack.c.b16 %v1593, %v1592
        %v1597 = vpack.c.b16 %v1594, %v1594
        %vm1598 = vcmask 146432
        %v1600 = vsel %vm1598, %v1595, 0
        %v1603 = vsel %vm1598, %v1596, 0
        %v1606 = vsel %vm1598, %v1597, 0
        %vm1608 = vcmask 1040384
        %v1610 = vsel %vm1608, %v1577, 0
        %v1613 = vsel %vm1608, %v1578, 0
        %v1616 = vsel %vm1608, %v1579, 0
        %1618 = vmatprep.subr.bf16.mxu0 %v1575
        %1619 = vmatpush1.bf16.msra.mxu0 %v1574
        %1620 = vmatprep.subr.bf16.mxu0 %v1613
        %1621 = vmatpush1.bf16.msra.mxu0 %v1610
        %1622 = vmatprep.subr.bf16.mxu0 0
        %1623 = vmatpush1.bf16.msra.mxu0 0
        %1624 = vmatprep.subr.bf16.mxu0 0
        %1625 = vmatpush1.bf16.msra.mxu0 0
        %1626 = vmatprep.subr.bf16.mxu0 0
        %1627 = vmatpush1.bf16.msra.mxu0 0
        %1628 = vmatprep.subr.bf16.mxu0 0
        %1629 = vmatpush1.bf16.msra.mxu0 0
        %1630 = vmatprep.subr.bf16.mxu0 0
        %1631 = vmatpush1.bf16.msra.mxu0 0
        %1632 = vmatprep.subr.bf16.mxu0 0
        %1633 = vmatpush1.bf16.msra.mxu0 0
        %1634 = vmatprep.subr.bf16.mxu0 0
        %1635 = vmatpush1.bf16.msra.mxu0 0
        %1636 = vmatprep.subr.bf16.mxu0 0
        %1637 = vmatpush1.bf16.msra.mxu0 0
        %1638 = vmatprep.subr.bf16.mxu0 0
        %1639 = vmatpush1.bf16.msra.mxu0 0
        %1640 = vmatprep.subr.bf16.mxu0 0
        %1641 = vmatpush1.bf16.msra.mxu0 0
        %1642 = vmatprep.subr.bf16.mxu0 0
        %1643 = vmatpush1.bf16.msra.mxu0 0
        %1644 = vmatprep.subr.bf16.mxu0 0
        %1645 = vmatpush1.bf16.msra.mxu0 0
        %1646 = vmatprep.subr.bf16.mxu0 0
        %1647 = vmatpush1.bf16.msra.mxu0 0
        %1648 = vmatprep.subr.bf16.mxu0 0
        %1649 = vmatpush1.bf16.msra.mxu0 0
        %1650 = vmatprep.mubr.bf16.mxu0 0
        %1651 = vmatmul.mubr.bf16.gmra.mrb[0].mxu0 %v1600
        %v1652 = vpop.f32.mrb[0].mxu0
        %v1653 = vadd.f32 0.0, %v1652
        %v1654 = vpop.f32.mrb[0].mxu0
        %v1655 = vadd.f32 0.0, %v1654
        %v1656 = vpop.f32.mrb[0].mxu0
        %v1657 = vadd.f32 0.0, %v1656
        %v1658 = vpop.f32.mrb[0].mxu0
        %v1659 = vadd.f32 0.0, %v1658
        %1660 = vmatprep.mubr.bf16.mxu0 0
        %1661 = vmatmul.mubr.bf16.gmra.mrb[0].mxu0 %v1603
        %v1662 = vpop.f32.mrb[0].mxu0
        %v1663 = vadd.f32 0.0, %v1662
        %v1664 = vpop.f32.mrb[0].mxu0
        %v1665 = vadd.f32 0.0, %v1664
        %v1666 = vpop.f32.mrb[0].mxu0
        %v1667 = vadd.f32 0.0, %v1666
        %v1668 = vpop.f32.mrb[0].mxu0
        %v1669 = vadd.f32 0.0, %v1668
        %1670 = vmatprep.mubr.bf16.mxu0 0
        %1671 = vmatmul.mubr.bf16.gmra.mrb[0].mxu0 %v1606
        %v1672 = vpop.f32.mrb[0].mxu0
        %v1673 = vadd.f32 0.0, %v1672
        %v1674 = vpop.f32.mrb[0].mxu0
        %v1675 = vadd.f32 0.0, %v1674
        %v1676 = vpop.f32.mrb[0].mxu0
        %v1677 = vpop.f32.mrb[0].mxu0
        %1678 = vdwg.mxu0
        %1679 = vmatprep.subr.bf16.mxu0 0
        %1680 = vmatpush1.bf16.msra.mxu0 %v1576
        %1681 = vmatprep.subr.bf16.mxu0 0
        %1682 = vmatpush1.bf16.msra.mxu0 %v1616
        %1683 = vmatprep.subr.bf16.mxu0 0
        %1684 = vmatpush1.bf16.msra.mxu0 0
        %1685 = vmatprep.subr.bf16.mxu0 0
        %1686 = vmatpush1.bf16.msra.mxu0 0
        %1687 = vmatprep.subr.bf16.mxu0 0
        %1688 = vmatpush1.bf16.msra.mxu0 0
        %1689 = vmatprep.subr.bf16.mxu0 0
        %1690 = vmatpush1.bf16.msra.mxu0 0
        %1691 = vmatprep.subr.bf16.mxu0 0
        %1692 = vmatpush1.bf16.msra.mxu0 0
        %1693 = vmatprep.subr.bf16.mxu0 0
        %1694 = vmatpush1.bf16.msra.mxu0 0
        %1695 = vmatprep.subr.bf16.mxu0 0
        %1696 = vmatpush1.bf16.msra.mxu0 0
        %1697 = vmatprep.subr.bf16.mxu0 0
        %1698 = vmatpush1.bf16.msra.mxu0 0
        %1699 = vmatprep.subr.bf16.mxu0 0
        %1700 = vmatpush1.bf16.msra.mxu0 0
        %1701 = vmatprep.subr.bf16.mxu0 0
        %1702 = vmatpush1.bf16.msra.mxu0 0
        %1703 = vmatprep.subr.bf16.mxu0 0
        %1704 = vmatpush1.bf16.msra.mxu0 0
        %1705 = vmatprep.subr.bf16.mxu0 0
        %1706 = vmatpush1.bf16.msra.mxu0 0
        %1707 = vmatprep.subr.bf16.mxu0 0
        %1708 = vmatpush1.bf16.msra.mxu0 0
        %1709 = vmatprep.subr.bf16.mxu0 0
        %1710 = vmatpush1.bf16.msra.mxu0 0
        %1711 = vmatprep.mubr.bf16.mxu0 0
        %1712 = vmatmul.mubr.bf16.gmra.mrb[0].mxu0 %v1600
        %v1713 = vpop.f32.mrb[0].mxu0
        %v1714 = vadd.f32 0.0, %v1713
        %v1715 = vpop.f32.mrb[0].mxu0
        %v1716 = vpop.f32.mrb[0].mxu0
        %v1717 = vadd.f32 0.0, %v1716
        %v1718 = vpop.f32.mrb[0].mxu0
        %1719 = vmatprep.mubr.bf16.mxu0 0
        %1720 = vmatmul.mubr.bf16.gmra.mrb[0].mxu0 %v1603
        %v1721 = vpop.f32.mrb[0].mxu0
        %v1722 = vadd.f32 0.0, %v1721
        %v1723 = vpop.f32.mrb[0].mxu0
        %v1724 = vpop.f32.mrb[0].mxu0
        %v1725 = vadd.f32 0.0, %v1724
        %v1726 = vpop.f32.mrb[0].mxu0
        %1727 = vmatprep.mubr.bf16.mxu0 0
        %1728 = vmatmul.mubr.bf16.gmra.mrb[0].mxu0 %v1606
        %v1729 = vpop.f32.mrb[0].mxu0
        %v1730 = vadd.f32 0.0, %v1729
        %v1731 = vpop.f32.mrb[0].mxu0
        %v1732 = vpop.f32.mrb[0].mxu0
        %v1733 = vpop.f32.mrb[0].mxu0
        %1734 = vdwg.mxu0
        %v1735 = vpack.c.bf16 %v1657, %v1653
        %v1736 = vpack.c.bf16 %v1659, %v1655
        %v1737 = vpack.c.bf16 %v1717, %v1714
        %v1738 = vpack.c.bf16 %v1667, %v1663
        %v1739 = vpack.c.bf16 %v1669, %v1665
        %v1740 = vpack.c.bf16 %v1725, %v1722
        %v1741 = vpack.c.bf16 %v1673, %v1673
        %v1742 = vpack.c.bf16 %v1675, %v1675
        %v1743 = vpack.c.bf16 %v1730, %v1730
        %v1744 = vld [vmem:[%s5] sm:$0xff]
        %v1745 = vld [vmem:[%s5 + $0x8] sm:$0xf]
        %v1746 = vld [vmem:[%s5 + $0xc] sm:$0xff]
        %v1747 = vld [vmem:[%s5 + $0x14] sm:$0xf]
        %v1748 = vld [vmem:[%s5 + $0x18] sm:$0xff]
        %v1749 = vld [vmem:[%s5 + $0x20] sm:$0xf]
        %v1750 = vld [vmem:[%s5 + $0x24] sm:$0xff]
        %v1751 = vld [vmem:[%s5 + $0x2c] sm:$0xf]
        %v1752 = vld [vmem:[%s5 + $0x30] sm:$0xff]
        %v1753 = vld [vmem:[%s5 + $0x38] sm:$0xf]
        %v1754 = vld [vmem:[%s5 + $0x3c] sm:$0xff]
        %v1755 = vld [vmem:[%s5 + $0x44] sm:$0xf]
        %v1756 = vld [vmem:[%s5 + $0x48] sm:$0xff]
        %v1757 = vld [vmem:[%s5 + $0x50] sm:$0xf]
        %v1758 = vld [vmem:[%s5 + $0x54] sm:$0xff]
        %v1759 = vld [vmem:[%s5 + $0x5c] sm:$0xf]
        %v1760 = vld [vmem:[%s5 + $0x60] sm:$0xff]
        %v1761 = vld [vmem:[%s5 + $0x68] sm:$0xf]
        %v1762 = vld [vmem:[%s5 + $0x6c] sm:$0xff]
        %v1763 = vld [vmem:[%s5 + $0x74] sm:$0xf]
        %v1764 = vld [vmem:[%s5 + $0x78] sm:$0xff]
        %v1765 = vld [vmem:[%s5 + $0x80] sm:$0xf]
        %v1766 = vld [vmem:[%s5 + $0x84] sm:$0xff]
        %v1767 = vld [vmem:[%s5 + $0x8c] sm:$0xf]
        %v1768 = vld [vmem:[%s5 + $0x90] sm:$0xff]
        %v1769 = vld [vmem:[%s5 + $0x98] sm:$0xf]
        %v1770 = vld [vmem:[%s5 + $0x9c] sm:$0xff]
        %v1771 = vld [vmem:[%s5 + $0xa4] sm:$0xf]
        %v1772 = vld [vmem:[%s5 + $0xa8] sm:$0xff]
        %v1773 = vld [vmem:[%s5 + $0xb0] sm:$0xf]
        %v1774 = vld [vmem:[%s5 + $0xb4] sm:$0xff]
        %v1775 = vld [vmem:[%s5 + $0xbc] sm:$0xf]
        %v1776 = vld [vmem:[%s5 + $0xc0] sm:$0xff]
        %v1777 = vld [vmem:[%s5 + $0xc8] sm:$0xf]
        %v1778 = vld [vmem:[%s5 + $0xcc] sm:$0xff]
        %v1779 = vld [vmem:[%s5 + $0xd4] sm:$0xf]
        %v1780 = vld [vmem:[%s5 + $0xd8] sm:$0xff]
        %v1781 = vld [vmem:[%s5 + $0xe0] sm:$0xf]
        %v1782 = vld [vmem:[%s5 + $0xe4] sm:$0xff]
        %v1783 = vld [vmem:[%s5 + $0xec] sm:$0xf]
        %v1784 = vld [vmem:[%s5 + $0xf0] sm:$0xff]
        %v1785 = vld [vmem:[%s5 + $0xf8] sm:$0xf]
        %v1786 = vld [vmem:[%s5 + $0xfc] sm:$0xff]
        %v1787 = vld [vmem:[%s5 + $0x104] sm:$0xf]
        %v1788 = vld [vmem:[%s5 + $0x108] sm:$0xff]
        %v1789 = vld [vmem:[%s5 + $0x110] sm:$0xf]
        %v1790 = vld [vmem:[%s5 + $0x114] sm:$0xff]
        %v1791 = vld [vmem:[%s5 + $0x11c] sm:$0xf]
        %v1792 = vld [vmem:[%s5 + $0x120] sm:$0xff]
        %v1793 = vld [vmem:[%s5 + $0x128] sm:$0xf]
        %v1794 = vld [vmem:[%s5 + $0x12c] sm:$0xff]
        %v1795 = vld [vmem:[%s5 + $0x134] sm:$0xf]
        %v1796 = vld [vmem:[%s5 + $0x138] sm:$0xff]
        %v1797 = vld [vmem:[%s5 + $0x140] sm:$0xf]
        %v1798 = vld [vmem:[%s5 + $0x144] sm:$0xff]
        %v1799 = vld [vmem:[%s5 + $0x14c] sm:$0xf]
        %v1800 = vld [vmem:[%s5 + $0x150] sm:$0xff]
        %v1801 = vld [vmem:[%s5 + $0x158] sm:$0xf]
        %v1802 = vld [vmem:[%s5 + $0x15c] sm:$0xff]
        %v1803 = vld [vmem:[%s5 + $0x164] sm:$0xf]
        %v1804 = vld [vmem:[%s5 + $0x168] sm:$0xff]
        %v1805 = vld [vmem:[%s5 + $0x170] sm:$0xf]
        %v1806 = vld [vmem:[%s5 + $0x174] sm:$0xff]
        %v1807 = vld [vmem:[%s5 + $0x17c] sm:$0xf]
        %v1808 = vld [vmem:[%s5 + $0x180] sm:$0xff]
        %v1809 = vld [vmem:[%s5 + $0x188] sm:$0xf]
        %v1810 = vld [vmem:[%s5 + $0x18c] sm:$0xff]
        %v1811 = vld [vmem:[%s5 + $0x194] sm:$0xf]
        %v1812 = vld [vmem:[%s5 + $0x198] sm:$0xff]
        %v1813 = vld [vmem:[%s5 + $0x1a0] sm:$0xf]
        %v1814 = vld [vmem:[%s5 + $0x1a4] sm:$0xff]
        %v1815 = vld [vmem:[%s5 + $0x1ac] sm:$0xf]
        %v1816 = vld [vmem:[%s5 + $0x1b0] sm:$0xff]
        %v1817 = vld [vmem:[%s5 + $0x1b8] sm:$0xf]
        %v1818 = vld [vmem:[%s5 + $0x1bc] sm:$0xff]
        %v1819 = vld [vmem:[%s5 + $0x1c4] sm:$0xf]
        %v1820 = vld [vmem:[%s5 + $0x1c8] sm:$0xff]
        %v1821 = vld [vmem:[%s5 + $0x1d0] sm:$0xf]
        %v1822 = vld [vmem:[%s5 + $0x1d4] sm:$0xff]
        %v1823 = vld [vmem:[%s5 + $0x1dc] sm:$0xf]
        %v1824 = vld [vmem:[%s5 + $0x1e0] sm:$0xff]
        %v1825 = vld [vmem:[%s5 + $0x1e8] sm:$0xf]
        %v1826 = vld [vmem:[%s5 + $0x1ec] sm:$0xff]
        %v1827 = vld [vmem:[%s5 + $0x1f4] sm:$0xf]
        %v1828 = vld [vmem:[%s5 + $0x1f8] sm:$0xff]
        %v1829 = vld [vmem:[%s5 + $0x200] sm:$0xf]
        %v1830 = vld [vmem:[%s5 + $0x204] sm:$0xff]
        %v1831 = vld [vmem:[%s5 + $0x20c] sm:$0xf]
        %v1832 = vld [vmem:[%s5 + $0x210] sm:$0xff]
        %v1833 = vld [vmem:[%s5 + $0x218] sm:$0xf]
        %s1834 = scalar_lea.vmem %s5, 540
        %v1835 = vld [vmem:[%s1834] sm:$0xff]
        %v1836 = vld [vmem:[%s1834 + $0x8] sm:$0xf]
        %v1837 = vld [vmem:[%s1834 + $0xc] sm:$0xff]
        %v1838 = vld [vmem:[%s1834 + $0x14] sm:$0xf]
        %v1839 = vld [vmem:[%s1834 + $0x18] sm:$0xff]
        %v1840 = vld [vmem:[%s1834 + $0x20] sm:$0xf]
        %v1841 = vld [vmem:[%s1834 + $0x24] sm:$0xff]
        %v1842 = vld [vmem:[%s1834 + $0x2c] sm:$0xf]
        %v1843 = vld [vmem:[%s1834 + $0x30] sm:$0xff]
        %v1844 = vld [vmem:[%s1834 + $0x38] sm:$0xf]
        %v1845 = vld [vmem:[%s1834 + $0x3c] sm:$0xff]
        %v1846 = vld [vmem:[%s1834 + $0x44] sm:$0xf]
        %v1847 = vld [vmem:[%s1834 + $0x48] sm:$0xff]
        %v1848 = vld [vmem:[%s1834 + $0x50] sm:$0xf]
        %v1849 = vld [vmem:[%s1834 + $0x54] sm:$0xff]
        %v1850 = vld [vmem:[%s1834 + $0x5c] sm:$0xf]
        %v1851 = vld [vmem:[%s1834 + $0x60] sm:$0xff]
        %v1852 = vld [vmem:[%s1834 + $0x68] sm:$0xf]
        %v1853 = vld [vmem:[%s1834 + $0x6c] sm:$0xff]
        %v1854 = vld [vmem:[%s1834 + $0x74] sm:$0xf]
        %v1855 = vld [vmem:[%s1834 + $0x78] sm:$0xff]
        %v1856 = vld [vmem:[%s1834 + $0x80] sm:$0xf]
        %v1857 = vld [vmem:[%s1834 + $0x84] sm:$0xff]
        %v1858 = vld [vmem:[%s1834 + $0x8c] sm:$0xf]
        %v1859 = vld [vmem:[%s1834 + $0x90] sm:$0xff]
        %v1860 = vld [vmem:[%s1834 + $0x98] sm:$0xf]
        %v1861 = vld [vmem:[%s1834 + $0x9c] sm:$0xff]
        %v1862 = vld [vmem:[%s1834 + $0xa4] sm:$0xf]
        %v1863 = vld [vmem:[%s1834 + $0xa8] sm:$0xff]
        %v1864 = vld [vmem:[%s1834 + $0xb0] sm:$0xf]
        %v1865 = vld [vmem:[%s1834 + $0xb4] sm:$0xff]
        %v1866 = vld [vmem:[%s1834 + $0xbc] sm:$0xf]
        %v1867 = vld [vmem:[%s1834 + $0xc0] sm:$0xff]
        %v1868 = vld [vmem:[%s1834 + $0xc8] sm:$0xf]
        %v1869 = vld [vmem:[%s1834 + $0xcc] sm:$0xff]
        %v1870 = vld [vmem:[%s1834 + $0xd4] sm:$0xf]
        %v1871 = vld [vmem:[%s1834 + $0xd8] sm:$0xff]
        %v1872 = vld [vmem:[%s1834 + $0xe0] sm:$0xf]
        %v1873 = vld [vmem:[%s1834 + $0xe4] sm:$0xff]
        %v1874 = vld [vmem:[%s1834 + $0xec] sm:$0xf]
        %v1875 = vld [vmem:[%s1834 + $0xf0] sm:$0xff]
        %v1876 = vld [vmem:[%s1834 + $0xf8] sm:$0xf]
        %v1877 = vld [vmem:[%s1834 + $0xfc] sm:$0xff]
        %v1878 = vld [vmem:[%s1834 + $0x104] sm:$0xf]
        %v1879 = vld [vmem:[%s1834 + $0x108] sm:$0xff]
        %v1880 = vld [vmem:[%s1834 + $0x110] sm:$0xf]
        %v1881 = vld [vmem:[%s1834 + $0x114] sm:$0xff]
        %v1882 = vld [vmem:[%s1834 + $0x11c] sm:$0xf]
        %v1883 = vld [vmem:[%s1834 + $0x120] sm:$0xff]
        %v1884 = vld [vmem:[%s1834 + $0x128] sm:$0xf]
        %v1885 = vld [vmem:[%s1834 + $0x12c] sm:$0xff]
        %v1886 = vld [vmem:[%s1834 + $0x134] sm:$0xf]
        %v1887 = vld [vmem:[%s1834 + $0x138] sm:$0xff]
        %v1888 = vld [vmem:[%s1834 + $0x140] sm:$0xf]
        %v1889 = vld [vmem:[%s1834 + $0x144] sm:$0xff]
        %v1890 = vld [vmem:[%s1834 + $0x14c] sm:$0xf]
        %v1891 = vld [vmem:[%s1834 + $0x150] sm:$0xff]
        %v1892 = vld [vmem:[%s1834 + $0x158] sm:$0xf]
        %v1893 = vld [vmem:[%s1834 + $0x15c] sm:$0xff]
        %v1894 = vld [vmem:[%s1834 + $0x164] sm:$0xf]
        %v1895 = vld [vmem:[%s1834 + $0x168] sm:$0xff]
        %v1896 = vld [vmem:[%s1834 + $0x170] sm:$0xf]
        %v1897 = vld [vmem:[%s1834 + $0x174] sm:$0xff]
        %v1898 = vld [vmem:[%s1834 + $0x17c] sm:$0xf]
        %v1899 = vld [vmem:[%s1834 + $0x180] sm:$0xff]
        %v1900 = vld [vmem:[%s1834 + $0x188] sm:$0xf]
        %v1901 = vld [vmem:[%s1834 + $0x18c] sm:$0xff]
        %v1902 = vld [vmem:[%s1834 + $0x194] sm:$0xf]
        %v1903 = vld [vmem:[%s1834 + $0x198] sm:$0xff]
        %v1904 = vld [vmem:[%s1834 + $0x1a0] sm:$0xf]
        %v1905 = vld [vmem:[%s1834 + $0x1a4] sm:$0xff]
        %v1906 = vld [vmem:[%s1834 + $0x1ac] sm:$0xf]
        %v1907 = vld [vmem:[%s1834 + $0x1b0] sm:$0xff]
        %v1908 = vld [vmem:[%s1834 + $0x1b8] sm:$0xf]
        %v1909 = vld [vmem:[%s1834 + $0x1bc] sm:$0xff]
        %v1910 = vld [vmem:[%s1834 + $0x1c4] sm:$0xf]
        %v1911 = vld [vmem:[%s1834 + $0x1c8] sm:$0xff]
        %v1912 = vld [vmem:[%s1834 + $0x1d0] sm:$0xf]
        %v1913 = vld [vmem:[%s1834 + $0x1d4] sm:$0xff]
        %v1914 = vld [vmem:[%s1834 + $0x1dc] sm:$0xf]
        %v1915 = vld [vmem:[%s1834 + $0x1e0] sm:$0xff]
        %v1916 = vld [vmem:[%s1834 + $0x1e8] sm:$0xf]
        %v1917 = vld [vmem:[%s1834 + $0x1ec] sm:$0xff]
        %v1918 = vld [vmem:[%s1834 + $0x1f4] sm:$0xf]
        %v1919 = vld [vmem:[%s1834 + $0x1f8] sm:$0xff]
        %v1920 = vld [vmem:[%s1834 + $0x200] sm:$0xf]
        %v1921 = vld [vmem:[%s1834 + $0x204] sm:$0xff]
        %v1922 = vld [vmem:[%s1834 + $0x20c] sm:$0xf]
        %v1923 = vld [vmem:[%s1834 + $0x210] sm:$0xff]
        %v1924 = vld [vmem:[%s1834 + $0x218] sm:$0xf]
        %v1926 = vshrl.u32 %v1735, 16
        %v1928 = vrot.slane %v1926, 3
        %v1929 = vshll.u32 %v1735, 16
        %v1931 = vrot.slane %v1929, 4
        %v1932 = vor.u32 %v1928, %v1931
        %v1934 = vshrl.u32 %v1736, 16
        %v1936 = vrot.slane %v1934, 3
        %v1937 = vshll.u32 %v1736, 16
        %v1939 = vrot.slane %v1937, 4
        %v1940 = vor.u32 %v1936, %v1939
        %v1942 = vshrl.u32 %v1737, 16
        %v1944 = vrot.slane %v1942, 3
        %v1945 = vshll.u32 %v1737, 16
        %v1947 = vrot.slane %v1945, 4
        %v1948 = vor.u32 %v1944, %v1947
        %v2041 = vunpack.c.l.b16 %v1835
        %v2042 = vunpack.c.h.b16 %v1835
        %v2043 = vunpack.c.l.b16 %v1836
        %v2044 = vunpack.c.l.b16 %v1837
        %v2045 = vunpack.c.h.b16 %v1837
        %v2046 = vunpack.c.l.b16 %v1838
        %v2047 = vunpack.c.l.b16 %v1839
        %v2048 = vunpack.c.h.b16 %v1839
        %v2049 = vunpack.c.l.b16 %v1840
        %v2050 = vunpack.c.l.b16 %v1841
        %v2051 = vunpack.c.h.b16 %v1841
        %v2052 = vunpack.c.l.b16 %v1842
        %v2053 = vunpack.c.l.b16 %v1843
        %v2054 = vunpack.c.h.b16 %v1843
        %v2055 = vunpack.c.l.b16 %v1844
        %v2056 = vunpack.c.l.b16 %v1845
        %v2057 = vunpack.c.h.b16 %v1845
        %v2058 = vunpack.c.l.b16 %v1846
        %v2059 = vunpack.c.l.b16 %v1847
        %v2060 = vunpack.c.h.b16 %v1847
        %v2061 = vunpack.c.l.b16 %v1848
        %v2062 = vunpack.c.l.b16 %v1849
        %v2063 = vunpack.c.h.b16 %v1849
        %v2064 = vunpack.c.l.b16 %v1850
        %v2065 = vunpack.c.l.b16 %v1851
        %v2066 = vunpack.c.h.b16 %v1851
        %v2067 = vunpack.c.l.b16 %v1852
        %v2068 = vunpack.c.l.b16 %v1853
        %v2069 = vunpack.c.h.b16 %v1853
        %v2070 = vunpack.c.l.b16 %v1854
        %v2071 = vunpack.c.l.b16 %v1855
        %v2072 = vunpack.c.h.b16 %v1855
        %v2073 = vunpack.c.l.b16 %v1856
        %v2074 = vunpack.c.l.b16 %v1857
        %v2075 = vunpack.c.h.b16 %v1857
        %v2076 = vunpack.c.l.b16 %v1858
        %v2077 = vunpack.c.l.b16 %v1859
        %v2078 = vunpack.c.h.b16 %v1859
        %v2079 = vunpack.c.l.b16 %v1860
        %v2080 = vunpack.c.l.b16 %v1861
        %v2081 = vunpack.c.h.b16 %v1861
        %v2082 = vunpack.c.l.b16 %v1862
        %v2083 = vunpack.c.l.b16 %v1863
        %v2084 = vunpack.c.h.b16 %v1863
        %v2085 = vunpack.c.l.b16 %v1864
        %v2086 = vunpack.c.l.b16 %v1865
        %v2087 = vunpack.c.h.b16 %v1865
        %v2088 = vunpack.c.l.b16 %v1866
        %v2089 = vunpack.c.l.b16 %v1867
        %v2090 = vunpack.c.h.b16 %v1867
        %v2091 = vunpack.c.l.b16 %v1868
        %v2092 = vunpack.c.l.b16 %v1869
        %v2093 = vunpack.c.h.b16 %v1869
        %v2094 = vunpack.c.l.b16 %v1870
        %v2095 = vunpack.c.l.b16 %v1871
        %v2096 = vunpack.c.h.b16 %v1871
        %v2097 = vunpack.c.l.b16 %v1872
        %v2098 = vunpack.c.l.b16 %v1873
        %v2099 = vunpack.c.h.b16 %v1873
        %v2100 = vunpack.c.l.b16 %v1874
        %v2101 = vunpack.c.l.b16 %v1875
        %v2102 = vunpack.c.h.b16 %v1875
        %v2103 = vunpack.c.l.b16 %v1876
        %v2104 = vunpack.c.l.b16 %v1877
        %v2105 = vunpack.c.h.b16 %v1877
        %v2106 = vunpack.c.l.b16 %v1878
        %v2107 = vunpack.c.l.b16 %v1879
        %v2108 = vunpack.c.h.b16 %v1879
        %v2109 = vunpack.c.l.b16 %v1880
        %v2110 = vunpack.c.l.b16 %v1881
        %v2111 = vunpack.c.h.b16 %v1881
        %v2112 = vunpack.c.l.b16 %v1882
        %v2113 = vunpack.c.l.b16 %v1883
        %v2114 = vunpack.c.h.b16 %v1883
        %v2115 = vunpack.c.l.b16 %v1884
        %v2116 = vunpack.c.l.b16 %v1885
        %v2117 = vunpack.c.h.b16 %v1885
        %v2118 = vunpack.c.l.b16 %v1886
        %v2119 = vunpack.c.l.b16 %v1887
        %v2120 = vunpack.c.h.b16 %v1887
        %v2121 = vunpack.c.l.b16 %v1888
        %v2122 = vunpack.c.l.b16 %v1889
        %v2123 = vunpack.c.h.b16 %v1889
        %v2124 = vunpack.c.l.b16 %v1890
        %v2125 = vunpack.c.l.b16 %v1891
        %v2126 = vunpack.c.h.b16 %v1891
        %v2127 = vunpack.c.l.b16 %v1892
        %v2128 = vunpack.c.l.b16 %v1893
        %v2129 = vunpack.c.h.b16 %v1893
        %v2130 = vunpack.c.l.b16 %v1894
        %v2131 = vunpack.c.l.b16 %v1895
        %v2132 = vunpack.c.h.b16 %v1895
        %v2133 = vunpack.c.l.b16 %v1896
        %v2134 = vunpack.c.l.b16 %v1897
        %v2135 = vunpack.c.h.b16 %v1897
        %v2136 = vunpack.c.l.b16 %v1898
        %v2137 = vunpack.c.l.b16 %v1899
        %v2138 = vunpack.c.h.b16 %v1899
        %v2139 = vunpack.c.l.b16 %v1900
        %v2140 = vunpack.c.l.b16 %v1901
        %v2141 = vunpack.c.h.b16 %v1901
        %v2142 = vunpack.c.l.b16 %v1902
        %v2143 = vunpack.c.l.b16 %v1903
        %v2144 = vunpack.c.h.b16 %v1903
        %v2145 = vunpack.c.l.b16 %v1904
        %v2146 = vunpack.c.l.b16 %v1905
        %v2147 = vunpack.c.h.b16 %v1905
        %v2148 = vunpack.c.l.b16 %v1906
        %v2149 = vunpack.c.l.b16 %v1907
        %v2150 = vunpack.c.h.b16 %v1907
        %v2151 = vunpack.c.l.b16 %v1908
        %v2152 = vunpack.c.l.b16 %v1909
        %v2153 = vunpack.c.h.b16 %v1909
        %v2154 = vunpack.c.l.b16 %v1910
        %v2155 = vunpack.c.l.b16 %v1911
        %v2156 = vunpack.c.h.b16 %v1911
        %v2157 = vunpack.c.l.b16 %v1912
        %v2158 = vunpack.c.l.b16 %v1913
        %v2159 = vunpack.c.h.b16 %v1913
        %v2160 = vunpack.c.l.b16 %v1914
        %v2161 = vunpack.c.l.b16 %v1915
        %v2162 = vunpack.c.h.b16 %v1915
        %v2163 = vunpack.c.l.b16 %v1916
        %v2164 = vunpack.c.l.b16 %v1917
        %v2165 = vunpack.c.h.b16 %v1917
        %v2166 = vunpack.c.l.b16 %v1918
        %v2167 = vunpack.c.l.b16 %v1919
        %v2168 = vunpack.c.h.b16 %v1919
        %v2169 = vunpack.c.l.b16 %v1920
        %v2170 = vunpack.c.l.b16 %v1921
        %v2171 = vunpack.c.h.b16 %v1921
        %v2172 = vunpack.c.l.b16 %v1922
        %v2173 = vunpack.c.l.b16 %v1923
        %v2174 = vunpack.c.h.b16 %v1923
        %v2175 = vunpack.c.l.b16 %v1924
        %v2176 = vpack.c.b16 %v2044, %v2041
        %v2177 = vpack.c.b16 %v2045, %v2042
        %v2178 = vpack.c.b16 %v2046, %v2043
        %v2179 = vpack.c.b16 %v2050, %v2047
        %v2180 = vpack.c.b16 %v2051, %v2048
        %v2181 = vpack.c.b16 %v2052, %v2049
        %v2182 = vpack.c.b16 %v2056, %v2053
        %v2183 = vpack.c.b16 %v2057, %v2054
        %v2184 = vpack.c.b16 %v2058, %v2055
        %v2185 = vpack.c.b16 %v2062, %v2059
        %v2186 = vpack.c.b16 %v2063, %v2060
        %v2187 = vpack.c.b16 %v2064, %v2061
        %v2188 = vpack.c.b16 %v2068, %v2065
        %v2189 = vpack.c.b16 %v2069, %v2066
        %v2190 = vpack.c.b16 %v2070, %v2067
        %v2191 = vpack.c.b16 %v2074, %v2071
        %v2192 = vpack.c.b16 %v2075, %v2072
        %v2193 = vpack.c.b16 %v2076, %v2073
        %v2194 = vpack.c.b16 %v2080, %v2077
        %v2195 = vpack.c.b16 %v2081, %v2078
        %v2196 = vpack.c.b16 %v2082, %v2079
        %v2197 = vpack.c.b16 %v2086, %v2083
        %v2198 = vpack.c.b16 %v2087, %v2084
        %v2199 = vpack.c.b16 %v2088, %v2085
        %v2200 = vpack.c.b16 %v2092, %v2089
        %v2201 = vpack.c.b16 %v2093, %v2090
        %v2202 = vpack.c.b16 %v2094, %v2091
        %v2203 = vpack.c.b16 %v2098, %v2095
        %v2204 = vpack.c.b16 %v2099, %v2096
        %v2205 = vpack.c.b16 %v2100, %v2097
        %v2206 = vpack.c.b16 %v2104, %v2101
        %v2207 = vpack.c.b16 %v2105, %v2102
        %v2208 = vpack.c.b16 %v2106, %v2103
        %v2209 = vpack.c.b16 %v2110, %v2107
        %v2210 = vpack.c.b16 %v2111, %v2108
        %v2211 = vpack.c.b16 %v2112, %v2109
        %v2212 = vpack.c.b16 %v2116, %v2113
        %v2213 = vpack.c.b16 %v2117, %v2114
        %v2214 = vpack.c.b16 %v2118, %v2115
        %v2215 = vpack.c.b16 %v2122, %v2119
        %v2216 = vpack.c.b16 %v2123, %v2120
        %v2217 = vpack.c.b16 %v2124, %v2121
        %v2218 = vpack.c.b16 %v2128, %v2125
        %v2219 = vpack.c.b16 %v2129, %v2126
        %v2220 = vpack.c.b16 %v2130, %v2127
        %v2221 = vpack.c.b16 %v2134, %v2131
        %v2222 = vpack.c.b16 %v2135, %v2132
        %v2223 = vpack.c.b16 %v2136, %v2133
        %v2224 = vpack.c.b16 %v2140, %v2137
        %v2225 = vpack.c.b16 %v2141, %v2138
        %v2226 = vpack.c.b16 %v2142, %v2139
        %v2227 = vpack.c.b16 %v2146, %v2143
        %v2228 = vpack.c.b16 %v2147, %v2144
        %v2229 = vpack.c.b16 %v2148, %v2145
        %v2230 = vpack.c.b16 %v2152, %v2149
        %v2231 = vpack.c.b16 %v2153, %v2150
        %v2232 = vpack.c.b16 %v2154, %v2151
        %v2233 = vpack.c.b16 %v2158, %v2155
        %v2234 = vpack.c.b16 %v2159, %v2156
        %v2235 = vpack.c.b16 %v2160, %v2157
        %v2236 = vpack.c.b16 %v2164, %v2161
        %v2237 = vpack.c.b16 %v2165, %v2162
        %v2238 = vpack.c.b16 %v2166, %v2163
        %v2239 = vpack.c.b16 %v2170, %v2167
        %v2240 = vpack.c.b16 %v2171, %v2168
        %v2241 = vpack.c.b16 %v2172, %v2169
        %v2242 = vpack.c.b16 %v2173, %v2173
        %v2243 = vpack.c.b16 %v2174, %v2174
        %v2244 = vpack.c.b16 %v2175, %v2175
        %vm2311 = vcmask 850944
        %v2313 = vsel %vm2311, %v1948, 0
        %v2316 = vsel %vm470, %v2242, 0
        %v2319 = vsel %vm470, %v2243, 0
        %v2322 = vsel %vm470, %v2244, 0
        %2324 = vmatprep.subr.bf16.mxu0 %v2177
        %2325 = vmatpush1.bf16.msra.mxu0 %v2176
        %2326 = vmatprep.subr.bf16.mxu0 %v2180
        %2327 = vmatpush1.bf16.msra.mxu0 %v2179
        %2328 = vmatprep.subr.bf16.mxu0 %v2183
        %2329 = vmatpush1.bf16.msra.mxu0 %v2182
        %2330 = vmatprep.subr.bf16.mxu0 %v2186
        %2331 = vmatpush1.bf16.msra.mxu0 %v2185
        %2332 = vmatprep.subr.bf16.mxu0 %v2189
        %2333 = vmatpush1.bf16.msra.mxu0 %v2188
        %2334 = vmatprep.subr.bf16.mxu0 %v2192
        %2335 = vmatpush1.bf16.msra.mxu0 %v2191
        %2336 = vmatprep.subr.bf16.mxu0 %v2195
        %2337 = vmatpush1.bf16.msra.mxu0 %v2194
        %2338 = vmatprep.subr.bf16.mxu0 %v2198
        %2339 = vmatpush1.bf16.msra.mxu0 %v2197
        %2340 = vmatprep.subr.bf16.mxu0 %v2201
        %2341 = vmatpush1.bf16.msra.mxu0 %v2200
        %2342 = vmatprep.subr.bf16.mxu0 %v2204
        %2343 = vmatpush1.bf16.msra.mxu0 %v2203
        %2344 = vmatprep.subr.bf16.mxu0 %v2207
        %2345 = vmatpush1.bf16.msra.mxu0 %v2206
        %2346 = vmatprep.subr.bf16.mxu0 %v2210
        %2347 = vmatpush1.bf16.msra.mxu0 %v2209
        %2348 = vmatprep.subr.bf16.mxu0 %v2213
        %2349 = vmatpush1.bf16.msra.mxu0 %v2212
        %2350 = vmatprep.subr.bf16.mxu0 %v2216
        %2351 = vmatpush1.bf16.msra.mxu0 %v2215
        %2352 = vmatprep.subr.bf16.mxu0 %v2219
        %2353 = vmatpush1.bf16.msra.mxu0 %v2218
        %2354 = vmatprep.subr.bf16.mxu0 %v2222
        %2355 = vmatpush1.bf16.msra.mxu0 %v2221
        %2356 = vmatprep.mubr.bf16.mxu0 %v1940
        %2357 = vmatmul.mubr.bf16.gmra.mrb[0].mxu0 %v1932
        %v2358 = vpop.f32.mrb[0].mxu0
        %v2359 = vadd.f32 0.0, %v2358
        %v2360 = vpop.f32.mrb[0].mxu0
        %v2361 = vadd.f32 0.0, %v2360
        %v2362 = vpop.f32.mrb[0].mxu0
        %v2363 = vpop.f32.mrb[0].mxu0
        %2364 = vdwg.mxu0
        %2365 = vmatprep.subr.bf16.mxu0 %v2225
        %2366 = vmatpush1.bf16.msra.mxu0 %v2224
        %2367 = vmatprep.subr.bf16.mxu0 %v2228
        %2368 = vmatpush1.bf16.msra.mxu0 %v2227
        %2369 = vmatprep.subr.bf16.mxu0 %v2231
        %2370 = vmatpush1.bf16.msra.mxu0 %v2230
        %2371 = vmatprep.subr.bf16.mxu0 %v2234
        %2372 = vmatpush1.bf16.msra.mxu0 %v2233
        %2373 = vmatprep.subr.bf16.mxu0 %v2237
        %2374 = vmatpush1.bf16.msra.mxu0 %v2236
        %2375 = vmatprep.subr.bf16.mxu0 %v2240
        %2376 = vmatpush1.bf16.msra.mxu0 %v2239
        %2377 = vmatprep.subr.bf16.mxu0 %v2319
        %2378 = vmatpush1.bf16.msra.mxu0 %v2316
        %2379 = vmatprep.subr.bf16.mxu0 0
        %2380 = vmatpush1.bf16.msra.mxu0 0
        %2381 = vmatprep.subr.bf16.mxu0 0
        %2382 = vmatpush1.bf16.msra.mxu0 0
        %2383 = vmatprep.subr.bf16.mxu0 0
        %2384 = vmatpush1.bf16.msra.mxu0 0
        %2385 = vmatprep.subr.bf16.mxu0 0
        %2386 = vmatpush1.bf16.msra.mxu0 0
        %2387 = vmatprep.subr.bf16.mxu0 0
        %2388 = vmatpush1.bf16.msra.mxu0 0
        %2389 = vmatprep.subr.bf16.mxu0 0
        %2390 = vmatpush1.bf16.msra.mxu0 0
        %2391 = vmatprep.subr.bf16.mxu0 0
        %2392 = vmatpush1.bf16.msra.mxu0 0
        %2393 = vmatprep.subr.bf16.mxu0 0
        %2394 = vmatpush1.bf16.msra.mxu0 0
        %2395 = vmatprep.subr.bf16.mxu0 0
        %2396 = vmatpush1.bf16.msra.mxu0 0
        %2397 = vmatprep.mubr.bf16.mxu0 0
        %2398 = vmatmul.mubr.bf16.gmra.mrb[0].mxu0 %v2313
        %v2399 = vpop.f32.mrb[0].mxu0
        %v2400 = vadd.f32 %v2359, %v2399
        %v2401 = vpop.f32.mrb[0].mxu0
        %v2402 = vadd.f32 %v2361, %v2401
        %v2403 = vpop.f32.mrb[0].mxu0
        %v2404 = vpop.f32.mrb[0].mxu0
        %2405 = vdwg.mxu0
        %2406 = vmatprep.subr.bf16.mxu0 0
        %2407 = vmatpush1.bf16.msra.mxu0 %v2178
        %2408 = vmatprep.subr.bf16.mxu0 0
        %2409 = vmatpush1.bf16.msra.mxu0 %v2181
        %2410 = vmatprep.subr.bf16.mxu0 0
        %2411 = vmatpush1.bf16.msra.mxu0 %v2184
        %2412 = vmatprep.subr.bf16.mxu0 0
        %2413 = vmatpush1.bf16.msra.mxu0 %v2187
        %2414 = vmatprep.subr.bf16.mxu0 0
        %2415 = vmatpush1.bf16.msra.mxu0 %v2190
        %2416 = vmatprep.subr.bf16.mxu0 0
        %2417 = vmatpush1.bf16.msra.mxu0 %v2193
        %2418 = vmatprep.subr.bf16.mxu0 0
        %2419 = vmatpush1.bf16.msra.mxu0 %v2196
        %2420 = vmatprep.subr.bf16.mxu0 0
        %2421 = vmatpush1.bf16.msra.mxu0 %v2199
        %2422 = vmatprep.subr.bf16.mxu0 0
        %2423 = vmatpush1.bf16.msra.mxu0 %v2202
        %2424 = vmatprep.subr.bf16.mxu0 0
        %2425 = vmatpush1.bf16.msra.mxu0 %v2205
        %2426 = vmatprep.subr.bf16.mxu0 0
        %2427 = vmatpush1.bf16.msra.mxu0 %v2208
        %2428 = vmatprep.subr.bf16.mxu0 0
        %2429 = vmatpush1.bf16.msra.mxu0 %v2211
        %2430 = vmatprep.subr.bf16.mxu0 0
        %2431 = vmatpush1.bf16.msra.mxu0 %v2214
        %2432 = vmatprep.subr.bf16.mxu0 0
        %2433 = vmatpush1.bf16.msra.mxu0 %v2217
        %2434 = vmatprep.subr.bf16.mxu0 0
        %2435 = vmatpush1.bf16.msra.mxu0 %v2220
        %2436 = vmatprep.subr.bf16.mxu0 0
        %2437 = vmatpush1.bf16.msra.mxu0 %v2223
        %2438 = vmatprep.mubr.bf16.mxu0 %v1940
        %2439 = vmatmul.mubr.bf16.gmra.mrb[0].mxu0 %v1932
        %v2440 = vpop.f32.mrb[0].mxu0
        %v2441 = vadd.f32 0.0, %v2440
        %v2442 = vpop.f32.mrb[0].mxu0
        %v2443 = vpop.f32.mrb[0].mxu0
        %v2444 = vpop.f32.mrb[0].mxu0
        %2445 = vdwg.mxu0
        %2446 = vmatprep.subr.bf16.mxu0 0
        %2447 = vmatpush1.bf16.msra.mxu0 %v2226
        %2448 = vmatprep.subr.bf16.mxu0 0
        %2449 = vmatpush1.bf16.msra.mxu0 %v2229
        %2450 = vmatprep.subr.bf16.mxu0 0
        %2451 = vmatpush1.bf16.msra.mxu0 %v2232
        %2452 = vmatprep.subr.bf16.mxu0 0
        %2453 = vmatpush1.bf16.msra.mxu0 %v2235
        %2454 = vmatprep.subr.bf16.mxu0 0
        %2455 = vmatpush1.bf16.msra.mxu0 %v2238
        %2456 = vmatprep.subr.bf16.mxu0 0
        %2457 = vmatpush1.bf16.msra.mxu0 %v2241
        %2458 = vmatprep.subr.bf16.mxu0 0
        %2459 = vmatpush1.bf16.msra.mxu0 %v2322
        %2460 = vmatprep.subr.bf16.mxu0 0
        %2461 = vmatpush1.bf16.msra.mxu0 0
        %2462 = vmatprep.subr.bf16.mxu0 0
        %2463 = vmatpush1.bf16.msra.mxu0 0
        %2464 = vmatprep.subr.bf16.mxu0 0
        %2465 = vmatpush1.bf16.msra.mxu0 0
        %2466 = vmatprep.subr.bf16.mxu0 0
        %2467 = vmatpush1.bf16.msra.mxu0 0
        %2468 = vmatprep.subr.bf16.mxu0 0
        %2469 = vmatpush1.bf16.msra.mxu0 0
        %2470 = vmatprep.subr.bf16.mxu0 0
        %2471 = vmatpush1.bf16.msra.mxu0 0
        %2472 = vmatprep.subr.bf16.mxu0 0
        %2473 = vmatpush1.bf16.msra.mxu0 0
        %2474 = vmatprep.subr.bf16.mxu0 0
        %2475 = vmatpush1.bf16.msra.mxu0 0
        %2476 = vmatprep.subr.bf16.mxu0 0
        %2477 = vmatpush1.bf16.msra.mxu0 0
        %2478 = vmatprep.mubr.bf16.mxu0 0
        %2479 = vmatmul.mubr.bf16.gmra.mrb[0].mxu0 %v2313
        %v2480 = vpop.f32.mrb[0].mxu0
        %v2481 = vadd.f32 %v2441, %v2480
        %v2482 = vpop.f32.mrb[0].mxu0
        %v2483 = vpop.f32.mrb[0].mxu0
        %v2484 = vpop.f32.mrb[0].mxu0
        %2485 = vdwg.mxu0
        %v2576 = vunpack.c.l.b16 %v1744
        %v2577 = vunpack.c.h.b16 %v1744
        %v2578 = vunpack.c.l.b16 %v1745
        %v2579 = vunpack.c.l.b16 %v1746
        %v2580 = vunpack.c.h.b16 %v1746
        %v2581 = vunpack.c.l.b16 %v1747
        %v2582 = vunpack.c.l.b16 %v1748
        %v2583 = vunpack.c.h.b16 %v1748
        %v2584 = vunpack.c.l.b16 %v1749
        %v2585 = vunpack.c.l.b16 %v1750
        %v2586 = vunpack.c.h.b16 %v1750
        %v2587 = vunpack.c.l.b16 %v1751
        %v2588 = vunpack.c.l.b16 %v1752
        %v2589 = vunpack.c.h.b16 %v1752
        %v2590 = vunpack.c.l.b16 %v1753
        %v2591 = vunpack.c.l.b16 %v1754
        %v2592 = vunpack.c.h.b16 %v1754
        %v2593 = vunpack.c.l.b16 %v1755
        %v2594 = vunpack.c.l.b16 %v1756
        %v2595 = vunpack.c.h.b16 %v1756
        %v2596 = vunpack.c.l.b16 %v1757
        %v2597 = vunpack.c.l.b16 %v1758
        %v2598 = vunpack.c.h.b16 %v1758
        %v2599 = vunpack.c.l.b16 %v1759
        %v2600 = vunpack.c.l.b16 %v1760
        %v2601 = vunpack.c.h.b16 %v1760
        %v2602 = vunpack.c.l.b16 %v1761
        %v2603 = vunpack.c.l.b16 %v1762
        %v2604 = vunpack.c.h.b16 %v1762
        %v2605 = vunpack.c.l.b16 %v1763
        %v2606 = vunpack.c.l.b16 %v1764
        %v2607 = vunpack.c.h.b16 %v1764
        %v2608 = vunpack.c.l.b16 %v1765
        %v2609 = vunpack.c.l.b16 %v1766
        %v2610 = vunpack.c.h.b16 %v1766
        %v2611 = vunpack.c.l.b16 %v1767
        %v2612 = vunpack.c.l.b16 %v1768
        %v2613 = vunpack.c.h.b16 %v1768
        %v2614 = vunpack.c.l.b16 %v1769
        %v2615 = vunpack.c.l.b16 %v1770
        %v2616 = vunpack.c.h.b16 %v1770
        %v2617 = vunpack.c.l.b16 %v1771
        %v2618 = vunpack.c.l.b16 %v1772
        %v2619 = vunpack.c.h.b16 %v1772
        %v2620 = vunpack.c.l.b16 %v1773
        %v2621 = vunpack.c.l.b16 %v1774
        %v2622 = vunpack.c.h.b16 %v1774
        %v2623 = vunpack.c.l.b16 %v1775
        %v2624 = vunpack.c.l.b16 %v1776
        %v2625 = vunpack.c.h.b16 %v1776
        %v2626 = vunpack.c.l.b16 %v1777
        %v2627 = vunpack.c.l.b16 %v1778
        %v2628 = vunpack.c.h.b16 %v1778
        %v2629 = vunpack.c.l.b16 %v1779
        %v2630 = vunpack.c.l.b16 %v1780
        %v2631 = vunpack.c.h.b16 %v1780
        %v2632 = vunpack.c.l.b16 %v1781
        %v2633 = vunpack.c.l.b16 %v1782
        %v2634 = vunpack.c.h.b16 %v1782
        %v2635 = vunpack.c.l.b16 %v1783
        %v2636 = vunpack.c.l.b16 %v1784
        %v2637 = vunpack.c.h.b16 %v1784
        %v2638 = vunpack.c.l.b16 %v1785
        %v2639 = vunpack.c.l.b16 %v1786
        %v2640 = vunpack.c.h.b16 %v1786
        %v2641 = vunpack.c.l.b16 %v1787
        %v2642 = vunpack.c.l.b16 %v1788
        %v2643 = vunpack.c.h.b16 %v1788
        %v2644 = vunpack.c.l.b16 %v1789
        %v2645 = vunpack.c.l.b16 %v1790
        %v2646 = vunpack.c.h.b16 %v1790
        %v2647 = vunpack.c.l.b16 %v1791
        %v2648 = vunpack.c.l.b16 %v1792
        %v2649 = vunpack.c.h.b16 %v1792
        %v2650 = vunpack.c.l.b16 %v1793
        %v2651 = vunpack.c.l.b16 %v1794
        %v2652 = vunpack.c.h.b16 %v1794
        %v2653 = vunpack.c.l.b16 %v1795
        %v2654 = vunpack.c.l.b16 %v1796
        %v2655 = vunpack.c.h.b16 %v1796
        %v2656 = vunpack.c.l.b16 %v1797
        %v2657 = vunpack.c.l.b16 %v1798
        %v2658 = vunpack.c.h.b16 %v1798
        %v2659 = vunpack.c.l.b16 %v1799
        %v2660 = vunpack.c.l.b16 %v1800
        %v2661 = vunpack.c.h.b16 %v1800
        %v2662 = vunpack.c.l.b16 %v1801
        %v2663 = vunpack.c.l.b16 %v1802
        %v2664 = vunpack.c.h.b16 %v1802
        %v2665 = vunpack.c.l.b16 %v1803
        %v2666 = vunpack.c.l.b16 %v1804
        %v2667 = vunpack.c.h.b16 %v1804
        %v2668 = vunpack.c.l.b16 %v1805
        %v2669 = vunpack.c.l.b16 %v1806
        %v2670 = vunpack.c.h.b16 %v1806
        %v2671 = vunpack.c.l.b16 %v1807
        %v2672 = vunpack.c.l.b16 %v1808
        %v2673 = vunpack.c.h.b16 %v1808
        %v2674 = vunpack.c.l.b16 %v1809
        %v2675 = vunpack.c.l.b16 %v1810
        %v2676 = vunpack.c.h.b16 %v1810
        %v2677 = vunpack.c.l.b16 %v1811
        %v2678 = vunpack.c.l.b16 %v1812
        %v2679 = vunpack.c.h.b16 %v1812
        %v2680 = vunpack.c.l.b16 %v1813
        %v2681 = vunpack.c.l.b16 %v1814
        %v2682 = vunpack.c.h.b16 %v1814
        %v2683 = vunpack.c.l.b16 %v1815
        %v2684 = vunpack.c.l.b16 %v1816
        %v2685 = vunpack.c.h.b16 %v1816
        %v2686 = vunpack.c.l.b16 %v1817
        %v2687 = vunpack.c.l.b16 %v1818
        %v2688 = vunpack.c.h.b16 %v1818
        %v2689 = vunpack.c.l.b16 %v1819
        %v2690 = vunpack.c.l.b16 %v1820
        %v2691 = vunpack.c.h.b16 %v1820
        %v2692 = vunpack.c.l.b16 %v1821
        %v2693 = vunpack.c.l.b16 %v1822
        %v2694 = vunpack.c.h.b16 %v1822
        %v2695 = vunpack.c.l.b16 %v1823
        %v2696 = vunpack.c.l.b16 %v1824
        %v2697 = vunpack.c.h.b16 %v1824
        %v2698 = vunpack.c.l.b16 %v1825
        %v2699 = vunpack.c.l.b16 %v1826
        %v2700 = vunpack.c.h.b16 %v1826
        %v2701 = vunpack.c.l.b16 %v1827
        %v2702 = vunpack.c.l.b16 %v1828
        %v2703 = vunpack.c.h.b16 %v1828
        %v2704 = vunpack.c.l.b16 %v1829
        %v2705 = vunpack.c.l.b16 %v1830
        %v2706 = vunpack.c.h.b16 %v1830
        %v2707 = vunpack.c.l.b16 %v1831
        %v2708 = vunpack.c.l.b16 %v1832
        %v2709 = vunpack.c.h.b16 %v1832
        %v2710 = vunpack.c.l.b16 %v1833
        %v2711 = vpack.c.b16 %v2579, %v2576
        %v2712 = vpack.c.b16 %v2580, %v2577
        %v2713 = vpack.c.b16 %v2581, %v2578
        %v2714 = vpack.c.b16 %v2585, %v2582
        %v2715 = vpack.c.b16 %v2586, %v2583
        %v2716 = vpack.c.b16 %v2587, %v2584
        %v2717 = vpack.c.b16 %v2591, %v2588
        %v2718 = vpack.c.b16 %v2592, %v2589
        %v2719 = vpack.c.b16 %v2593, %v2590
        %v2720 = vpack.c.b16 %v2597, %v2594
        %v2721 = vpack.c.b16 %v2598, %v2595
        %v2722 = vpack.c.b16 %v2599, %v2596
        %v2723 = vpack.c.b16 %v2603, %v2600
        %v2724 = vpack.c.b16 %v2604, %v2601
        %v2725 = vpack.c.b16 %v2605, %v2602
        %v2726 = vpack.c.b16 %v2609, %v2606
        %v2727 = vpack.c.b16 %v2610, %v2607
        %v2728 = vpack.c.b16 %v2611, %v2608
        %v2729 = vpack.c.b16 %v2615, %v2612
        %v2730 = vpack.c.b16 %v2616, %v2613
        %v2731 = vpack.c.b16 %v2617, %v2614
        %v2732 = vpack.c.b16 %v2621, %v2618
        %v2733 = vpack.c.b16 %v2622, %v2619
        %v2734 = vpack.c.b16 %v2623, %v2620
        %v2735 = vpack.c.b16 %v2627, %v2624
        %v2736 = vpack.c.b16 %v2628, %v2625
        %v2737 = vpack.c.b16 %v2629, %v2626
        %v2738 = vpack.c.b16 %v2633, %v2630
        %v2739 = vpack.c.b16 %v2634, %v2631
        %v2740 = vpack.c.b16 %v2635, %v2632
        %v2741 = vpack.c.b16 %v2639, %v2636
        %v2742 = vpack.c.b16 %v2640, %v2637
        %v2743 = vpack.c.b16 %v2641, %v2638
        %v2744 = vpack.c.b16 %v2645, %v2642
        %v2745 = vpack.c.b16 %v2646, %v2643
        %v2746 = vpack.c.b16 %v2647, %v2644
        %v2747 = vpack.c.b16 %v2651, %v2648
        %v2748 = vpack.c.b16 %v2652, %v2649
        %v2749 = vpack.c.b16 %v2653, %v2650
        %v2750 = vpack.c.b16 %v2657, %v2654
        %v2751 = vpack.c.b16 %v2658, %v2655
        %v2752 = vpack.c.b16 %v2659, %v2656
        %v2753 = vpack.c.b16 %v2663, %v2660
        %v2754 = vpack.c.b16 %v2664, %v2661
        %v2755 = vpack.c.b16 %v2665, %v2662
        %v2756 = vpack.c.b16 %v2669, %v2666
        %v2757 = vpack.c.b16 %v2670, %v2667
        %v2758 = vpack.c.b16 %v2671, %v2668
        %v2759 = vpack.c.b16 %v2675, %v2672
        %v2760 = vpack.c.b16 %v2676, %v2673
        %v2761 = vpack.c.b16 %v2677, %v2674
        %v2762 = vpack.c.b16 %v2681, %v2678
        %v2763 = vpack.c.b16 %v2682, %v2679
        %v2764 = vpack.c.b16 %v2683, %v2680
        %v2765 = vpack.c.b16 %v2687, %v2684
        %v2766 = vpack.c.b16 %v2688, %v2685
        %v2767 = vpack.c.b16 %v2689, %v2686
        %v2768 = vpack.c.b16 %v2693, %v2690
        %v2769 = vpack.c.b16 %v2694, %v2691
        %v2770 = vpack.c.b16 %v2695, %v2692
        %v2771 = vpack.c.b16 %v2699, %v2696
        %v2772 = vpack.c.b16 %v2700, %v2697
        %v2773 = vpack.c.b16 %v2701, %v2698
        %v2774 = vpack.c.b16 %v2705, %v2702
        %v2775 = vpack.c.b16 %v2706, %v2703
        %v2776 = vpack.c.b16 %v2707, %v2704
        %v2777 = vpack.c.b16 %v2708, %v2708
        %v2778 = vpack.c.b16 %v2709, %v2709
        %v2779 = vpack.c.b16 %v2710, %v2710
        %v2846 = vsel %vm2311, %v1737, 0
        %v2849 = vsel %vm470, %v2777, 0
        %v2852 = vsel %vm470, %v2778, 0
        %v2855 = vsel %vm470, %v2779, 0
        %2857 = vmatprep.subr.bf16.mxu0 %v2712
        %2858 = vmatpush1.bf16.msra.mxu0 %v2711
        %2859 = vmatprep.subr.bf16.mxu0 %v2715
        %2860 = vmatpush1.bf16.msra.mxu0 %v2714
        %2861 = vmatprep.subr.bf16.mxu0 %v2718
        %2862 = vmatpush1.bf16.msra.mxu0 %v2717
        %2863 = vmatprep.subr.bf16.mxu0 %v2721
        %2864 = vmatpush1.bf16.msra.mxu0 %v2720
        %2865 = vmatprep.subr.bf16.mxu0 %v2724
        %2866 = vmatpush1.bf16.msra.mxu0 %v2723
        %2867 = vmatprep.subr.bf16.mxu0 %v2727
        %2868 = vmatpush1.bf16.msra.mxu0 %v2726
        %2869 = vmatprep.subr.bf16.mxu0 %v2730
        %2870 = vmatpush1.bf16.msra.mxu0 %v2729
        %2871 = vmatprep.subr.bf16.mxu0 %v2733
        %2872 = vmatpush1.bf16.msra.mxu0 %v2732
        %2873 = vmatprep.subr.bf16.mxu0 %v2736
        %2874 = vmatpush1.bf16.msra.mxu0 %v2735
        %2875 = vmatprep.subr.bf16.mxu0 %v2739
        %2876 = vmatpush1.bf16.msra.mxu0 %v2738
        %2877 = vmatprep.subr.bf16.mxu0 %v2742
        %2878 = vmatpush1.bf16.msra.mxu0 %v2741
        %2879 = vmatprep.subr.bf16.mxu0 %v2745
        %2880 = vmatpush1.bf16.msra.mxu0 %v2744
        %2881 = vmatprep.subr.bf16.mxu0 %v2748
        %2882 = vmatpush1.bf16.msra.mxu0 %v2747
        %2883 = vmatprep.subr.bf16.mxu0 %v2751
        %2884 = vmatpush1.bf16.msra.mxu0 %v2750
        %2885 = vmatprep.subr.bf16.mxu0 %v2754
        %2886 = vmatpush1.bf16.msra.mxu0 %v2753
        %2887 = vmatprep.subr.bf16.mxu0 %v2757
        %2888 = vmatpush1.bf16.msra.mxu0 %v2756
        %2889 = vmatprep.mubr.bf16.mxu0 %v1736
        %2890 = vmatmul.mubr.bf16.gmra.mrb[0].mxu0 %v1735
        %v2891 = vpop.f32.mrb[0].mxu0
        %v2892 = vadd.f32 %v2400, %v2891
        %v2893 = vpop.f32.mrb[0].mxu0
        %v2894 = vadd.f32 %v2402, %v2893
        %v2895 = vpop.f32.mrb[0].mxu0
        %v2896 = vpop.f32.mrb[0].mxu0
        %2897 = vdwg.mxu0
        %2898 = vmatprep.subr.bf16.mxu0 %v2760
        %2899 = vmatpush1.bf16.msra.mxu0 %v2759
        %2900 = vmatprep.subr.bf16.mxu0 %v2763
        %2901 = vmatpush1.bf16.msra.mxu0 %v2762
        %2902 = vmatprep.subr.bf16.mxu0 %v2766
        %2903 = vmatpush1.bf16.msra.mxu0 %v2765
        %2904 = vmatprep.subr.bf16.mxu0 %v2769
        %2905 = vmatpush1.bf16.msra.mxu0 %v2768
        %2906 = vmatprep.subr.bf16.mxu0 %v2772
        %2907 = vmatpush1.bf16.msra.mxu0 %v2771
        %2908 = vmatprep.subr.bf16.mxu0 %v2775
        %2909 = vmatpush1.bf16.msra.mxu0 %v2774
        %2910 = vmatprep.subr.bf16.mxu0 %v2852
        %2911 = vmatpush1.bf16.msra.mxu0 %v2849
        %2912 = vmatprep.subr.bf16.mxu0 0
        %2913 = vmatpush1.bf16.msra.mxu0 0
        %2914 = vmatprep.subr.bf16.mxu0 0
        %2915 = vmatpush1.bf16.msra.mxu0 0
        %2916 = vmatprep.subr.bf16.mxu0 0
        %2917 = vmatpush1.bf16.msra.mxu0 0
        %2918 = vmatprep.subr.bf16.mxu0 0
        %2919 = vmatpush1.bf16.msra.mxu0 0
        %2920 = vmatprep.subr.bf16.mxu0 0
        %2921 = vmatpush1.bf16.msra.mxu0 0
        %2922 = vmatprep.subr.bf16.mxu0 0
        %2923 = vmatpush1.bf16.msra.mxu0 0
        %2924 = vmatprep.subr.bf16.mxu0 0
        %2925 = vmatpush1.bf16.msra.mxu0 0
        %2926 = vmatprep.subr.bf16.mxu0 0
        %2927 = vmatpush1.bf16.msra.mxu0 0
        %2928 = vmatprep.subr.bf16.mxu0 0
        %2929 = vmatpush1.bf16.msra.mxu0 0
        %2930 = vmatprep.mubr.bf16.mxu0 0
        %2931 = vmatmul.mubr.bf16.gmra.mrb[0].mxu0 %v2846
        %v2932 = vpop.f32.mrb[0].mxu0
        %v2933 = vadd.f32 %v2892, %v2932
        %v2934 = vpop.f32.mrb[0].mxu0
        %v2935 = vadd.f32 %v2894, %v2934
        %v2936 = vpop.f32.mrb[0].mxu0
        %v2937 = vpop.f32.mrb[0].mxu0
        %2938 = vdwg.mxu0
        %2939 = vmatprep.subr.bf16.mxu0 0
        %2940 = vmatpush1.bf16.msra.mxu0 %v2713
        %2941 = vmatprep.subr.bf16.mxu0 0
        %2942 = vmatpush1.bf16.msra.mxu0 %v2716
        %2943 = vmatprep.subr.bf16.mxu0 0
        %2944 = vmatpush1.bf16.msra.mxu0 %v2719
        %2945 = vmatprep.subr.bf16.mxu0 0
        %2946 = vmatpush1.bf16.msra.mxu0 %v2722
        %2947 = vmatprep.subr.bf16.mxu0 0
        %2948 = vmatpush1.bf16.msra.mxu0 %v2725
        %2949 = vmatprep.subr.bf16.mxu0 0
        %2950 = vmatpush1.bf16.msra.mxu0 %v2728
        %2951 = vmatprep.subr.bf16.mxu0 0
        %2952 = vmatpush1.bf16.msra.mxu0 %v2731
        %2953 = vmatprep.subr.bf16.mxu0 0
        %2954 = vmatpush1.bf16.msra.mxu0 %v2734
        %2955 = vmatprep.subr.bf16.mxu0 0
        %2956 = vmatpush1.bf16.msra.mxu0 %v2737
        %2957 = vmatprep.subr.bf16.mxu0 0
        %2958 = vmatpush1.bf16.msra.mxu0 %v2740
        %2959 = vmatprep.subr.bf16.mxu0 0
        %2960 = vmatpush1.bf16.msra.mxu0 %v2743
        %2961 = vmatprep.subr.bf16.mxu0 0
        %2962 = vmatpush1.bf16.msra.mxu0 %v2746
        %2963 = vmatprep.subr.bf16.mxu0 0
        %2964 = vmatpush1.bf16.msra.mxu0 %v2749
        %2965 = vmatprep.subr.bf16.mxu0 0
        %2966 = vmatpush1.bf16.msra.mxu0 %v2752
        %2967 = vmatprep.subr.bf16.mxu0 0
        %2968 = vmatpush1.bf16.msra.mxu0 %v2755
        %2969 = vmatprep.subr.bf16.mxu0 0
        %2970 = vmatpush1.bf16.msra.mxu0 %v2758
        %2971 = vmatprep.mubr.bf16.mxu0 %v1736
        %2972 = vmatmul.mubr.bf16.gmra.mrb[0].mxu0 %v1735
        %v2973 = vpop.f32.mrb[0].mxu0
        %v2974 = vadd.f32 %v2481, %v2973
        %v2975 = vpop.f32.mrb[0].mxu0
        %v2976 = vpop.f32.mrb[0].mxu0
        %v2977 = vpop.f32.mrb[0].mxu0
        %2978 = vdwg.mxu0
        %2979 = vmatprep.subr.bf16.mxu0 0
        %2980 = vmatpush1.bf16.msra.mxu0 %v2761
        %2981 = vmatprep.subr.bf16.mxu0 0
        %2982 = vmatpush1.bf16.msra.mxu0 %v2764
        %2983 = vmatprep.subr.bf16.mxu0 0
        %2984 = vmatpush1.bf16.msra.mxu0 %v2767
        %2985 = vmatprep.subr.bf16.mxu0 0
        %2986 = vmatpush1.bf16.msra.mxu0 %v2770
        %2987 = vmatprep.subr.bf16.mxu0 0
        %2988 = vmatpush1.bf16.msra.mxu0 %v2773
        %2989 = vmatprep.subr.bf16.mxu0 0
        %2990 = vmatpush1.bf16.msra.mxu0 %v2776
        %2991 = vmatprep.subr.bf16.mxu0 0
        %2992 = vmatpush1.bf16.msra.mxu0 %v2855
        %2993 = vmatprep.subr.bf16.mxu0 0
        %2994 = vmatpush1.bf16.msra.mxu0 0
        %2995 = vmatprep.subr.bf16.mxu0 0
        %2996 = vmatpush1.bf16.msra.mxu0 0
        %2997 = vmatprep.subr.bf16.mxu0 0
        %2998 = vmatpush1.bf16.msra.mxu0 0
        %2999 = vmatprep.subr.bf16.mxu0 0
        %3000 = vmatpush1.bf16.msra.mxu0 0
        %3001 = vmatprep.subr.bf16.mxu0 0
        %3002 = vmatpush1.bf16.msra.mxu0 0
        %3003 = vmatprep.subr.bf16.mxu0 0
        %3004 = vmatpush1.bf16.msra.mxu0 0
        %3005 = vmatprep.subr.bf16.mxu0 0
        %3006 = vmatpush1.bf16.msra.mxu0 0
        %3007 = vmatprep.subr.bf16.mxu0 0
        %3008 = vmatpush1.bf16.msra.mxu0 0
        %3009 = vmatprep.subr.bf16.mxu0 0
        %3010 = vmatpush1.bf16.msra.mxu0 0
        %3011 = vmatprep.mubr.bf16.mxu0 0
        %3012 = vmatmul.mubr.bf16.gmra.mrb[0].mxu0 %v2846
        %v3013 = vpop.f32.mrb[0].mxu0
        %v3014 = vadd.f32 %v2974, %v3013
        %v3015 = vpop.f32.mrb[0].mxu0
        %v3016 = vpop.f32.mrb[0].mxu0
        %v3017 = vpop.f32.mrb[0].mxu0
        %3018 = vdwg.mxu0
        %s3019 = scalar_lea.vmem %s5, 1080
        %v3020 = vld [vmem:[%s3019] sm:$0xff]
        %v3021 = vld [vmem:[%s3019 + $0x8] sm:$0xf]
        %v3022 = vld [vmem:[%s3019 + $0xc] sm:$0xff]
        %v3023 = vld [vmem:[%s3019 + $0x14] sm:$0xf]
        %v3024 = vld [vmem:[%s3019 + $0x18] sm:$0xff]
        %v3025 = vld [vmem:[%s3019 + $0x20] sm:$0xf]
        %v3026 = vld [vmem:[%s3019 + $0x24] sm:$0xff]
        %v3027 = vld [vmem:[%s3019 + $0x2c] sm:$0xf]
        %v3028 = vld [vmem:[%s3019 + $0x30] sm:$0xff]
        %v3029 = vld [vmem:[%s3019 + $0x38] sm:$0xf]
        %v3030 = vld [vmem:[%s3019 + $0x3c] sm:$0xff]
        %v3031 = vld [vmem:[%s3019 + $0x44] sm:$0xf]
        %v3032 = vld [vmem:[%s3019 + $0x48] sm:$0xff]
        %v3033 = vld [vmem:[%s3019 + $0x50] sm:$0xf]
        %v3034 = vld [vmem:[%s3019 + $0x54] sm:$0xff]
        %v3035 = vld [vmem:[%s3019 + $0x5c] sm:$0xf]
        %v3036 = vld [vmem:[%s3019 + $0x60] sm:$0xff]
        %v3037 = vld [vmem:[%s3019 + $0x68] sm:$0xf]
        %v3038 = vld [vmem:[%s3019 + $0x6c] sm:$0xff]
        %v3039 = vld [vmem:[%s3019 + $0x74] sm:$0xf]
        %v3040 = vld [vmem:[%s3019 + $0x78] sm:$0xff]
        %v3041 = vld [vmem:[%s3019 + $0x80] sm:$0xf]
        %v3042 = vld [vmem:[%s3019 + $0x84] sm:$0xff]
        %v3043 = vld [vmem:[%s3019 + $0x8c] sm:$0xf]
        %v3044 = vld [vmem:[%s3019 + $0x90] sm:$0xff]
        %v3045 = vld [vmem:[%s3019 + $0x98] sm:$0xf]
        %v3046 = vld [vmem:[%s3019 + $0x9c] sm:$0xff]
        %v3047 = vld [vmem:[%s3019 + $0xa4] sm:$0xf]
        %v3048 = vld [vmem:[%s3019 + $0xa8] sm:$0xff]
        %v3049 = vld [vmem:[%s3019 + $0xb0] sm:$0xf]
        %v3050 = vld [vmem:[%s3019 + $0xb4] sm:$0xff]
        %v3051 = vld [vmem:[%s3019 + $0xbc] sm:$0xf]
        %v3052 = vld [vmem:[%s3019 + $0xc0] sm:$0xff]
        %v3053 = vld [vmem:[%s3019 + $0xc8] sm:$0xf]
        %v3054 = vld [vmem:[%s3019 + $0xcc] sm:$0xff]
        %v3055 = vld [vmem:[%s3019 + $0xd4] sm:$0xf]
        %v3056 = vld [vmem:[%s3019 + $0xd8] sm:$0xff]
        %v3057 = vld [vmem:[%s3019 + $0xe0] sm:$0xf]
        %v3058 = vld [vmem:[%s3019 + $0xe4] sm:$0xff]
        %v3059 = vld [vmem:[%s3019 + $0xec] sm:$0xf]
        %v3060 = vld [vmem:[%s3019 + $0xf0] sm:$0xff]
        %v3061 = vld [vmem:[%s3019 + $0xf8] sm:$0xf]
        %v3062 = vld [vmem:[%s3019 + $0xfc] sm:$0xff]
        %v3063 = vld [vmem:[%s3019 + $0x104] sm:$0xf]
        %v3064 = vld [vmem:[%s3019 + $0x108] sm:$0xff]
        %v3065 = vld [vmem:[%s3019 + $0x110] sm:$0xf]
        %v3066 = vld [vmem:[%s3019 + $0x114] sm:$0xff]
        %v3067 = vld [vmem:[%s3019 + $0x11c] sm:$0xf]
        %v3068 = vld [vmem:[%s3019 + $0x120] sm:$0xff]
        %v3069 = vld [vmem:[%s3019 + $0x128] sm:$0xf]
        %v3070 = vld [vmem:[%s3019 + $0x12c] sm:$0xff]
        %v3071 = vld [vmem:[%s3019 + $0x134] sm:$0xf]
        %v3072 = vld [vmem:[%s3019 + $0x138] sm:$0xff]
        %v3073 = vld [vmem:[%s3019 + $0x140] sm:$0xf]
        %v3074 = vld [vmem:[%s3019 + $0x144] sm:$0xff]
        %v3075 = vld [vmem:[%s3019 + $0x14c] sm:$0xf]
        %v3076 = vld [vmem:[%s3019 + $0x150] sm:$0xff]
        %v3077 = vld [vmem:[%s3019 + $0x158] sm:$0xf]
        %v3078 = vld [vmem:[%s3019 + $0x15c] sm:$0xff]
        %v3079 = vld [vmem:[%s3019 + $0x164] sm:$0xf]
        %v3080 = vld [vmem:[%s3019 + $0x168] sm:$0xff]
        %v3081 = vld [vmem:[%s3019 + $0x170] sm:$0xf]
        %v3082 = vld [vmem:[%s3019 + $0x174] sm:$0xff]
        %v3083 = vld [vmem:[%s3019 + $0x17c] sm:$0xf]
        %v3084 = vld [vmem:[%s3019 + $0x180] sm:$0xff]
        %v3085 = vld [vmem:[%s3019 + $0x188] sm:$0xf]
        %v3086 = vld [vmem:[%s3019 + $0x18c] sm:$0xff]
        %v3087 = vld [vmem:[%s3019 + $0x194] sm:$0xf]
        %v3088 = vld [vmem:[%s3019 + $0x198] sm:$0xff]
        %v3089 = vld [vmem:[%s3019 + $0x1a0] sm:$0xf]
        %v3090 = vld [vmem:[%s3019 + $0x1a4] sm:$0xff]
        %v3091 = vld [vmem:[%s3019 + $0x1ac] sm:$0xf]
        %v3092 = vld [vmem:[%s3019 + $0x1b0] sm:$0xff]
        %v3093 = vld [vmem:[%s3019 + $0x1b8] sm:$0xf]
        %v3094 = vld [vmem:[%s3019 + $0x1bc] sm:$0xff]
        %v3095 = vld [vmem:[%s3019 + $0x1c4] sm:$0xf]
        %v3096 = vld [vmem:[%s3019 + $0x1c8] sm:$0xff]
        %v3097 = vld [vmem:[%s3019 + $0x1d0] sm:$0xf]
        %v3098 = vld [vmem:[%s3019 + $0x1d4] sm:$0xff]
        %v3099 = vld [vmem:[%s3019 + $0x1dc] sm:$0xf]
        %v3100 = vld [vmem:[%s3019 + $0x1e0] sm:$0xff]
        %v3101 = vld [vmem:[%s3019 + $0x1e8] sm:$0xf]
        %v3102 = vld [vmem:[%s3019 + $0x1ec] sm:$0xff]
        %v3103 = vld [vmem:[%s3019 + $0x1f4] sm:$0xf]
        %v3104 = vld [vmem:[%s3019 + $0x1f8] sm:$0xff]
        %v3105 = vld [vmem:[%s3019 + $0x200] sm:$0xf]
        %v3106 = vld [vmem:[%s3019 + $0x204] sm:$0xff]
        %v3107 = vld [vmem:[%s3019 + $0x20c] sm:$0xf]
        %v3108 = vld [vmem:[%s3019 + $0x210] sm:$0xff]
        %v3109 = vld [vmem:[%s3019 + $0x218] sm:$0xf]
        %vm3116 = vcmask 1040384
        %v3117 = vrot.slane %v1735, 7
        %v3118 = vrot.slane %v1738, 7
        %v3119 = vsel %vm3116, %v3117, %v3118
        %v3120 = vrot.slane %v1736, 7
        %v3121 = vrot.slane %v1739, 7
        %v3122 = vsel %vm3116, %v3120, %v3121
        %v3123 = vrot.slane %v1737, 7
        %v3124 = vrot.slane %v1740, 7
        %v3125 = vsel %vm3116, %v3123, %v3124
        %v3218 = vunpack.c.l.b16 %v3020
        %v3219 = vunpack.c.h.b16 %v3020
        %v3220 = vunpack.c.l.b16 %v3021
        %v3221 = vunpack.c.l.b16 %v3022
        %v3222 = vunpack.c.h.b16 %v3022
        %v3223 = vunpack.c.l.b16 %v3023
        %v3224 = vunpack.c.l.b16 %v3024
        %v3225 = vunpack.c.h.b16 %v3024
        %v3226 = vunpack.c.l.b16 %v3025
        %v3227 = vunpack.c.l.b16 %v3026
        %v3228 = vunpack.c.h.b16 %v3026
        %v3229 = vunpack.c.l.b16 %v3027
        %v3230 = vunpack.c.l.b16 %v3028
        %v3231 = vunpack.c.h.b16 %v3028
        %v3232 = vunpack.c.l.b16 %v3029
        %v3233 = vunpack.c.l.b16 %v3030
        %v3234 = vunpack.c.h.b16 %v3030
        %v3235 = vunpack.c.l.b16 %v3031
        %v3236 = vunpack.c.l.b16 %v3032
        %v3237 = vunpack.c.h.b16 %v3032
        %v3238 = vunpack.c.l.b16 %v3033
        %v3239 = vunpack.c.l.b16 %v3034
        %v3240 = vunpack.c.h.b16 %v3034
        %v3241 = vunpack.c.l.b16 %v3035
        %v3242 = vunpack.c.l.b16 %v3036
        %v3243 = vunpack.c.h.b16 %v3036
        %v3244 = vunpack.c.l.b16 %v3037
        %v3245 = vunpack.c.l.b16 %v3038
        %v3246 = vunpack.c.h.b16 %v3038
        %v3247 = vunpack.c.l.b16 %v3039
        %v3248 = vunpack.c.l.b16 %v3040
        %v3249 = vunpack.c.h.b16 %v3040
        %v3250 = vunpack.c.l.b16 %v3041
        %v3251 = vunpack.c.l.b16 %v3042
        %v3252 = vunpack.c.h.b16 %v3042
        %v3253 = vunpack.c.l.b16 %v3043
        %v3254 = vunpack.c.l.b16 %v3044
        %v3255 = vunpack.c.h.b16 %v3044
        %v3256 = vunpack.c.l.b16 %v3045
        %v3257 = vunpack.c.l.b16 %v3046
        %v3258 = vunpack.c.h.b16 %v3046
        %v3259 = vunpack.c.l.b16 %v3047
        %v3260 = vunpack.c.l.b16 %v3048
        %v3261 = vunpack.c.h.b16 %v3048
        %v3262 = vunpack.c.l.b16 %v3049
        %v3263 = vunpack.c.l.b16 %v3050
        %v3264 = vunpack.c.h.b16 %v3050
        %v3265 = vunpack.c.l.b16 %v3051
        %v3266 = vunpack.c.l.b16 %v3052
        %v3267 = vunpack.c.h.b16 %v3052
        %v3268 = vunpack.c.l.b16 %v3053
        %v3269 = vunpack.c.l.b16 %v3054
        %v3270 = vunpack.c.h.b16 %v3054
        %v3271 = vunpack.c.l.b16 %v3055
        %v3272 = vunpack.c.l.b16 %v3056
        %v3273 = vunpack.c.h.b16 %v3056
        %v3274 = vunpack.c.l.b16 %v3057
        %v3275 = vunpack.c.l.b16 %v3058
        %v3276 = vunpack.c.h.b16 %v3058
        %v3277 = vunpack.c.l.b16 %v3059
        %v3278 = vunpack.c.l.b16 %v3060
        %v3279 = vunpack.c.h.b16 %v3060
        %v3280 = vunpack.c.l.b16 %v3061
        %v3281 = vunpack.c.l.b16 %v3062
        %v3282 = vunpack.c.h.b16 %v3062
        %v3283 = vunpack.c.l.b16 %v3063
        %v3284 = vunpack.c.l.b16 %v3064
        %v3285 = vunpack.c.h.b16 %v3064
        %v3286 = vunpack.c.l.b16 %v3065
        %v3287 = vunpack.c.l.b16 %v3066
        %v3288 = vunpack.c.h.b16 %v3066
        %v3289 = vunpack.c.l.b16 %v3067
        %v3290 = vunpack.c.l.b16 %v3068
        %v3291 = vunpack.c.h.b16 %v3068
        %v3292 = vunpack.c.l.b16 %v3069
        %v3293 = vunpack.c.l.b16 %v3070
        %v3294 = vunpack.c.h.b16 %v3070
        %v3295 = vunpack.c.l.b16 %v3071
        %v3296 = vunpack.c.l.b16 %v3072
        %v3297 = vunpack.c.h.b16 %v3072
        %v3298 = vunpack.c.l.b16 %v3073
        %v3299 = vunpack.c.l.b16 %v3074
        %v3300 = vunpack.c.h.b16 %v3074
        %v3301 = vunpack.c.l.b16 %v3075
        %v3302 = vunpack.c.l.b16 %v3076
        %v3303 = vunpack.c.h.b16 %v3076
        %v3304 = vunpack.c.l.b16 %v3077
        %v3305 = vunpack.c.l.b16 %v3078
        %v3306 = vunpack.c.h.b16 %v3078
        %v3307 = vunpack.c.l.b16 %v3079
        %v3308 = vunpack.c.l.b16 %v3080
        %v3309 = vunpack.c.h.b16 %v3080
        %v3310 = vunpack.c.l.b16 %v3081
        %v3311 = vunpack.c.l.b16 %v3082
        %v3312 = vunpack.c.h.b16 %v3082
        %v3313 = vunpack.c.l.b16 %v3083
        %v3314 = vunpack.c.l.b16 %v3084
        %v3315 = vunpack.c.h.b16 %v3084
        %v3316 = vunpack.c.l.b16 %v3085
        %v3317 = vunpack.c.l.b16 %v3086
        %v3318 = vunpack.c.h.b16 %v3086
        %v3319 = vunpack.c.l.b16 %v3087
        %v3320 = vunpack.c.l.b16 %v3088
        %v3321 = vunpack.c.h.b16 %v3088
        %v3322 = vunpack.c.l.b16 %v3089
        %v3323 = vunpack.c.l.b16 %v3090
        %v3324 = vunpack.c.h.b16 %v3090
        %v3325 = vunpack.c.l.b16 %v3091
        %v3326 = vunpack.c.l.b16 %v3092
        %v3327 = vunpack.c.h.b16 %v3092
        %v3328 = vunpack.c.l.b16 %v3093
        %v3329 = vunpack.c.l.b16 %v3094
        %v3330 = vunpack.c.h.b16 %v3094
        %v3331 = vunpack.c.l.b16 %v3095
        %v3332 = vunpack.c.l.b16 %v3096
        %v3333 = vunpack.c.h.b16 %v3096
        %v3334 = vunpack.c.l.b16 %v3097
        %v3335 = vunpack.c.l.b16 %v3098
        %v3336 = vunpack.c.h.b16 %v3098
        %v3337 = vunpack.c.l.b16 %v3099
        %v3338 = vunpack.c.l.b16 %v3100
        %v3339 = vunpack.c.h.b16 %v3100
        %v3340 = vunpack.c.l.b16 %v3101
        %v3341 = vunpack.c.l.b16 %v3102
        %v3342 = vunpack.c.h.b16 %v3102
        %v3343 = vunpack.c.l.b16 %v3103
        %v3344 = vunpack.c.l.b16 %v3104
        %v3345 = vunpack.c.h.b16 %v3104
        %v3346 = vunpack.c.l.b16 %v3105
        %v3347 = vunpack.c.l.b16 %v3106
        %v3348 = vunpack.c.h.b16 %v3106
        %v3349 = vunpack.c.l.b16 %v3107
        %v3350 = vunpack.c.l.b16 %v3108
        %v3351 = vunpack.c.h.b16 %v3108
        %v3352 = vunpack.c.l.b16 %v3109
        %v3353 = vpack.c.b16 %v3221, %v3218
        %v3354 = vpack.c.b16 %v3222, %v3219
        %v3355 = vpack.c.b16 %v3223, %v3220
        %v3356 = vpack.c.b16 %v3227, %v3224
        %v3357 = vpack.c.b16 %v3228, %v3225
        %v3358 = vpack.c.b16 %v3229, %v3226
        %v3359 = vpack.c.b16 %v3233, %v3230
        %v3360 = vpack.c.b16 %v3234, %v3231
        %v3361 = vpack.c.b16 %v3235, %v3232
        %v3362 = vpack.c.b16 %v3239, %v3236
        %v3363 = vpack.c.b16 %v3240, %v3237
        %v3364 = vpack.c.b16 %v3241, %v3238
        %v3365 = vpack.c.b16 %v3245, %v3242
        %v3366 = vpack.c.b16 %v3246, %v3243
        %v3367 = vpack.c.b16 %v3247, %v3244
        %v3368 = vpack.c.b16 %v3251, %v3248
        %v3369 = vpack.c.b16 %v3252, %v3249
        %v3370 = vpack.c.b16 %v3253, %v3250
        %v3371 = vpack.c.b16 %v3257, %v3254
        %v3372 = vpack.c.b16 %v3258, %v3255
        %v3373 = vpack.c.b16 %v3259, %v3256
        %v3374 = vpack.c.b16 %v3263, %v3260
        %v3375 = vpack.c.b16 %v3264, %v3261
        %v3376 = vpack.c.b16 %v3265, %v3262
        %v3377 = vpack.c.b16 %v3269, %v3266
        %v3378 = vpack.c.b16 %v3270, %v3267
        %v3379 = vpack.c.b16 %v3271, %v3268
        %v3380 = vpack.c.b16 %v3275, %v3272
        %v3381 = vpack.c.b16 %v3276, %v3273
        %v3382 = vpack.c.b16 %v3277, %v3274
        %v3383 = vpack.c.b16 %v3281, %v3278
        %v3384 = vpack.c.b16 %v3282, %v3279
        %v3385 = vpack.c.b16 %v3283, %v3280
        %v3386 = vpack.c.b16 %v3287, %v3284
        %v3387 = vpack.c.b16 %v3288, %v3285
        %v3388 = vpack.c.b16 %v3289, %v3286
        %v3389 = vpack.c.b16 %v3293, %v3290
        %v3390 = vpack.c.b16 %v3294, %v3291
        %v3391 = vpack.c.b16 %v3295, %v3292
        %v3392 = vpack.c.b16 %v3299, %v3296
        %v3393 = vpack.c.b16 %v3300, %v3297
        %v3394 = vpack.c.b16 %v3301, %v3298
        %v3395 = vpack.c.b16 %v3305, %v3302
        %v3396 = vpack.c.b16 %v3306, %v3303
        %v3397 = vpack.c.b16 %v3307, %v3304
        %v3398 = vpack.c.b16 %v3311, %v3308
        %v3399 = vpack.c.b16 %v3312, %v3309
        %v3400 = vpack.c.b16 %v3313, %v3310
        %v3401 = vpack.c.b16 %v3317, %v3314
        %v3402 = vpack.c.b16 %v3318, %v3315
        %v3403 = vpack.c.b16 %v3319, %v3316
        %v3404 = vpack.c.b16 %v3323, %v3320
        %v3405 = vpack.c.b16 %v3324, %v3321
        %v3406 = vpack.c.b16 %v3325, %v3322
        %v3407 = vpack.c.b16 %v3329, %v3326
        %v3408 = vpack.c.b16 %v3330, %v3327
        %v3409 = vpack.c.b16 %v3331, %v3328
        %v3410 = vpack.c.b16 %v3335, %v3332
        %v3411 = vpack.c.b16 %v3336, %v3333
        %v3412 = vpack.c.b16 %v3337, %v3334
        %v3413 = vpack.c.b16 %v3341, %v3338
        %v3414 = vpack.c.b16 %v3342, %v3339
        %v3415 = vpack.c.b16 %v3343, %v3340
        %v3416 = vpack.c.b16 %v3347, %v3344
        %v3417 = vpack.c.b16 %v3348, %v3345
        %v3418 = vpack.c.b16 %v3349, %v3346
        %v3419 = vpack.c.b16 %v3350, %v3350
        %v3420 = vpack.c.b16 %v3351, %v3351
        %v3421 = vpack.c.b16 %v3352, %v3352
        %v3489 = vsel %vm2311, %v3125, 0
        %v3492 = vsel %vm470, %v3419, 0
        %v3495 = vsel %vm470, %v3420, 0
        %v3498 = vsel %vm470, %v3421, 0
        %3500 = vmatprep.subr.bf16.mxu0 %v3354
        %3501 = vmatpush1.bf16.msra.mxu0 %v3353
        %3502 = vmatprep.subr.bf16.mxu0 %v3357
        %3503 = vmatpush1.bf16.msra.mxu0 %v3356
        %3504 = vmatprep.subr.bf16.mxu0 %v3360
        %3505 = vmatpush1.bf16.msra.mxu0 %v3359
        %3506 = vmatprep.subr.bf16.mxu0 %v3363
        %3507 = vmatpush1.bf16.msra.mxu0 %v3362
        %3508 = vmatprep.subr.bf16.mxu0 %v3366
        %3509 = vmatpush1.bf16.msra.mxu0 %v3365
        %3510 = vmatprep.subr.bf16.mxu0 %v3369
        %3511 = vmatpush1.bf16.msra.mxu0 %v3368
        %3512 = vmatprep.subr.bf16.mxu0 %v3372
        %3513 = vmatpush1.bf16.msra.mxu0 %v3371
        %3514 = vmatprep.subr.bf16.mxu0 %v3375
        %3515 = vmatpush1.bf16.msra.mxu0 %v3374
        %3516 = vmatprep.subr.bf16.mxu0 %v3378
        %3517 = vmatpush1.bf16.msra.mxu0 %v3377
        %3518 = vmatprep.subr.bf16.mxu0 %v3381
        %3519 = vmatpush1.bf16.msra.mxu0 %v3380
        %3520 = vmatprep.subr.bf16.mxu0 %v3384
        %3521 = vmatpush1.bf16.msra.mxu0 %v3383
        %3522 = vmatprep.subr.bf16.mxu0 %v3387
        %3523 = vmatpush1.bf16.msra.mxu0 %v3386
        %3524 = vmatprep.subr.bf16.mxu0 %v3390
        %3525 = vmatpush1.bf16.msra.mxu0 %v3389
        %3526 = vmatprep.subr.bf16.mxu0 %v3393
        %3527 = vmatpush1.bf16.msra.mxu0 %v3392
        %3528 = vmatprep.subr.bf16.mxu0 %v3396
        %3529 = vmatpush1.bf16.msra.mxu0 %v3395
        %3530 = vmatprep.subr.bf16.mxu0 %v3399
        %3531 = vmatpush1.bf16.msra.mxu0 %v3398
        %3532 = vmatprep.mubr.bf16.mxu0 %v3122
        %3533 = vmatmul.mubr.bf16.gmra.mrb[0].mxu0 %v3119
        %v3534 = vpop.f32.mrb[0].mxu0
        %v3535 = vadd.f32 0.0, %v3534
        %v3536 = vpop.f32.mrb[0].mxu0
        %v3537 = vadd.f32 0.0, %v3536
        %v3538 = vpop.f32.mrb[0].mxu0
        %v3539 = vpop.f32.mrb[0].mxu0
        %3540 = vdwg.mxu0
        %3541 = vmatprep.subr.bf16.mxu0 %v3402
        %3542 = vmatpush1.bf16.msra.mxu0 %v3401
        %3543 = vmatprep.subr.bf16.mxu0 %v3405
        %3544 = vmatpush1.bf16.msra.mxu0 %v3404
        %3545 = vmatprep.subr.bf16.mxu0 %v3408
        %3546 = vmatpush1.bf16.msra.mxu0 %v3407
        %3547 = vmatprep.subr.bf16.mxu0 %v3411
        %3548 = vmatpush1.bf16.msra.mxu0 %v3410
        %3549 = vmatprep.subr.bf16.mxu0 %v3414
        %3550 = vmatpush1.bf16.msra.mxu0 %v3413
        %3551 = vmatprep.subr.bf16.mxu0 %v3417
        %3552 = vmatpush1.bf16.msra.mxu0 %v3416
        %3553 = vmatprep.subr.bf16.mxu0 %v3495
        %3554 = vmatpush1.bf16.msra.mxu0 %v3492
        %3555 = vmatprep.subr.bf16.mxu0 0
        %3556 = vmatpush1.bf16.msra.mxu0 0
        %3557 = vmatprep.subr.bf16.mxu0 0
        %3558 = vmatpush1.bf16.msra.mxu0 0
        %3559 = vmatprep.subr.bf16.mxu0 0
        %3560 = vmatpush1.bf16.msra.mxu0 0
        %3561 = vmatprep.subr.bf16.mxu0 0
        %3562 = vmatpush1.bf16.msra.mxu0 0
        %3563 = vmatprep.subr.bf16.mxu0 0
        %3564 = vmatpush1.bf16.msra.mxu0 0
        %3565 = vmatprep.subr.bf16.mxu0 0
        %3566 = vmatpush1.bf16.msra.mxu0 0
        %3567 = vmatprep.subr.bf16.mxu0 0
        %3568 = vmatpush1.bf16.msra.mxu0 0
        %3569 = vmatprep.subr.bf16.mxu0 0
        %3570 = vmatpush1.bf16.msra.mxu0 0
        %3571 = vmatprep.subr.bf16.mxu0 0
        %3572 = vmatpush1.bf16.msra.mxu0 0
        %3573 = vmatprep.mubr.bf16.mxu0 0
        %3574 = vmatmul.mubr.bf16.gmra.mrb[0].mxu0 %v3489
        %v3575 = vpop.f32.mrb[0].mxu0
        %v3576 = vadd.f32 %v3535, %v3575
        %v3577 = vpop.f32.mrb[0].mxu0
        %v3578 = vadd.f32 %v3537, %v3577
        %v3579 = vpop.f32.mrb[0].mxu0
        %v3580 = vpop.f32.mrb[0].mxu0
        %3581 = vdwg.mxu0
        %3582 = vmatprep.subr.bf16.mxu0 0
        %3583 = vmatpush1.bf16.msra.mxu0 %v3355
        %3584 = vmatprep.subr.bf16.mxu0 0
        %3585 = vmatpush1.bf16.msra.mxu0 %v3358
        %3586 = vmatprep.subr.bf16.mxu0 0
        %3587 = vmatpush1.bf16.msra.mxu0 %v3361
        %3588 = vmatprep.subr.bf16.mxu0 0
        %3589 = vmatpush1.bf16.msra.mxu0 %v3364
        %3590 = vmatprep.subr.bf16.mxu0 0
        %3591 = vmatpush1.bf16.msra.mxu0 %v3367
        %3592 = vmatprep.subr.bf16.mxu0 0
        %3593 = vmatpush1.bf16.msra.mxu0 %v3370
        %3594 = vmatprep.subr.bf16.mxu0 0
        %3595 = vmatpush1.bf16.msra.mxu0 %v3373
        %3596 = vmatprep.subr.bf16.mxu0 0
        %3597 = vmatpush1.bf16.msra.mxu0 %v3376
        %3598 = vmatprep.subr.bf16.mxu0 0
        %3599 = vmatpush1.bf16.msra.mxu0 %v3379
        %3600 = vmatprep.subr.bf16.mxu0 0
        %3601 = vmatpush1.bf16.msra.mxu0 %v3382
        %3602 = vmatprep.subr.bf16.mxu0 0
        %3603 = vmatpush1.bf16.msra.mxu0 %v3385
        %3604 = vmatprep.subr.bf16.mxu0 0
        %3605 = vmatpush1.bf16.msra.mxu0 %v3388
        %3606 = vmatprep.subr.bf16.mxu0 0
        %3607 = vmatpush1.bf16.msra.mxu0 %v3391
        %3608 = vmatprep.subr.bf16.mxu0 0
        %3609 = vmatpush1.bf16.msra.mxu0 %v3394
        %3610 = vmatprep.subr.bf16.mxu0 0
        %3611 = vmatpush1.bf16.msra.mxu0 %v3397
        %3612 = vmatprep.subr.bf16.mxu0 0
        %3613 = vmatpush1.bf16.msra.mxu0 %v3400
        %3614 = vmatprep.mubr.bf16.mxu0 %v3122
        %3615 = vmatmul.mubr.bf16.gmra.mrb[0].mxu0 %v3119
        %v3616 = vpop.f32.mrb[0].mxu0
        %v3617 = vadd.f32 0.0, %v3616
        %v3618 = vpop.f32.mrb[0].mxu0
        %v3619 = vpop.f32.mrb[0].mxu0
        %v3620 = vpop.f32.mrb[0].mxu0
        %3621 = vdwg.mxu0
        %3622 = vmatprep.subr.bf16.mxu0 0
        %3623 = vmatpush1.bf16.msra.mxu0 %v3403
        %3624 = vmatprep.subr.bf16.mxu0 0
        %3625 = vmatpush1.bf16.msra.mxu0 %v3406
        %3626 = vmatprep.subr.bf16.mxu0 0
        %3627 = vmatpush1.bf16.msra.mxu0 %v3409
        %3628 = vmatprep.subr.bf16.mxu0 0
        %3629 = vmatpush1.bf16.msra.mxu0 %v3412
        %3630 = vmatprep.subr.bf16.mxu0 0
        %3631 = vmatpush1.bf16.msra.mxu0 %v3415
        %3632 = vmatprep.subr.bf16.mxu0 0
        %3633 = vmatpush1.bf16.msra.mxu0 %v3418
        %3634 = vmatprep.subr.bf16.mxu0 0
        %3635 = vmatpush1.bf16.msra.mxu0 %v3498
        %3636 = vmatprep.subr.bf16.mxu0 0
        %3637 = vmatpush1.bf16.msra.mxu0 0
        %3638 = vmatprep.subr.bf16.mxu0 0
        %3639 = vmatpush1.bf16.msra.mxu0 0
        %3640 = vmatprep.subr.bf16.mxu0 0
        %3641 = vmatpush1.bf16.msra.mxu0 0
        %3642 = vmatprep.subr.bf16.mxu0 0
        %3643 = vmatpush1.bf16.msra.mxu0 0
        %3644 = vmatprep.subr.bf16.mxu0 0
        %3645 = vmatpush1.bf16.msra.mxu0 0
        %3646 = vmatprep.subr.bf16.mxu0 0
        %3647 = vmatpush1.bf16.msra.mxu0 0
        %3648 = vmatprep.subr.bf16.mxu0 0
        %3649 = vmatpush1.bf16.msra.mxu0 0
        %3650 = vmatprep.subr.bf16.mxu0 0
        %3651 = vmatpush1.bf16.msra.mxu0 0
        %3652 = vmatprep.subr.bf16.mxu0 0
        %3653 = vmatpush1.bf16.msra.mxu0 0
        %3654 = vmatprep.mubr.bf16.mxu0 0
        %3655 = vmatmul.mubr.bf16.gmra.mrb[0].mxu0 %v3489
        %v3656 = vpop.f32.mrb[0].mxu0
        %v3657 = vadd.f32 %v3617, %v3656
        %v3658 = vpop.f32.mrb[0].mxu0
        %v3659 = vpop.f32.mrb[0].mxu0
        %v3660 = vpop.f32.mrb[0].mxu0
        %3661 = vdwg.mxu0
        %v3662 = vadd.f32 %v2933, %v3576
        %v3663 = vadd.f32 %v2935, %v3578
        %v3664 = vadd.f32 %v3014, %v3657
        %s3665 = scalar_lea.vmem %s5, 1620
        %v3666 = vld [vmem:[%s3665] sm:$0xff]
        %v3667 = vld [vmem:[%s3665 + $0x8] sm:$0xf]
        %v3668 = vld [vmem:[%s3665 + $0xc] sm:$0xff]
        %v3669 = vld [vmem:[%s3665 + $0x14] sm:$0xf]
        %v3670 = vld [vmem:[%s3665 + $0x18] sm:$0xff]
        %v3671 = vld [vmem:[%s3665 + $0x20] sm:$0xf]
        %v3672 = vld [vmem:[%s3665 + $0x24] sm:$0xff]
        %v3673 = vld [vmem:[%s3665 + $0x2c] sm:$0xf]
        %v3674 = vld [vmem:[%s3665 + $0x30] sm:$0xff]
        %v3675 = vld [vmem:[%s3665 + $0x38] sm:$0xf]
        %v3676 = vld [vmem:[%s3665 + $0x3c] sm:$0xff]
        %v3677 = vld [vmem:[%s3665 + $0x44] sm:$0xf]
        %v3678 = vld [vmem:[%s3665 + $0x48] sm:$0xff]
        %v3679 = vld [vmem:[%s3665 + $0x50] sm:$0xf]
        %v3680 = vld [vmem:[%s3665 + $0x54] sm:$0xff]
        %v3681 = vld [vmem:[%s3665 + $0x5c] sm:$0xf]
        %v3682 = vld [vmem:[%s3665 + $0x60] sm:$0xff]
        %v3683 = vld [vmem:[%s3665 + $0x68] sm:$0xf]
        %v3684 = vld [vmem:[%s3665 + $0x6c] sm:$0xff]
        %v3685 = vld [vmem:[%s3665 + $0x74] sm:$0xf]
        %v3686 = vld [vmem:[%s3665 + $0x78] sm:$0xff]
        %v3687 = vld [vmem:[%s3665 + $0x80] sm:$0xf]
        %v3688 = vld [vmem:[%s3665 + $0x84] sm:$0xff]
        %v3689 = vld [vmem:[%s3665 + $0x8c] sm:$0xf]
        %v3690 = vld [vmem:[%s3665 + $0x90] sm:$0xff]
        %v3691 = vld [vmem:[%s3665 + $0x98] sm:$0xf]
        %v3692 = vld [vmem:[%s3665 + $0x9c] sm:$0xff]
        %v3693 = vld [vmem:[%s3665 + $0xa4] sm:$0xf]
        %v3694 = vld [vmem:[%s3665 + $0xa8] sm:$0xff]
        %v3695 = vld [vmem:[%s3665 + $0xb0] sm:$0xf]
        %v3696 = vld [vmem:[%s3665 + $0xb4] sm:$0xff]
        %v3697 = vld [vmem:[%s3665 + $0xbc] sm:$0xf]
        %v3698 = vld [vmem:[%s3665 + $0xc0] sm:$0xff]
        %v3699 = vld [vmem:[%s3665 + $0xc8] sm:$0xf]
        %v3700 = vld [vmem:[%s3665 + $0xcc] sm:$0xff]
        %v3701 = vld [vmem:[%s3665 + $0xd4] sm:$0xf]
        %v3702 = vld [vmem:[%s3665 + $0xd8] sm:$0xff]
        %v3703 = vld [vmem:[%s3665 + $0xe0] sm:$0xf]
        %v3704 = vld [vmem:[%s3665 + $0xe4] sm:$0xff]
        %v3705 = vld [vmem:[%s3665 + $0xec] sm:$0xf]
        %v3706 = vld [vmem:[%s3665 + $0xf0] sm:$0xff]
        %v3707 = vld [vmem:[%s3665 + $0xf8] sm:$0xf]
        %v3708 = vld [vmem:[%s3665 + $0xfc] sm:$0xff]
        %v3709 = vld [vmem:[%s3665 + $0x104] sm:$0xf]
        %v3710 = vld [vmem:[%s3665 + $0x108] sm:$0xff]
        %v3711 = vld [vmem:[%s3665 + $0x110] sm:$0xf]
        %v3712 = vld [vmem:[%s3665 + $0x114] sm:$0xff]
        %v3713 = vld [vmem:[%s3665 + $0x11c] sm:$0xf]
        %v3714 = vld [vmem:[%s3665 + $0x120] sm:$0xff]
        %v3715 = vld [vmem:[%s3665 + $0x128] sm:$0xf]
        %v3716 = vld [vmem:[%s3665 + $0x12c] sm:$0xff]
        %v3717 = vld [vmem:[%s3665 + $0x134] sm:$0xf]
        %v3718 = vld [vmem:[%s3665 + $0x138] sm:$0xff]
        %v3719 = vld [vmem:[%s3665 + $0x140] sm:$0xf]
        %v3720 = vld [vmem:[%s3665 + $0x144] sm:$0xff]
        %v3721 = vld [vmem:[%s3665 + $0x14c] sm:$0xf]
        %v3722 = vld [vmem:[%s3665 + $0x150] sm:$0xff]
        %v3723 = vld [vmem:[%s3665 + $0x158] sm:$0xf]
        %v3724 = vld [vmem:[%s3665 + $0x15c] sm:$0xff]
        %v3725 = vld [vmem:[%s3665 + $0x164] sm:$0xf]
        %v3726 = vld [vmem:[%s3665 + $0x168] sm:$0xff]
        %v3727 = vld [vmem:[%s3665 + $0x170] sm:$0xf]
        %v3728 = vld [vmem:[%s3665 + $0x174] sm:$0xff]
        %v3729 = vld [vmem:[%s3665 + $0x17c] sm:$0xf]
        %v3730 = vld [vmem:[%s3665 + $0x180] sm:$0xff]
        %v3731 = vld [vmem:[%s3665 + $0x188] sm:$0xf]
        %v3732 = vld [vmem:[%s3665 + $0x18c] sm:$0xff]
        %v3733 = vld [vmem:[%s3665 + $0x194] sm:$0xf]
        %v3734 = vld [vmem:[%s3665 + $0x198] sm:$0xff]
        %v3735 = vld [vmem:[%s3665 + $0x1a0] sm:$0xf]
        %v3736 = vld [vmem:[%s3665 + $0x1a4] sm:$0xff]
        %v3737 = vld [vmem:[%s3665 + $0x1ac] sm:$0xf]
        %v3738 = vld [vmem:[%s3665 + $0x1b0] sm:$0xff]
        %v3739 = vld [vmem:[%s3665 + $0x1b8] sm:$0xf]
        %v3740 = vld [vmem:[%s3665 + $0x1bc] sm:$0xff]
        %v3741 = vld [vmem:[%s3665 + $0x1c4] sm:$0xf]
        %v3742 = vld [vmem:[%s3665 + $0x1c8] sm:$0xff]
        %v3743 = vld [vmem:[%s3665 + $0x1d0] sm:$0xf]
        %v3744 = vld [vmem:[%s3665 + $0x1d4] sm:$0xff]
        %v3745 = vld [vmem:[%s3665 + $0x1dc] sm:$0xf]
        %v3746 = vld [vmem:[%s3665 + $0x1e0] sm:$0xff]
        %v3747 = vld [vmem:[%s3665 + $0x1e8] sm:$0xf]
        %v3748 = vld [vmem:[%s3665 + $0x1ec] sm:$0xff]
        %v3749 = vld [vmem:[%s3665 + $0x1f4] sm:$0xf]
        %v3750 = vld [vmem:[%s3665 + $0x1f8] sm:$0xff]
        %v3751 = vld [vmem:[%s3665 + $0x200] sm:$0xf]
        %v3752 = vld [vmem:[%s3665 + $0x204] sm:$0xff]
        %v3753 = vld [vmem:[%s3665 + $0x20c] sm:$0xf]
        %v3754 = vld [vmem:[%s3665 + $0x210] sm:$0xff]
        %v3755 = vld [vmem:[%s3665 + $0x218] sm:$0xf]
        %v3757 = vshrl.u32 %v1738, 16
        %v3759 = vrot.slane %v3757, 2
        %v3760 = vshll.u32 %v1738, 16
        %v3762 = vrot.slane %v3760, 3
        %v3763 = vor.u32 %v3759, %v3762
        %v3765 = vshrl.u32 %v1739, 16
        %v3767 = vrot.slane %v3765, 2
        %v3768 = vshll.u32 %v1739, 16
        %v3770 = vrot.slane %v3768, 3
        %v3771 = vor.u32 %v3767, %v3770
        %v3773 = vshrl.u32 %v1740, 16
        %v3775 = vrot.slane %v3773, 2
        %v3776 = vshll.u32 %v1740, 16
        %v3778 = vrot.slane %v3776, 3
        %v3779 = vor.u32 %v3775, %v3778
        %v3872 = vunpack.c.l.b16 %v3666
        %v3873 = vunpack.c.h.b16 %v3666
        %v3874 = vunpack.c.l.b16 %v3667
        %v3875 = vunpack.c.l.b16 %v3668
        %v3876 = vunpack.c.h.b16 %v3668
        %v3877 = vunpack.c.l.b16 %v3669
        %v3878 = vunpack.c.l.b16 %v3670
        %v3879 = vunpack.c.h.b16 %v3670
        %v3880 = vunpack.c.l.b16 %v3671
        %v3881 = vunpack.c.l.b16 %v3672
        %v3882 = vunpack.c.h.b16 %v3672
        %v3883 = vunpack.c.l.b16 %v3673
        %v3884 = vunpack.c.l.b16 %v3674
        %v3885 = vunpack.c.h.b16 %v3674
        %v3886 = vunpack.c.l.b16 %v3675
        %v3887 = vunpack.c.l.b16 %v3676
        %v3888 = vunpack.c.h.b16 %v3676
        %v3889 = vunpack.c.l.b16 %v3677
        %v3890 = vunpack.c.l.b16 %v3678
        %v3891 = vunpack.c.h.b16 %v3678
        %v3892 = vunpack.c.l.b16 %v3679
        %v3893 = vunpack.c.l.b16 %v3680
        %v3894 = vunpack.c.h.b16 %v3680
        %v3895 = vunpack.c.l.b16 %v3681
        %v3896 = vunpack.c.l.b16 %v3682
        %v3897 = vunpack.c.h.b16 %v3682
        %v3898 = vunpack.c.l.b16 %v3683
        %v3899 = vunpack.c.l.b16 %v3684
        %v3900 = vunpack.c.h.b16 %v3684
        %v3901 = vunpack.c.l.b16 %v3685
        %v3902 = vunpack.c.l.b16 %v3686
        %v3903 = vunpack.c.h.b16 %v3686
        %v3904 = vunpack.c.l.b16 %v3687
        %v3905 = vunpack.c.l.b16 %v3688
        %v3906 = vunpack.c.h.b16 %v3688
        %v3907 = vunpack.c.l.b16 %v3689
        %v3908 = vunpack.c.l.b16 %v3690
        %v3909 = vunpack.c.h.b16 %v3690
        %v3910 = vunpack.c.l.b16 %v3691
        %v3911 = vunpack.c.l.b16 %v3692
        %v3912 = vunpack.c.h.b16 %v3692
        %v3913 = vunpack.c.l.b16 %v3693
        %v3914 = vunpack.c.l.b16 %v3694
        %v3915 = vunpack.c.h.b16 %v3694
        %v3916 = vunpack.c.l.b16 %v3695
        %v3917 = vunpack.c.l.b16 %v3696
        %v3918 = vunpack.c.h.b16 %v3696
        %v3919 = vunpack.c.l.b16 %v3697
        %v3920 = vunpack.c.l.b16 %v3698
        %v3921 = vunpack.c.h.b16 %v3698
        %v3922 = vunpack.c.l.b16 %v3699
        %v3923 = vunpack.c.l.b16 %v3700
        %v3924 = vunpack.c.h.b16 %v3700
        %v3925 = vunpack.c.l.b16 %v3701
        %v3926 = vunpack.c.l.b16 %v3702
        %v3927 = vunpack.c.h.b16 %v3702
        %v3928 = vunpack.c.l.b16 %v3703
        %v3929 = vunpack.c.l.b16 %v3704
        %v3930 = vunpack.c.h.b16 %v3704
        %v3931 = vunpack.c.l.b16 %v3705
        %v3932 = vunpack.c.l.b16 %v3706
        %v3933 = vunpack.c.h.b16 %v3706
        %v3934 = vunpack.c.l.b16 %v3707
        %v3935 = vunpack.c.l.b16 %v3708
        %v3936 = vunpack.c.h.b16 %v3708
        %v3937 = vunpack.c.l.b16 %v3709
        %v3938 = vunpack.c.l.b16 %v3710
        %v3939 = vunpack.c.h.b16 %v3710
        %v3940 = vunpack.c.l.b16 %v3711
        %v3941 = vunpack.c.l.b16 %v3712
        %v3942 = vunpack.c.h.b16 %v3712
        %v3943 = vunpack.c.l.b16 %v3713
        %v3944 = vunpack.c.l.b16 %v3714
        %v3945 = vunpack.c.h.b16 %v3714
        %v3946 = vunpack.c.l.b16 %v3715
        %v3947 = vunpack.c.l.b16 %v3716
        %v3948 = vunpack.c.h.b16 %v3716
        %v3949 = vunpack.c.l.b16 %v3717
        %v3950 = vunpack.c.l.b16 %v3718
        %v3951 = vunpack.c.h.b16 %v3718
        %v3952 = vunpack.c.l.b16 %v3719
        %v3953 = vunpack.c.l.b16 %v3720
        %v3954 = vunpack.c.h.b16 %v3720
        %v3955 = vunpack.c.l.b16 %v3721
        %v3956 = vunpack.c.l.b16 %v3722
        %v3957 = vunpack.c.h.b16 %v3722
        %v3958 = vunpack.c.l.b16 %v3723
        %v3959 = vunpack.c.l.b16 %v3724
        %v3960 = vunpack.c.h.b16 %v3724
        %v3961 = vunpack.c.l.b16 %v3725
        %v3962 = vunpack.c.l.b16 %v3726
        %v3963 = vunpack.c.h.b16 %v3726
        %v3964 = vunpack.c.l.b16 %v3727
        %v3965 = vunpack.c.l.b16 %v3728
        %v3966 = vunpack.c.h.b16 %v3728
        %v3967 = vunpack.c.l.b16 %v3729
        %v3968 = vunpack.c.l.b16 %v3730
        %v3969 = vunpack.c.h.b16 %v3730
        %v3970 = vunpack.c.l.b16 %v3731
        %v3971 = vunpack.c.l.b16 %v3732
        %v3972 = vunpack.c.h.b16 %v3732
        %v3973 = vunpack.c.l.b16 %v3733
        %v3974 = vunpack.c.l.b16 %v3734
        %v3975 = vunpack.c.h.b16 %v3734
        %v3976 = vunpack.c.l.b16 %v3735
        %v3977 = vunpack.c.l.b16 %v3736
        %v3978 = vunpack.c.h.b16 %v3736
        %v3979 = vunpack.c.l.b16 %v3737
        %v3980 = vunpack.c.l.b16 %v3738
        %v3981 = vunpack.c.h.b16 %v3738
        %v3982 = vunpack.c.l.b16 %v3739
        %v3983 = vunpack.c.l.b16 %v3740
        %v3984 = vunpack.c.h.b16 %v3740
        %v3985 = vunpack.c.l.b16 %v3741
        %v3986 = vunpack.c.l.b16 %v3742
        %v3987 = vunpack.c.h.b16 %v3742
        %v3988 = vunpack.c.l.b16 %v3743
        %v3989 = vunpack.c.l.b16 %v3744
        %v3990 = vunpack.c.h.b16 %v3744
        %v3991 = vunpack.c.l.b16 %v3745
        %v3992 = vunpack.c.l.b16 %v3746
        %v3993 = vunpack.c.h.b16 %v3746
        %v3994 = vunpack.c.l.b16 %v3747
        %v3995 = vunpack.c.l.b16 %v3748
        %v3996 = vunpack.c.h.b16 %v3748
        %v3997 = vunpack.c.l.b16 %v3749
        %v3998 = vunpack.c.l.b16 %v3750
        %v3999 = vunpack.c.h.b16 %v3750
        %v4000 = vunpack.c.l.b16 %v3751
        %v4001 = vunpack.c.l.b16 %v3752
        %v4002 = vunpack.c.h.b16 %v3752
        %v4003 = vunpack.c.l.b16 %v3753
        %v4004 = vunpack.c.l.b16 %v3754
        %v4005 = vunpack.c.h.b16 %v3754
        %v4006 = vunpack.c.l.b16 %v3755
        %v4007 = vpack.c.b16 %v3875, %v3872
        %v4008 = vpack.c.b16 %v3876, %v3873
        %v4009 = vpack.c.b16 %v3877, %v3874
        %v4010 = vpack.c.b16 %v3881, %v3878
        %v4011 = vpack.c.b16 %v3882, %v3879
        %v4012 = vpack.c.b16 %v3883, %v3880
        %v4013 = vpack.c.b16 %v3887, %v3884
        %v4014 = vpack.c.b16 %v3888, %v3885
        %v4015 = vpack.c.b16 %v3889, %v3886
        %v4016 = vpack.c.b16 %v3893, %v3890
        %v4017 = vpack.c.b16 %v3894, %v3891
        %v4018 = vpack.c.b16 %v3895, %v3892
        %v4019 = vpack.c.b16 %v3899, %v3896
        %v4020 = vpack.c.b16 %v3900, %v3897
        %v4021 = vpack.c.b16 %v3901, %v3898
        %v4022 = vpack.c.b16 %v3905, %v3902
        %v4023 = vpack.c.b16 %v3906, %v3903
        %v4024 = vpack.c.b16 %v3907, %v3904
        %v4025 = vpack.c.b16 %v3911, %v3908
        %v4026 = vpack.c.b16 %v3912, %v3909
        %v4027 = vpack.c.b16 %v3913, %v3910
        %v4028 = vpack.c.b16 %v3917, %v3914
        %v4029 = vpack.c.b16 %v3918, %v3915
        %v4030 = vpack.c.b16 %v3919, %v3916
        %v4031 = vpack.c.b16 %v3923, %v3920
        %v4032 = vpack.c.b16 %v3924, %v3921
        %v4033 = vpack.c.b16 %v3925, %v3922
        %v4034 = vpack.c.b16 %v3929, %v3926
        %v4035 = vpack.c.b16 %v3930, %v3927
        %v4036 = vpack.c.b16 %v3931, %v3928
        %v4037 = vpack.c.b16 %v3935, %v3932
        %v4038 = vpack.c.b16 %v3936, %v3933
        %v4039 = vpack.c.b16 %v3937, %v3934
        %v4040 = vpack.c.b16 %v3941, %v3938
        %v4041 = vpack.c.b16 %v3942, %v3939
        %v4042 = vpack.c.b16 %v3943, %v3940
        %v4043 = vpack.c.b16 %v3947, %v3944
        %v4044 = vpack.c.b16 %v3948, %v3945
        %v4045 = vpack.c.b16 %v3949, %v3946
        %v4046 = vpack.c.b16 %v3953, %v3950
        %v4047 = vpack.c.b16 %v3954, %v3951
        %v4048 = vpack.c.b16 %v3955, %v3952
        %v4049 = vpack.c.b16 %v3959, %v3956
        %v4050 = vpack.c.b16 %v3960, %v3957
        %v4051 = vpack.c.b16 %v3961, %v3958
        %v4052 = vpack.c.b16 %v3965, %v3962
        %v4053 = vpack.c.b16 %v3966, %v3963
        %v4054 = vpack.c.b16 %v3967, %v3964
        %v4055 = vpack.c.b16 %v3971, %v3968
        %v4056 = vpack.c.b16 %v3972, %v3969
        %v4057 = vpack.c.b16 %v3973, %v3970
        %v4058 = vpack.c.b16 %v3977, %v3974
        %v4059 = vpack.c.b16 %v3978, %v3975
        %v4060 = vpack.c.b16 %v3979, %v3976
        %v4061 = vpack.c.b16 %v3983, %v3980
        %v4062 = vpack.c.b16 %v3984, %v3981
        %v4063 = vpack.c.b16 %v3985, %v3982
        %v4064 = vpack.c.b16 %v3989, %v3986
        %v4065 = vpack.c.b16 %v3990, %v3987
        %v4066 = vpack.c.b16 %v3991, %v3988
        %v4067 = vpack.c.b16 %v3995, %v3992
        %v4068 = vpack.c.b16 %v3996, %v3993
        %v4069 = vpack.c.b16 %v3997, %v3994
        %v4070 = vpack.c.b16 %v4001, %v3998
        %v4071 = vpack.c.b16 %v4002, %v3999
        %v4072 = vpack.c.b16 %v4003, %v4000
        %v4073 = vpack.c.b16 %v4004, %v4004
        %v4074 = vpack.c.b16 %v4005, %v4005
        %v4075 = vpack.c.b16 %v4006, %v4006
        %v4143 = vsel %vm2311, %v3779, 0
        %v4146 = vsel %vm470, %v4073, 0
        %v4149 = vsel %vm470, %v4074, 0
        %v4152 = vsel %vm470, %v4075, 0
        %4154 = vmatprep.subr.bf16.mxu0 %v4008
        %4155 = vmatpush1.bf16.msra.mxu0 %v4007
        %4156 = vmatprep.subr.bf16.mxu0 %v4011
        %4157 = vmatpush1.bf16.msra.mxu0 %v4010
        %4158 = vmatprep.subr.bf16.mxu0 %v4014
        %4159 = vmatpush1.bf16.msra.mxu0 %v4013
        %4160 = vmatprep.subr.bf16.mxu0 %v4017
        %4161 = vmatpush1.bf16.msra.mxu0 %v4016
        %4162 = vmatprep.subr.bf16.mxu0 %v4020
        %4163 = vmatpush1.bf16.msra.mxu0 %v4019
        %4164 = vmatprep.subr.bf16.mxu0 %v4023
        %4165 = vmatpush1.bf16.msra.mxu0 %v4022
        %4166 = vmatprep.subr.bf16.mxu0 %v4026
        %4167 = vmatpush1.bf16.msra.mxu0 %v4025
        %4168 = vmatprep.subr.bf16.mxu0 %v4029
        %4169 = vmatpush1.bf16.msra.mxu0 %v4028
        %4170 = vmatprep.subr.bf16.mxu0 %v4032
        %4171 = vmatpush1.bf16.msra.mxu0 %v4031
        %4172 = vmatprep.subr.bf16.mxu0 %v4035
        %4173 = vmatpush1.bf16.msra.mxu0 %v4034
        %4174 = vmatprep.subr.bf16.mxu0 %v4038
        %4175 = vmatpush1.bf16.msra.mxu0 %v4037
        %4176 = vmatprep.subr.bf16.mxu0 %v4041
        %4177 = vmatpush1.bf16.msra.mxu0 %v4040
        %4178 = vmatprep.subr.bf16.mxu0 %v4044
        %4179 = vmatpush1.bf16.msra.mxu0 %v4043
        %4180 = vmatprep.subr.bf16.mxu0 %v4047
        %4181 = vmatpush1.bf16.msra.mxu0 %v4046
        %4182 = vmatprep.subr.bf16.mxu0 %v4050
        %4183 = vmatpush1.bf16.msra.mxu0 %v4049
        %4184 = vmatprep.subr.bf16.mxu0 %v4053
        %4185 = vmatpush1.bf16.msra.mxu0 %v4052
        %4186 = vmatprep.mubr.bf16.mxu0 %v3771
        %4187 = vmatmul.mubr.bf16.gmra.mrb[0].mxu0 %v3763
        %v4188 = vpop.f32.mrb[0].mxu0
        %v4189 = vadd.f32 0.0, %v4188
        %v4190 = vpop.f32.mrb[0].mxu0
        %v4191 = vadd.f32 0.0, %v4190
        %v4192 = vpop.f32.mrb[0].mxu0
        %v4193 = vpop.f32.mrb[0].mxu0
        %4194 = vdwg.mxu0
        %4195 = vmatprep.subr.bf16.mxu0 %v4056
        %4196 = vmatpush1.bf16.msra.mxu0 %v4055
        %4197 = vmatprep.subr.bf16.mxu0 %v4059
        %4198 = vmatpush1.bf16.msra.mxu0 %v4058
        %4199 = vmatprep.subr.bf16.mxu0 %v4062
        %4200 = vmatpush1.bf16.msra.mxu0 %v4061
        %4201 = vmatprep.subr.bf16.mxu0 %v4065
        %4202 = vmatpush1.bf16.msra.mxu0 %v4064
        %4203 = vmatprep.subr.bf16.mxu0 %v4068
        %4204 = vmatpush1.bf16.msra.mxu0 %v4067
        %4205 = vmatprep.subr.bf16.mxu0 %v4071
        %4206 = vmatpush1.bf16.msra.mxu0 %v4070
        %4207 = vmatprep.subr.bf16.mxu0 %v4149
        %4208 = vmatpush1.bf16.msra.mxu0 %v4146
        %4209 = vmatprep.subr.bf16.mxu0 0
        %4210 = vmatpush1.bf16.msra.mxu0 0
        %4211 = vmatprep.subr.bf16.mxu0 0
        %4212 = vmatpush1.bf16.msra.mxu0 0
        %4213 = vmatprep.subr.bf16.mxu0 0
        %4214 = vmatpush1.bf16.msra.mxu0 0
        %4215 = vmatprep.subr.bf16.mxu0 0
        %4216 = vmatpush1.bf16.msra.mxu0 0
        %4217 = vmatprep.subr.bf16.mxu0 0
        %4218 = vmatpush1.bf16.msra.mxu0 0
        %4219 = vmatprep.subr.bf16.mxu0 0
        %4220 = vmatpush1.bf16.msra.mxu0 0
        %4221 = vmatprep.subr.bf16.mxu0 0
        %4222 = vmatpush1.bf16.msra.mxu0 0
        %4223 = vmatprep.subr.bf16.mxu0 0
        %4224 = vmatpush1.bf16.msra.mxu0 0
        %4225 = vmatprep.subr.bf16.mxu0 0
        %4226 = vmatpush1.bf16.msra.mxu0 0
        %4227 = vmatprep.mubr.bf16.mxu0 0
        %4228 = vmatmul.mubr.bf16.gmra.mrb[0].mxu0 %v4143
        %v4229 = vpop.f32.mrb[0].mxu0
        %v4230 = vadd.f32 %v4189, %v4229
        %v4231 = vpop.f32.mrb[0].mxu0
        %v4232 = vadd.f32 %v4191, %v4231
        %v4233 = vpop.f32.mrb[0].mxu0
        %v4234 = vpop.f32.mrb[0].mxu0
        %4235 = vdwg.mxu0
        %4236 = vmatprep.subr.bf16.mxu0 0
        %4237 = vmatpush1.bf16.msra.mxu0 %v4009
        %4238 = vmatprep.subr.bf16.mxu0 0
        %4239 = vmatpush1.bf16.msra.mxu0 %v4012
        %4240 = vmatprep.subr.bf16.mxu0 0
        %4241 = vmatpush1.bf16.msra.mxu0 %v4015
        %4242 = vmatprep.subr.bf16.mxu0 0
        %4243 = vmatpush1.bf16.msra.mxu0 %v4018
        %4244 = vmatprep.subr.bf16.mxu0 0
        %4245 = vmatpush1.bf16.msra.mxu0 %v4021
        %4246 = vmatprep.subr.bf16.mxu0 0
        %4247 = vmatpush1.bf16.msra.mxu0 %v4024
        %4248 = vmatprep.subr.bf16.mxu0 0
        %4249 = vmatpush1.bf16.msra.mxu0 %v4027
        %4250 = vmatprep.subr.bf16.mxu0 0
        %4251 = vmatpush1.bf16.msra.mxu0 %v4030
        %4252 = vmatprep.subr.bf16.mxu0 0
        %4253 = vmatpush1.bf16.msra.mxu0 %v4033
        %4254 = vmatprep.subr.bf16.mxu0 0
        %4255 = vmatpush1.bf16.msra.mxu0 %v4036
        %4256 = vmatprep.subr.bf16.mxu0 0
        %4257 = vmatpush1.bf16.msra.mxu0 %v4039
        %4258 = vmatprep.subr.bf16.mxu0 0
        %4259 = vmatpush1.bf16.msra.mxu0 %v4042
        %4260 = vmatprep.subr.bf16.mxu0 0
        %4261 = vmatpush1.bf16.msra.mxu0 %v4045
        %4262 = vmatprep.subr.bf16.mxu0 0
        %4263 = vmatpush1.bf16.msra.mxu0 %v4048
        %4264 = vmatprep.subr.bf16.mxu0 0
        %4265 = vmatpush1.bf16.msra.mxu0 %v4051
        %4266 = vmatprep.subr.bf16.mxu0 0
        %4267 = vmatpush1.bf16.msra.mxu0 %v4054
        %4268 = vmatprep.mubr.bf16.mxu0 %v3771
        %4269 = vmatmul.mubr.bf16.gmra.mrb[0].mxu0 %v3763
        %v4270 = vpop.f32.mrb[0].mxu0
        %v4271 = vadd.f32 0.0, %v4270
        %v4272 = vpop.f32.mrb[0].mxu0
        %v4273 = vpop.f32.mrb[0].mxu0
        %v4274 = vpop.f32.mrb[0].mxu0
        %4275 = vdwg.mxu0
        %4276 = vmatprep.subr.bf16.mxu0 0
        %4277 = vmatpush1.bf16.msra.mxu0 %v4057
        %4278 = vmatprep.subr.bf16.mxu0 0
        %4279 = vmatpush1.bf16.msra.mxu0 %v4060
        %4280 = vmatprep.subr.bf16.mxu0 0
        %4281 = vmatpush1.bf16.msra.mxu0 %v4063
        %4282 = vmatprep.subr.bf16.mxu0 0
        %4283 = vmatpush1.bf16.msra.mxu0 %v4066
        %4284 = vmatprep.subr.bf16.mxu0 0
        %4285 = vmatpush1.bf16.msra.mxu0 %v4069
        %4286 = vmatprep.subr.bf16.mxu0 0
        %4287 = vmatpush1.bf16.msra.mxu0 %v4072
        %4288 = vmatprep.subr.bf16.mxu0 0
        %4289 = vmatpush1.bf16.msra.mxu0 %v4152
        %4290 = vmatprep.subr.bf16.mxu0 0
        %4291 = vmatpush1.bf16.msra.mxu0 0
        %4292 = vmatprep.subr.bf16.mxu0 0
        %4293 = vmatpush1.bf16.msra.mxu0 0
        %4294 = vmatprep.subr.bf16.mxu0 0
        %4295 = vmatpush1.bf16.msra.mxu0 0
        %4296 = vmatprep.subr.bf16.mxu0 0
        %4297 = vmatpush1.bf16.msra.mxu0 0
        %4298 = vmatprep.subr.bf16.mxu0 0
        %4299 = vmatpush1.bf16.msra.mxu0 0
        %4300 = vmatprep.subr.bf16.mxu0 0
        %4301 = vmatpush1.bf16.msra.mxu0 0
        %4302 = vmatprep.subr.bf16.mxu0 0
        %4303 = vmatpush1.bf16.msra.mxu0 0
        %4304 = vmatprep.subr.bf16.mxu0 0
        %4305 = vmatpush1.bf16.msra.mxu0 0
        %4306 = vmatprep.subr.bf16.mxu0 0
        %4307 = vmatpush1.bf16.msra.mxu0 0
        %4308 = vmatprep.mubr.bf16.mxu0 0
        %4309 = vmatmul.mubr.bf16.gmra.mrb[0].mxu0 %v4143
        %v4310 = vpop.f32.mrb[0].mxu0
        %v4311 = vadd.f32 %v4271, %v4310
        %v4312 = vpop.f32.mrb[0].mxu0
        %v4313 = vpop.f32.mrb[0].mxu0
        %v4314 = vpop.f32.mrb[0].mxu0
        %4315 = vdwg.mxu0
        %v4316 = vadd.f32 %v3662, %v4230
        %v4317 = vadd.f32 %v3663, %v4232
        %v4318 = vadd.f32 %v3664, %v4311
        %s4319 = scalar_lea.vmem %s5, 2160
        %v4320 = vld [vmem:[%s4319] sm:$0xff]
        %v4321 = vld [vmem:[%s4319 + $0x8] sm:$0xf]
        %v4322 = vld [vmem:[%s4319 + $0xc] sm:$0xff]
        %v4323 = vld [vmem:[%s4319 + $0x14] sm:$0xf]
        %v4324 = vld [vmem:[%s4319 + $0x18] sm:$0xff]
        %v4325 = vld [vmem:[%s4319 + $0x20] sm:$0xf]
        %v4326 = vld [vmem:[%s4319 + $0x24] sm:$0xff]
        %v4327 = vld [vmem:[%s4319 + $0x2c] sm:$0xf]
        %v4328 = vld [vmem:[%s4319 + $0x30] sm:$0xff]
        %v4329 = vld [vmem:[%s4319 + $0x38] sm:$0xf]
        %v4330 = vld [vmem:[%s4319 + $0x3c] sm:$0xff]
        %v4331 = vld [vmem:[%s4319 + $0x44] sm:$0xf]
        %v4332 = vld [vmem:[%s4319 + $0x48] sm:$0xff]
        %v4333 = vld [vmem:[%s4319 + $0x50] sm:$0xf]
        %v4334 = vld [vmem:[%s4319 + $0x54] sm:$0xff]
        %v4335 = vld [vmem:[%s4319 + $0x5c] sm:$0xf]
        %v4336 = vld [vmem:[%s4319 + $0x60] sm:$0xff]
        %v4337 = vld [vmem:[%s4319 + $0x68] sm:$0xf]
        %v4338 = vld [vmem:[%s4319 + $0x6c] sm:$0xff]
        %v4339 = vld [vmem:[%s4319 + $0x74] sm:$0xf]
        %v4340 = vld [vmem:[%s4319 + $0x78] sm:$0xff]
        %v4341 = vld [vmem:[%s4319 + $0x80] sm:$0xf]
        %v4342 = vld [vmem:[%s4319 + $0x84] sm:$0xff]
        %v4343 = vld [vmem:[%s4319 + $0x8c] sm:$0xf]
        %v4344 = vld [vmem:[%s4319 + $0x90] sm:$0xff]
        %v4345 = vld [vmem:[%s4319 + $0x98] sm:$0xf]
        %v4346 = vld [vmem:[%s4319 + $0x9c] sm:$0xff]
        %v4347 = vld [vmem:[%s4319 + $0xa4] sm:$0xf]
        %v4348 = vld [vmem:[%s4319 + $0xa8] sm:$0xff]
        %v4349 = vld [vmem:[%s4319 + $0xb0] sm:$0xf]
        %v4350 = vld [vmem:[%s4319 + $0xb4] sm:$0xff]
        %v4351 = vld [vmem:[%s4319 + $0xbc] sm:$0xf]
        %v4352 = vld [vmem:[%s4319 + $0xc0] sm:$0xff]
        %v4353 = vld [vmem:[%s4319 + $0xc8] sm:$0xf]
        %v4354 = vld [vmem:[%s4319 + $0xcc] sm:$0xff]
        %v4355 = vld [vmem:[%s4319 + $0xd4] sm:$0xf]
        %v4356 = vld [vmem:[%s4319 + $0xd8] sm:$0xff]
        %v4357 = vld [vmem:[%s4319 + $0xe0] sm:$0xf]
        %v4358 = vld [vmem:[%s4319 + $0xe4] sm:$0xff]
        %v4359 = vld [vmem:[%s4319 + $0xec] sm:$0xf]
        %v4360 = vld [vmem:[%s4319 + $0xf0] sm:$0xff]
        %v4361 = vld [vmem:[%s4319 + $0xf8] sm:$0xf]
        %v4362 = vld [vmem:[%s4319 + $0xfc] sm:$0xff]
        %v4363 = vld [vmem:[%s4319 + $0x104] sm:$0xf]
        %v4364 = vld [vmem:[%s4319 + $0x108] sm:$0xff]
        %v4365 = vld [vmem:[%s4319 + $0x110] sm:$0xf]
        %v4366 = vld [vmem:[%s4319 + $0x114] sm:$0xff]
        %v4367 = vld [vmem:[%s4319 + $0x11c] sm:$0xf]
        %v4368 = vld [vmem:[%s4319 + $0x120] sm:$0xff]
        %v4369 = vld [vmem:[%s4319 + $0x128] sm:$0xf]
        %v4370 = vld [vmem:[%s4319 + $0x12c] sm:$0xff]
        %v4371 = vld [vmem:[%s4319 + $0x134] sm:$0xf]
        %v4372 = vld [vmem:[%s4319 + $0x138] sm:$0xff]
        %v4373 = vld [vmem:[%s4319 + $0x140] sm:$0xf]
        %v4374 = vld [vmem:[%s4319 + $0x144] sm:$0xff]
        %v4375 = vld [vmem:[%s4319 + $0x14c] sm:$0xf]
        %v4376 = vld [vmem:[%s4319 + $0x150] sm:$0xff]
        %v4377 = vld [vmem:[%s4319 + $0x158] sm:$0xf]
        %v4378 = vld [vmem:[%s4319 + $0x15c] sm:$0xff]
        %v4379 = vld [vmem:[%s4319 + $0x164] sm:$0xf]
        %v4380 = vld [vmem:[%s4319 + $0x168] sm:$0xff]
        %v4381 = vld [vmem:[%s4319 + $0x170] sm:$0xf]
        %v4382 = vld [vmem:[%s4319 + $0x174] sm:$0xff]
        %v4383 = vld [vmem:[%s4319 + $0x17c] sm:$0xf]
        %v4384 = vld [vmem:[%s4319 + $0x180] sm:$0xff]
        %v4385 = vld [vmem:[%s4319 + $0x188] sm:$0xf]
        %v4386 = vld [vmem:[%s4319 + $0x18c] sm:$0xff]
        %v4387 = vld [vmem:[%s4319 + $0x194] sm:$0xf]
        %v4388 = vld [vmem:[%s4319 + $0x198] sm:$0xff]
        %v4389 = vld [vmem:[%s4319 + $0x1a0] sm:$0xf]
        %v4390 = vld [vmem:[%s4319 + $0x1a4] sm:$0xff]
        %v4391 = vld [vmem:[%s4319 + $0x1ac] sm:$0xf]
        %v4392 = vld [vmem:[%s4319 + $0x1b0] sm:$0xff]
        %v4393 = vld [vmem:[%s4319 + $0x1b8] sm:$0xf]
        %v4394 = vld [vmem:[%s4319 + $0x1bc] sm:$0xff]
        %v4395 = vld [vmem:[%s4319 + $0x1c4] sm:$0xf]
        %v4396 = vld [vmem:[%s4319 + $0x1c8] sm:$0xff]
        %v4397 = vld [vmem:[%s4319 + $0x1d0] sm:$0xf]
        %v4398 = vld [vmem:[%s4319 + $0x1d4] sm:$0xff]
        %v4399 = vld [vmem:[%s4319 + $0x1dc] sm:$0xf]
        %v4400 = vld [vmem:[%s4319 + $0x1e0] sm:$0xff]
        %v4401 = vld [vmem:[%s4319 + $0x1e8] sm:$0xf]
        %v4402 = vld [vmem:[%s4319 + $0x1ec] sm:$0xff]
        %v4403 = vld [vmem:[%s4319 + $0x1f4] sm:$0xf]
        %v4404 = vld [vmem:[%s4319 + $0x1f8] sm:$0xff]
        %v4405 = vld [vmem:[%s4319 + $0x200] sm:$0xf]
        %v4406 = vld [vmem:[%s4319 + $0x204] sm:$0xff]
        %v4407 = vld [vmem:[%s4319 + $0x20c] sm:$0xf]
        %v4408 = vld [vmem:[%s4319 + $0x210] sm:$0xff]
        %v4409 = vld [vmem:[%s4319 + $0x218] sm:$0xf]
        %vm4413 = vcmask 1041408
        %v4414 = vrot.slane %v1738, 6
        %v4415 = vrot.slane %v1741, 6
        %v4416 = vsel %vm4413, %v4414, %v4415
        %v4417 = vrot.slane %v1739, 6
        %v4418 = vrot.slane %v1742, 6
        %v4419 = vsel %vm4413, %v4417, %v4418
        %v4420 = vrot.slane %v1740, 6
        %v4421 = vrot.slane %v1743, 6
        %v4422 = vsel %vm4413, %v4420, %v4421
        %v4515 = vunpack.c.l.b16 %v4320
        %v4516 = vunpack.c.h.b16 %v4320
        %v4517 = vunpack.c.l.b16 %v4321
        %v4518 = vunpack.c.l.b16 %v4322
        %v4519 = vunpack.c.h.b16 %v4322
        %v4520 = vunpack.c.l.b16 %v4323
        %v4521 = vunpack.c.l.b16 %v4324
        %v4522 = vunpack.c.h.b16 %v4324
        %v4523 = vunpack.c.l.b16 %v4325
        %v4524 = vunpack.c.l.b16 %v4326
        %v4525 = vunpack.c.h.b16 %v4326
        %v4526 = vunpack.c.l.b16 %v4327
        %v4527 = vunpack.c.l.b16 %v4328
        %v4528 = vunpack.c.h.b16 %v4328
        %v4529 = vunpack.c.l.b16 %v4329
        %v4530 = vunpack.c.l.b16 %v4330
        %v4531 = vunpack.c.h.b16 %v4330
        %v4532 = vunpack.c.l.b16 %v4331
        %v4533 = vunpack.c.l.b16 %v4332
        %v4534 = vunpack.c.h.b16 %v4332
        %v4535 = vunpack.c.l.b16 %v4333
        %v4536 = vunpack.c.l.b16 %v4334
        %v4537 = vunpack.c.h.b16 %v4334
        %v4538 = vunpack.c.l.b16 %v4335
        %v4539 = vunpack.c.l.b16 %v4336
        %v4540 = vunpack.c.h.b16 %v4336
        %v4541 = vunpack.c.l.b16 %v4337
        %v4542 = vunpack.c.l.b16 %v4338
        %v4543 = vunpack.c.h.b16 %v4338
        %v4544 = vunpack.c.l.b16 %v4339
        %v4545 = vunpack.c.l.b16 %v4340
        %v4546 = vunpack.c.h.b16 %v4340
        %v4547 = vunpack.c.l.b16 %v4341
        %v4548 = vunpack.c.l.b16 %v4342
        %v4549 = vunpack.c.h.b16 %v4342
        %v4550 = vunpack.c.l.b16 %v4343
        %v4551 = vunpack.c.l.b16 %v4344
        %v4552 = vunpack.c.h.b16 %v4344
        %v4553 = vunpack.c.l.b16 %v4345
        %v4554 = vunpack.c.l.b16 %v4346
        %v4555 = vunpack.c.h.b16 %v4346
        %v4556 = vunpack.c.l.b16 %v4347
        %v4557 = vunpack.c.l.b16 %v4348
        %v4558 = vunpack.c.h.b16 %v4348
        %v4559 = vunpack.c.l.b16 %v4349
        %v4560 = vunpack.c.l.b16 %v4350
        %v4561 = vunpack.c.h.b16 %v4350
        %v4562 = vunpack.c.l.b16 %v4351
        %v4563 = vunpack.c.l.b16 %v4352
        %v4564 = vunpack.c.h.b16 %v4352
        %v4565 = vunpack.c.l.b16 %v4353
        %v4566 = vunpack.c.l.b16 %v4354
        %v4567 = vunpack.c.h.b16 %v4354
        %v4568 = vunpack.c.l.b16 %v4355
        %v4569 = vunpack.c.l.b16 %v4356
        %v4570 = vunpack.c.h.b16 %v4356
        %v4571 = vunpack.c.l.b16 %v4357
        %v4572 = vunpack.c.l.b16 %v4358
        %v4573 = vunpack.c.h.b16 %v4358
        %v4574 = vunpack.c.l.b16 %v4359
        %v4575 = vunpack.c.l.b16 %v4360
        %v4576 = vunpack.c.h.b16 %v4360
        %v4577 = vunpack.c.l.b16 %v4361
        %v4578 = vunpack.c.l.b16 %v4362
        %v4579 = vunpack.c.h.b16 %v4362
        %v4580 = vunpack.c.l.b16 %v4363
        %v4581 = vunpack.c.l.b16 %v4364
        %v4582 = vunpack.c.h.b16 %v4364
        %v4583 = vunpack.c.l.b16 %v4365
        %v4584 = vunpack.c.l.b16 %v4366
        %v4585 = vunpack.c.h.b16 %v4366
        %v4586 = vunpack.c.l.b16 %v4367
        %v4587 = vunpack.c.l.b16 %v4368
        %v4588 = vunpack.c.h.b16 %v4368
        %v4589 = vunpack.c.l.b16 %v4369
        %v4590 = vunpack.c.l.b16 %v4370
        %v4591 = vunpack.c.h.b16 %v4370
        %v4592 = vunpack.c.l.b16 %v4371
        %v4593 = vunpack.c.l.b16 %v4372
        %v4594 = vunpack.c.h.b16 %v4372
        %v4595 = vunpack.c.l.b16 %v4373
        %v4596 = vunpack.c.l.b16 %v4374
        %v4597 = vunpack.c.h.b16 %v4374
        %v4598 = vunpack.c.l.b16 %v4375
        %v4599 = vunpack.c.l.b16 %v4376
        %v4600 = vunpack.c.h.b16 %v4376
        %v4601 = vunpack.c.l.b16 %v4377
        %v4602 = vunpack.c.l.b16 %v4378
        %v4603 = vunpack.c.h.b16 %v4378
        %v4604 = vunpack.c.l.b16 %v4379
        %v4605 = vunpack.c.l.b16 %v4380
        %v4606 = vunpack.c.h.b16 %v4380
        %v4607 = vunpack.c.l.b16 %v4381
        %v4608 = vunpack.c.l.b16 %v4382
        %v4609 = vunpack.c.h.b16 %v4382
        %v4610 = vunpack.c.l.b16 %v4383
        %v4611 = vunpack.c.l.b16 %v4384
        %v4612 = vunpack.c.h.b16 %v4384
        %v4613 = vunpack.c.l.b16 %v4385
        %v4614 = vunpack.c.l.b16 %v4386
        %v4615 = vunpack.c.h.b16 %v4386
        %v4616 = vunpack.c.l.b16 %v4387
        %v4617 = vunpack.c.l.b16 %v4388
        %v4618 = vunpack.c.h.b16 %v4388
        %v4619 = vunpack.c.l.b16 %v4389
        %v4620 = vunpack.c.l.b16 %v4390
        %v4621 = vunpack.c.h.b16 %v4390
        %v4622 = vunpack.c.l.b16 %v4391
        %v4623 = vunpack.c.l.b16 %v4392
        %v4624 = vunpack.c.h.b16 %v4392
        %v4625 = vunpack.c.l.b16 %v4393
        %v4626 = vunpack.c.l.b16 %v4394
        %v4627 = vunpack.c.h.b16 %v4394
        %v4628 = vunpack.c.l.b16 %v4395
        %v4629 = vunpack.c.l.b16 %v4396
        %v4630 = vunpack.c.h.b16 %v4396
        %v4631 = vunpack.c.l.b16 %v4397
        %v4632 = vunpack.c.l.b16 %v4398
        %v4633 = vunpack.c.h.b16 %v4398
        %v4634 = vunpack.c.l.b16 %v4399
        %v4635 = vunpack.c.l.b16 %v4400
        %v4636 = vunpack.c.h.b16 %v4400
        %v4637 = vunpack.c.l.b16 %v4401
        %v4638 = vunpack.c.l.b16 %v4402
        %v4639 = vunpack.c.h.b16 %v4402
        %v4640 = vunpack.c.l.b16 %v4403
        %v4641 = vunpack.c.l.b16 %v4404
        %v4642 = vunpack.c.h.b16 %v4404
        %v4643 = vunpack.c.l.b16 %v4405
        %v4644 = vunpack.c.l.b16 %v4406
        %v4645 = vunpack.c.h.b16 %v4406
        %v4646 = vunpack.c.l.b16 %v4407
        %v4647 = vunpack.c.l.b16 %v4408
        %v4648 = vunpack.c.h.b16 %v4408
        %v4649 = vunpack.c.l.b16 %v4409
        %v4650 = vpack.c.b16 %v4518, %v4515
        %v4651 = vpack.c.b16 %v4519, %v4516
        %v4652 = vpack.c.b16 %v4520, %v4517
        %v4653 = vpack.c.b16 %v4524, %v4521
        %v4654 = vpack.c.b16 %v4525, %v4522
        %v4655 = vpack.c.b16 %v4526, %v4523
        %v4656 = vpack.c.b16 %v4530, %v4527
        %v4657 = vpack.c.b16 %v4531, %v4528
        %v4658 = vpack.c.b16 %v4532, %v4529
        %v4659 = vpack.c.b16 %v4536, %v4533
        %v4660 = vpack.c.b16 %v4537, %v4534
        %v4661 = vpack.c.b16 %v4538, %v4535
        %v4662 = vpack.c.b16 %v4542, %v4539
        %v4663 = vpack.c.b16 %v4543, %v4540
        %v4664 = vpack.c.b16 %v4544, %v4541
        %v4665 = vpack.c.b16 %v4548, %v4545
        %v4666 = vpack.c.b16 %v4549, %v4546
        %v4667 = vpack.c.b16 %v4550, %v4547
        %v4668 = vpack.c.b16 %v4554, %v4551
        %v4669 = vpack.c.b16 %v4555, %v4552
        %v4670 = vpack.c.b16 %v4556, %v4553
        %v4671 = vpack.c.b16 %v4560, %v4557
        %v4672 = vpack.c.b16 %v4561, %v4558
        %v4673 = vpack.c.b16 %v4562, %v4559
        %v4674 = vpack.c.b16 %v4566, %v4563
        %v4675 = vpack.c.b16 %v4567, %v4564
        %v4676 = vpack.c.b16 %v4568, %v4565
        %v4677 = vpack.c.b16 %v4572, %v4569
        %v4678 = vpack.c.b16 %v4573, %v4570
        %v4679 = vpack.c.b16 %v4574, %v4571
        %v4680 = vpack.c.b16 %v4578, %v4575
        %v4681 = vpack.c.b16 %v4579, %v4576
        %v4682 = vpack.c.b16 %v4580, %v4577
        %v4683 = vpack.c.b16 %v4584, %v4581
        %v4684 = vpack.c.b16 %v4585, %v4582
        %v4685 = vpack.c.b16 %v4586, %v4583
        %v4686 = vpack.c.b16 %v4590, %v4587
        %v4687 = vpack.c.b16 %v4591, %v4588
        %v4688 = vpack.c.b16 %v4592, %v4589
        %v4689 = vpack.c.b16 %v4596, %v4593
        %v4690 = vpack.c.b16 %v4597, %v4594
        %v4691 = vpack.c.b16 %v4598, %v4595
        %v4692 = vpack.c.b16 %v4602, %v4599
        %v4693 = vpack.c.b16 %v4603, %v4600
        %v4694 = vpack.c.b16 %v4604, %v4601
        %v4695 = vpack.c.b16 %v4608, %v4605
        %v4696 = vpack.c.b16 %v4609, %v4606
        %v4697 = vpack.c.b16 %v4610, %v4607
        %v4698 = vpack.c.b16 %v4614, %v4611
        %v4699 = vpack.c.b16 %v4615, %v4612
        %v4700 = vpack.c.b16 %v4616, %v4613
        %v4701 = vpack.c.b16 %v4620, %v4617
        %v4702 = vpack.c.b16 %v4621, %v4618
        %v4703 = vpack.c.b16 %v4622, %v4619
        %v4704 = vpack.c.b16 %v4626, %v4623
        %v4705 = vpack.c.b16 %v4627, %v4624
        %v4706 = vpack.c.b16 %v4628, %v4625
        %v4707 = vpack.c.b16 %v4632, %v4629
        %v4708 = vpack.c.b16 %v4633, %v4630
        %v4709 = vpack.c.b16 %v4634, %v4631
        %v4710 = vpack.c.b16 %v4638, %v4635
        %v4711 = vpack.c.b16 %v4639, %v4636
        %v4712 = vpack.c.b16 %v4640, %v4637
        %v4713 = vpack.c.b16 %v4644, %v4641
        %v4714 = vpack.c.b16 %v4645, %v4642
        %v4715 = vpack.c.b16 %v4646, %v4643
        %v4716 = vpack.c.b16 %v4647, %v4647
        %v4717 = vpack.c.b16 %v4648, %v4648
        %v4718 = vpack.c.b16 %v4649, %v4649
        %v4786 = vsel %vm2311, %v4422, 0
        %v4789 = vsel %vm470, %v4716, 0
        %v4792 = vsel %vm470, %v4717, 0
        %v4795 = vsel %vm470, %v4718, 0
        %4797 = vmatprep.subr.bf16.mxu0 %v4651
        %4798 = vmatpush1.bf16.msra.mxu0 %v4650
        %4799 = vmatprep.subr.bf16.mxu0 %v4654
        %4800 = vmatpush1.bf16.msra.mxu0 %v4653
        %4801 = vmatprep.subr.bf16.mxu0 %v4657
        %4802 = vmatpush1.bf16.msra.mxu0 %v4656
        %4803 = vmatprep.subr.bf16.mxu0 %v4660
        %4804 = vmatpush1.bf16.msra.mxu0 %v4659
        %4805 = vmatprep.subr.bf16.mxu0 %v4663
        %4806 = vmatpush1.bf16.msra.mxu0 %v4662
        %4807 = vmatprep.subr.bf16.mxu0 %v4666
        %4808 = vmatpush1.bf16.msra.mxu0 %v4665
        %4809 = vmatprep.subr.bf16.mxu0 %v4669
        %4810 = vmatpush1.bf16.msra.mxu0 %v4668
        %4811 = vmatprep.subr.bf16.mxu0 %v4672
        %4812 = vmatpush1.bf16.msra.mxu0 %v4671
        %4813 = vmatprep.subr.bf16.mxu0 %v4675
        %4814 = vmatpush1.bf16.msra.mxu0 %v4674
        %4815 = vmatprep.subr.bf16.mxu0 %v4678
        %4816 = vmatpush1.bf16.msra.mxu0 %v4677
        %4817 = vmatprep.subr.bf16.mxu0 %v4681
        %4818 = vmatpush1.bf16.msra.mxu0 %v4680
        %4819 = vmatprep.subr.bf16.mxu0 %v4684
        %4820 = vmatpush1.bf16.msra.mxu0 %v4683
        %4821 = vmatprep.subr.bf16.mxu0 %v4687
        %4822 = vmatpush1.bf16.msra.mxu0 %v4686
        %4823 = vmatprep.subr.bf16.mxu0 %v4690
        %4824 = vmatpush1.bf16.msra.mxu0 %v4689
        %4825 = vmatprep.subr.bf16.mxu0 %v4693
        %4826 = vmatpush1.bf16.msra.mxu0 %v4692
        %4827 = vmatprep.subr.bf16.mxu0 %v4696
        %4828 = vmatpush1.bf16.msra.mxu0 %v4695
        %4829 = vmatprep.mubr.bf16.mxu0 %v4419
        %4830 = vmatmul.mubr.bf16.gmra.mrb[0].mxu0 %v4416
        %v4831 = vpop.f32.mrb[0].mxu0
        %v4832 = vadd.f32 0.0, %v4831
        %v4833 = vpop.f32.mrb[0].mxu0
        %v4834 = vadd.f32 0.0, %v4833
        %v4835 = vpop.f32.mrb[0].mxu0
        %v4836 = vpop.f32.mrb[0].mxu0
        %4837 = vdwg.mxu0
        %4838 = vmatprep.subr.bf16.mxu0 %v4699
        %4839 = vmatpush1.bf16.msra.mxu0 %v4698
        %4840 = vmatprep.subr.bf16.mxu0 %v4702
        %4841 = vmatpush1.bf16.msra.mxu0 %v4701
        %4842 = vmatprep.subr.bf16.mxu0 %v4705
        %4843 = vmatpush1.bf16.msra.mxu0 %v4704
        %4844 = vmatprep.subr.bf16.mxu0 %v4708
        %4845 = vmatpush1.bf16.msra.mxu0 %v4707
        %4846 = vmatprep.subr.bf16.mxu0 %v4711
        %4847 = vmatpush1.bf16.msra.mxu0 %v4710
        %4848 = vmatprep.subr.bf16.mxu0 %v4714
        %4849 = vmatpush1.bf16.msra.mxu0 %v4713
        %4850 = vmatprep.subr.bf16.mxu0 %v4792
        %4851 = vmatpush1.bf16.msra.mxu0 %v4789
        %4852 = vmatprep.subr.bf16.mxu0 0
        %4853 = vmatpush1.bf16.msra.mxu0 0
        %4854 = vmatprep.subr.bf16.mxu0 0
        %4855 = vmatpush1.bf16.msra.mxu0 0
        %4856 = vmatprep.subr.bf16.mxu0 0
        %4857 = vmatpush1.bf16.msra.mxu0 0
        %4858 = vmatprep.subr.bf16.mxu0 0
        %4859 = vmatpush1.bf16.msra.mxu0 0
        %4860 = vmatprep.subr.bf16.mxu0 0
        %4861 = vmatpush1.bf16.msra.mxu0 0
        %4862 = vmatprep.subr.bf16.mxu0 0
        %4863 = vmatpush1.bf16.msra.mxu0 0
        %4864 = vmatprep.subr.bf16.mxu0 0
        %4865 = vmatpush1.bf16.msra.mxu0 0
        %4866 = vmatprep.subr.bf16.mxu0 0
        %4867 = vmatpush1.bf16.msra.mxu0 0
        %4868 = vmatprep.subr.bf16.mxu0 0
        %4869 = vmatpush1.bf16.msra.mxu0 0
        %4870 = vmatprep.mubr.bf16.mxu0 0
        %4871 = vmatmul.mubr.bf16.gmra.mrb[0].mxu0 %v4786
        %v4872 = vpop.f32.mrb[0].mxu0
        %v4873 = vadd.f32 %v4832, %v4872
        %v4874 = vpop.f32.mrb[0].mxu0
        %v4875 = vadd.f32 %v4834, %v4874
        %v4876 = vpop.f32.mrb[0].mxu0
        %v4877 = vpop.f32.mrb[0].mxu0
        %4878 = vdwg.mxu0
        %4879 = vmatprep.subr.bf16.mxu0 0
        %4880 = vmatpush1.bf16.msra.mxu0 %v4652
        %4881 = vmatprep.subr.bf16.mxu0 0
        %4882 = vmatpush1.bf16.msra.mxu0 %v4655
        %4883 = vmatprep.subr.bf16.mxu0 0
        %4884 = vmatpush1.bf16.msra.mxu0 %v4658
        %4885 = vmatprep.subr.bf16.mxu0 0
        %4886 = vmatpush1.bf16.msra.mxu0 %v4661
        %4887 = vmatprep.subr.bf16.mxu0 0
        %4888 = vmatpush1.bf16.msra.mxu0 %v4664
        %4889 = vmatprep.subr.bf16.mxu0 0
        %4890 = vmatpush1.bf16.msra.mxu0 %v4667
        %4891 = vmatprep.subr.bf16.mxu0 0
        %4892 = vmatpush1.bf16.msra.mxu0 %v4670
        %4893 = vmatprep.subr.bf16.mxu0 0
        %4894 = vmatpush1.bf16.msra.mxu0 %v4673
        %4895 = vmatprep.subr.bf16.mxu0 0
        %4896 = vmatpush1.bf16.msra.mxu0 %v4676
        %4897 = vmatprep.subr.bf16.mxu0 0
        %4898 = vmatpush1.bf16.msra.mxu0 %v4679
        %4899 = vmatprep.subr.bf16.mxu0 0
        %4900 = vmatpush1.bf16.msra.mxu0 %v4682
        %4901 = vmatprep.subr.bf16.mxu0 0
        %4902 = vmatpush1.bf16.msra.mxu0 %v4685
        %4903 = vmatprep.subr.bf16.mxu0 0
        %4904 = vmatpush1.bf16.msra.mxu0 %v4688
        %4905 = vmatprep.subr.bf16.mxu0 0
        %4906 = vmatpush1.bf16.msra.mxu0 %v4691
        %4907 = vmatprep.subr.bf16.mxu0 0
        %4908 = vmatpush1.bf16.msra.mxu0 %v4694
        %4909 = vmatprep.subr.bf16.mxu0 0
        %4910 = vmatpush1.bf16.msra.mxu0 %v4697
        %4911 = vmatprep.mubr.bf16.mxu0 %v4419
        %4912 = vmatmul.mubr.bf16.gmra.mrb[0].mxu0 %v4416
        %v4913 = vpop.f32.mrb[0].mxu0
        %v4914 = vadd.f32 0.0, %v4913
        %v4915 = vpop.f32.mrb[0].mxu0
        %v4916 = vpop.f32.mrb[0].mxu0
        %v4917 = vpop.f32.mrb[0].mxu0
        %4918 = vdwg.mxu0
        %4919 = vmatprep.subr.bf16.mxu0 0
        %4920 = vmatpush1.bf16.msra.mxu0 %v4700
        %4921 = vmatprep.subr.bf16.mxu0 0
        %4922 = vmatpush1.bf16.msra.mxu0 %v4703
        %4923 = vmatprep.subr.bf16.mxu0 0
        %4924 = vmatpush1.bf16.msra.mxu0 %v4706
        %4925 = vmatprep.subr.bf16.mxu0 0
        %4926 = vmatpush1.bf16.msra.mxu0 %v4709
        %4927 = vmatprep.subr.bf16.mxu0 0
        %4928 = vmatpush1.bf16.msra.mxu0 %v4712
        %4929 = vmatprep.subr.bf16.mxu0 0
        %4930 = vmatpush1.bf16.msra.mxu0 %v4715
        %4931 = vmatprep.subr.bf16.mxu0 0
        %4932 = vmatpush1.bf16.msra.mxu0 %v4795
        %4933 = vmatprep.subr.bf16.mxu0 0
        %4934 = vmatpush1.bf16.msra.mxu0 0
        %4935 = vmatprep.subr.bf16.mxu0 0
        %4936 = vmatpush1.bf16.msra.mxu0 0
        %4937 = vmatprep.subr.bf16.mxu0 0
        %4938 = vmatpush1.bf16.msra.mxu0 0
        %4939 = vmatprep.subr.bf16.mxu0 0
        %4940 = vmatpush1.bf16.msra.mxu0 0
        %4941 = vmatprep.subr.bf16.mxu0 0
        %4942 = vmatpush1.bf16.msra.mxu0 0
        %4943 = vmatprep.subr.bf16.mxu0 0
        %4944 = vmatpush1.bf16.msra.mxu0 0
        %4945 = vmatprep.subr.bf16.mxu0 0
        %4946 = vmatpush1.bf16.msra.mxu0 0
        %4947 = vmatprep.subr.bf16.mxu0 0
        %4948 = vmatpush1.bf16.msra.mxu0 0
        %4949 = vmatprep.subr.bf16.mxu0 0
        %4950 = vmatpush1.bf16.msra.mxu0 0
        %4951 = vmatprep.mubr.bf16.mxu0 0
        %4952 = vmatmul.mubr.bf16.gmra.mrb[0].mxu0 %v4786
        %v4953 = vpop.f32.mrb[0].mxu0
        %v4954 = vadd.f32 %v4914, %v4953
        %v4955 = vpop.f32.mrb[0].mxu0
        %v4956 = vpop.f32.mrb[0].mxu0
        %v4957 = vpop.f32.mrb[0].mxu0
        %4958 = vdwg.mxu0
        %v4959 = vadd.f32 %v4316, %v4873
        %v4960 = vadd.f32 %v4317, %v4875
        %v4961 = vadd.f32 %v4318, %v4954
        %v4962 = vld [vmem:[%s6] sm:$0x7]
        %v4964 = vlaneseq
        %v4965 = vshrl.u32 %v4964, 7
        %v4966 = vsub.s32 0, %v4965
        %v4967 = vrot.slane %v4962, %v4966
        %v4968 = vlaneseq
        %v4969 = vshrl.u32 %v4968, 7
        %v4970 = vsub.s32 1, %v4969
        %v4971 = vrot.slane %v4962, %v4970
        %v4972 = vlaneseq
        %v4973 = vshrl.u32 %v4972, 7
        %v4974 = vsub.s32 2, %v4973
        %v4975 = vrot.slane %v4962, %v4974
        %v4979 = vadd.f32 %v4959, %v4967
        %v4980 = vadd.f32 %v4960, %v4971
        %v4981 = vadd.f32 %v4961, %v4975
        %v4982 = vmax.f32 %v4979, 0.0
        %v4983 = vmax.f32 %v4980, 0.0
        %v4984 = vmax.f32 %v4981, 0.0
        %v4985 = vpack.c.bf16 %v4982, %v4982
        %v4986 = vpack.c.bf16 %v4983, %v4983
        %v4987 = vpack.c.bf16 %v4984, %v4984
        %v4988 = vld [vmem:[%s7] sm:$0xf]
        %v4989 = vld [vmem:[%s7 + $0x4] sm:$0x1]
        %v4992 = vunpack.c.l.b16 %v4988
        %v4993 = vunpack.c.l.b16 %v4989
        %v4994 = vpack.c.b16 %v4993, %v4992
        %vm4995 = vcmask 56320
        %v4997 = vsel %vm4995, %v4994, 0
        %vm4999 = vcmask 1042432
        %v5000 = vsel %vm4999, 4294967295, 65535
        %v5001 = vsel %vm470, %v5000, 0
        %v5003 = vand.u32 %v4985, %v5001
        %v5006 = vand.u32 %v4986, %v5001
        %v5009 = vand.u32 %v4987, %v5001
        %5011 = vmatprep.subr.bf16.mxu0 %v5006
        %5012 = vmatpush1.bf16.msra.mxu0 %v5003
        %5013 = vmatprep.subr.bf16.mxu0 0
        %5014 = vmatpush1.bf16.msra.mxu0 0
        %5015 = vmatprep.subr.bf16.mxu0 0
        %5016 = vmatpush1.bf16.msra.mxu0 0
        %5017 = vmatprep.subr.bf16.mxu0 0
        %5018 = vmatpush1.bf16.msra.mxu0 0
        %5019 = vmatprep.subr.bf16.mxu0 0
        %5020 = vmatpush1.bf16.msra.mxu0 0
        %5021 = vmatprep.subr.bf16.mxu0 0
        %5022 = vmatpush1.bf16.msra.mxu0 0
        %5023 = vmatprep.subr.bf16.mxu0 0
        %5024 = vmatpush1.bf16.msra.mxu0 0
        %5025 = vmatprep.subr.bf16.mxu0 0
        %5026 = vmatpush1.bf16.msra.mxu0 0
        %5027 = vmatprep.subr.bf16.mxu0 0
        %5028 = vmatpush1.bf16.msra.mxu0 0
        %5029 = vmatprep.subr.bf16.mxu0 0
        %5030 = vmatpush1.bf16.msra.mxu0 0
        %5031 = vmatprep.subr.bf16.mxu0 0
        %5032 = vmatpush1.bf16.msra.mxu0 0
        %5033 = vmatprep.subr.bf16.mxu0 0
        %5034 = vmatpush1.bf16.msra.mxu0 0
        %5035 = vmatprep.subr.bf16.mxu0 0
        %5036 = vmatpush1.bf16.msra.mxu0 0
        %5037 = vmatprep.subr.bf16.mxu0 0
        %5038 = vmatpush1.bf16.msra.mxu0 0
        %5039 = vmatprep.subr.bf16.mxu0 0
        %5040 = vmatpush1.bf16.msra.mxu0 0
        %5041 = vmatprep.subr.bf16.mxu0 0
        %5042 = vmatpush1.bf16.msra.mxu0 0
        %5043 = vmatprep.mubr.bf16.mxu0 0
        %5044 = vmatmul.mubr.bf16.gmra.mrb[0].mxu0 %v4997
        %v5045 = vpop.f32.mrb[0].mxu0
        %v5046 = vadd.f32 0.0, %v5045
        %v5047 = vpop.f32.mrb[0].mxu0
        %v5048 = vadd.f32 0.0, %v5047
        %v5049 = vpop.f32.mrb[0].mxu0
        %v5050 = vadd.f32 0.0, %v5049
        %v5051 = vpop.f32.mrb[0].mxu0
        %v5052 = vadd.f32 0.0, %v5051
        %5053 = vdwg.mxu0
        %5054 = vmatprep.subr.bf16.mxu0 0
        %5055 = vmatpush1.bf16.msra.mxu0 %v5009
        %5056 = vmatprep.subr.bf16.mxu0 0
        %5057 = vmatpush1.bf16.msra.mxu0 0
        %5058 = vmatprep.subr.bf16.mxu0 0
        %5059 = vmatpush1.bf16.msra.mxu0 0
        %5060 = vmatprep.subr.bf16.mxu0 0
        %5061 = vmatpush1.bf16.msra.mxu0 0
        %5062 = vmatprep.subr.bf16.mxu0 0
        %5063 = vmatpush1.bf16.msra.mxu0 0
        %5064 = vmatprep.subr.bf16.mxu0 0
        %5065 = vmatpush1.bf16.msra.mxu0 0
        %5066 = vmatprep.subr.bf16.mxu0 0
        %5067 = vmatpush1.bf16.msra.mxu0 0
        %5068 = vmatprep.subr.bf16.mxu0 0
        %5069 = vmatpush1.bf16.msra.mxu0 0
        %5070 = vmatprep.subr.bf16.mxu0 0
        %5071 = vmatpush1.bf16.msra.mxu0 0
        %5072 = vmatprep.subr.bf16.mxu0 0
        %5073 = vmatpush1.bf16.msra.mxu0 0
        %5074 = vmatprep.subr.bf16.mxu0 0
        %5075 = vmatpush1.bf16.msra.mxu0 0
        %5076 = vmatprep.subr.bf16.mxu0 0
        %5077 = vmatpush1.bf16.msra.mxu0 0
        %5078 = vmatprep.subr.bf16.mxu0 0
        %5079 = vmatpush1.bf16.msra.mxu0 0
        %5080 = vmatprep.subr.bf16.mxu0 0
        %5081 = vmatpush1.bf16.msra.mxu0 0
        %5082 = vmatprep.subr.bf16.mxu0 0
        %5083 = vmatpush1.bf16.msra.mxu0 0
        %5084 = vmatprep.subr.bf16.mxu0 0
        %5085 = vmatpush1.bf16.msra.mxu0 0
        %5086 = vmatprep.mubr.bf16.mxu0 0
        %5087 = vmatmul.mubr.bf16.gmra.mrb[0].mxu0 %v4997
        %v5088 = vpop.f32.mrb[0].mxu0
        %v5089 = vadd.f32 0.0, %v5088
        %v5090 = vpop.f32.mrb[0].mxu0
        %v5091 = vpop.f32.mrb[0].mxu0
        %v5092 = vadd.f32 0.0, %v5091
        %v5093 = vpop.f32.mrb[0].mxu0
        %5094 = vdwg.mxu0
        %v5095 = vpack.c.bf16 %v5050, %v5046
        %v5096 = vpack.c.bf16 %v5052, %v5048
        %v5097 = vpack.c.bf16 %v5092, %v5089
        %v5098 = vld [vmem:[%s8] sm:$0xf]
        %v5099 = vld [vmem:[%s8 + $0x4] sm:$0xf]
        %v5100 = vld [vmem:[%s8 + $0x8] sm:$0xf]
        %v5101 = vld [vmem:[%s8 + $0xc] sm:$0xf]
        %v5102 = vld [vmem:[%s8 + $0x10] sm:$0xf]
        %v5103 = vld [vmem:[%s8 + $0x14] sm:$0xf]
        %v5104 = vld [vmem:[%s8 + $0x18] sm:$0xf]
        %v5105 = vld [vmem:[%s8 + $0x1c] sm:$0xf]
        %v5106 = vld [vmem:[%s8 + $0x20] sm:$0xf]
        %v5107 = vld [vmem:[%s8 + $0x24] sm:$0xf]
        %v5108 = vld [vmem:[%s8 + $0x28] sm:$0xf]
        %v5109 = vld [vmem:[%s8 + $0x2c] sm:$0xf]
        %v5110 = vld [vmem:[%s8 + $0x30] sm:$0xf]
        %v5111 = vld [vmem:[%s8 + $0x34] sm:$0xf]
        %v5112 = vld [vmem:[%s8 + $0x38] sm:$0xf]
        %v5113 = vld [vmem:[%s8 + $0x3c] sm:$0xf]
        %v5114 = vld [vmem:[%s8 + $0x40] sm:$0xf]
        %v5115 = vld [vmem:[%s8 + $0x44] sm:$0xf]
        %v5116 = vld [vmem:[%s8 + $0x48] sm:$0xf]
        %v5117 = vld [vmem:[%s8 + $0x4c] sm:$0xf]
        %v5118 = vld [vmem:[%s8 + $0x50] sm:$0xf]
        %v5119 = vld [vmem:[%s8 + $0x54] sm:$0xf]
        %v5120 = vld [vmem:[%s8 + $0x58] sm:$0xf]
        %v5121 = vld [vmem:[%s8 + $0x5c] sm:$0xf]
        %v5122 = vld [vmem:[%s8 + $0x60] sm:$0xf]
        %v5123 = vld [vmem:[%s8 + $0x64] sm:$0xf]
        %v5124 = vld [vmem:[%s8 + $0x68] sm:$0xf]
        %v5125 = vld [vmem:[%s8 + $0x6c] sm:$0xf]
        %v5126 = vld [vmem:[%s8 + $0x70] sm:$0xf]
        %v5127 = vld [vmem:[%s8 + $0x74] sm:$0xf]
        %v5128 = vld [vmem:[%s8 + $0x78] sm:$0xf]
        %v5129 = vld [vmem:[%s8 + $0x7c] sm:$0xf]
        %v5130 = vld [vmem:[%s8 + $0x80] sm:$0xf]
        %v5131 = vld [vmem:[%s8 + $0x84] sm:$0xf]
        %v5132 = vld [vmem:[%s8 + $0x88] sm:$0xf]
        %v5133 = vld [vmem:[%s8 + $0x8c] sm:$0xf]
        %v5134 = vld [vmem:[%s8 + $0x90] sm:$0xf]
        %v5135 = vld [vmem:[%s8 + $0x94] sm:$0xf]
        %v5136 = vld [vmem:[%s8 + $0x98] sm:$0xf]
        %s5137 = scalar_lea.vmem %s8, 156
        %v5138 = vld [vmem:[%s5137] sm:$0xf]
        %v5139 = vld [vmem:[%s5137 + $0x4] sm:$0xf]
        %v5140 = vld [vmem:[%s5137 + $0x8] sm:$0xf]
        %v5141 = vld [vmem:[%s5137 + $0xc] sm:$0xf]
        %v5142 = vld [vmem:[%s5137 + $0x10] sm:$0xf]
        %v5143 = vld [vmem:[%s5137 + $0x14] sm:$0xf]
        %v5144 = vld [vmem:[%s5137 + $0x18] sm:$0xf]
        %v5145 = vld [vmem:[%s5137 + $0x1c] sm:$0xf]
        %v5146 = vld [vmem:[%s5137 + $0x20] sm:$0xf]
        %v5147 = vld [vmem:[%s5137 + $0x24] sm:$0xf]
        %v5148 = vld [vmem:[%s5137 + $0x28] sm:$0xf]
        %v5149 = vld [vmem:[%s5137 + $0x2c] sm:$0xf]
        %v5150 = vld [vmem:[%s5137 + $0x30] sm:$0xf]
        %v5151 = vld [vmem:[%s5137 + $0x34] sm:$0xf]
        %v5152 = vld [vmem:[%s5137 + $0x38] sm:$0xf]
        %v5153 = vld [vmem:[%s5137 + $0x3c] sm:$0xf]
        %v5154 = vld [vmem:[%s5137 + $0x40] sm:$0xf]
        %v5155 = vld [vmem:[%s5137 + $0x44] sm:$0xf]
        %v5156 = vld [vmem:[%s5137 + $0x48] sm:$0xf]
        %v5157 = vld [vmem:[%s5137 + $0x4c] sm:$0xf]
        %v5158 = vld [vmem:[%s5137 + $0x50] sm:$0xf]
        %v5159 = vld [vmem:[%s5137 + $0x54] sm:$0xf]
        %v5160 = vld [vmem:[%s5137 + $0x58] sm:$0xf]
        %v5161 = vld [vmem:[%s5137 + $0x5c] sm:$0xf]
        %v5162 = vld [vmem:[%s5137 + $0x60] sm:$0xf]
        %v5163 = vld [vmem:[%s5137 + $0x64] sm:$0xf]
        %v5164 = vld [vmem:[%s5137 + $0x68] sm:$0xf]
        %v5165 = vld [vmem:[%s5137 + $0x6c] sm:$0xf]
        %v5166 = vld [vmem:[%s5137 + $0x70] sm:$0xf]
        %v5167 = vld [vmem:[%s5137 + $0x74] sm:$0xf]
        %v5168 = vld [vmem:[%s5137 + $0x78] sm:$0xf]
        %v5169 = vld [vmem:[%s5137 + $0x7c] sm:$0xf]
        %v5170 = vld [vmem:[%s5137 + $0x80] sm:$0xf]
        %v5171 = vld [vmem:[%s5137 + $0x84] sm:$0xf]
        %v5172 = vld [vmem:[%s5137 + $0x88] sm:$0xf]
        %v5173 = vld [vmem:[%s5137 + $0x8c] sm:$0xf]
        %v5174 = vld [vmem:[%s5137 + $0x90] sm:$0xf]
        %v5175 = vld [vmem:[%s5137 + $0x94] sm:$0xf]
        %v5176 = vld [vmem:[%s5137 + $0x98] sm:$0xf]
        %v5180 = vrot.slane %v5095, 1
        %v5181 = vrot.slane %v5096, 1
        %v5182 = vrot.slane %v5097, 1
        %v5224 = vunpack.c.l.b16 %v5138
        %v5225 = vunpack.c.l.b16 %v5139
        %v5226 = vunpack.c.l.b16 %v5140
        %v5227 = vunpack.c.l.b16 %v5141
        %v5228 = vunpack.c.l.b16 %v5142
        %v5229 = vunpack.c.l.b16 %v5143
        %v5230 = vunpack.c.l.b16 %v5144
        %v5231 = vunpack.c.l.b16 %v5145
        %v5232 = vunpack.c.l.b16 %v5146
        %v5233 = vunpack.c.l.b16 %v5147
        %v5234 = vunpack.c.l.b16 %v5148
        %v5235 = vunpack.c.l.b16 %v5149
        %v5236 = vunpack.c.l.b16 %v5150
        %v5237 = vunpack.c.l.b16 %v5151
        %v5238 = vunpack.c.l.b16 %v5152
        %v5239 = vunpack.c.l.b16 %v5153
        %v5240 = vunpack.c.l.b16 %v5154
        %v5241 = vunpack.c.l.b16 %v5155
        %v5242 = vunpack.c.l.b16 %v5156
        %v5243 = vunpack.c.l.b16 %v5157
        %v5244 = vunpack.c.l.b16 %v5158
        %v5245 = vunpack.c.l.b16 %v5159
        %v5246 = vunpack.c.l.b16 %v5160
        %v5247 = vunpack.c.l.b16 %v5161
        %v5248 = vunpack.c.l.b16 %v5162
        %v5249 = vunpack.c.l.b16 %v5163
        %v5250 = vunpack.c.l.b16 %v5164
        %v5251 = vunpack.c.l.b16 %v5165
        %v5252 = vunpack.c.l.b16 %v5166
        %v5253 = vunpack.c.l.b16 %v5167
        %v5254 = vunpack.c.l.b16 %v5168
        %v5255 = vunpack.c.l.b16 %v5169
        %v5256 = vunpack.c.l.b16 %v5170
        %v5257 = vunpack.c.l.b16 %v5171
        %v5258 = vunpack.c.l.b16 %v5172
        %v5259 = vunpack.c.l.b16 %v5173
        %v5260 = vunpack.c.l.b16 %v5174
        %v5261 = vunpack.c.l.b16 %v5175
        %v5262 = vunpack.c.l.b16 %v5176
        %v5263 = vpack.c.b16 %v5225, %v5224
        %v5264 = vpack.c.b16 %v5227, %v5226
        %v5265 = vpack.c.b16 %v5229, %v5228
        %v5266 = vpack.c.b16 %v5231, %v5230
        %v5267 = vpack.c.b16 %v5233, %v5232
        %v5268 = vpack.c.b16 %v5235, %v5234
        %v5269 = vpack.c.b16 %v5237, %v5236
        %v5270 = vpack.c.b16 %v5239, %v5238
        %v5271 = vpack.c.b16 %v5241, %v5240
        %v5272 = vpack.c.b16 %v5243, %v5242
        %v5273 = vpack.c.b16 %v5245, %v5244
        %v5274 = vpack.c.b16 %v5247, %v5246
        %v5275 = vpack.c.b16 %v5249, %v5248
        %v5276 = vpack.c.b16 %v5251, %v5250
        %v5277 = vpack.c.b16 %v5253, %v5252
        %v5278 = vpack.c.b16 %v5255, %v5254
        %v5279 = vpack.c.b16 %v5257, %v5256
        %v5280 = vpack.c.b16 %v5259, %v5258
        %v5281 = vpack.c.b16 %v5261, %v5260
        %v5282 = vpack.c.b16 %v5262, %v5262
        %vm5302 = vcmask 457728
        %v5304 = vsel %vm5302, %v5182, 0
        %v5307 = vsel %vm470, %v5282, 0
        %5309 = vmatprep.subr.bf16.mxu0 0
        %5310 = vmatpush1.bf16.msra.mxu0 %v5263
        %5311 = vmatprep.subr.bf16.mxu0 0
        %5312 = vmatpush1.bf16.msra.mxu0 %v5264
        %5313 = vmatprep.subr.bf16.mxu0 0
        %5314 = vmatpush1.bf16.msra.mxu0 %v5265
        %5315 = vmatprep.subr.bf16.mxu0 0
        %5316 = vmatpush1.bf16.msra.mxu0 %v5266
        %5317 = vmatprep.subr.bf16.mxu0 0
        %5318 = vmatpush1.bf16.msra.mxu0 %v5267
        %5319 = vmatprep.subr.bf16.mxu0 0
        %5320 = vmatpush1.bf16.msra.mxu0 %v5268
        %5321 = vmatprep.subr.bf16.mxu0 0
        %5322 = vmatpush1.bf16.msra.mxu0 %v5269
        %5323 = vmatprep.subr.bf16.mxu0 0
        %5324 = vmatpush1.bf16.msra.mxu0 %v5270
        %5325 = vmatprep.subr.bf16.mxu0 0
        %5326 = vmatpush1.bf16.msra.mxu0 %v5271
        %5327 = vmatprep.subr.bf16.mxu0 0
        %5328 = vmatpush1.bf16.msra.mxu0 %v5272
        %5329 = vmatprep.subr.bf16.mxu0 0
        %5330 = vmatpush1.bf16.msra.mxu0 %v5273
        %5331 = vmatprep.subr.bf16.mxu0 0
        %5332 = vmatpush1.bf16.msra.mxu0 %v5274
        %5333 = vmatprep.subr.bf16.mxu0 0
        %5334 = vmatpush1.bf16.msra.mxu0 %v5275
        %5335 = vmatprep.subr.bf16.mxu0 0
        %5336 = vmatpush1.bf16.msra.mxu0 %v5276
        %5337 = vmatprep.subr.bf16.mxu0 0
        %5338 = vmatpush1.bf16.msra.mxu0 %v5277
        %5339 = vmatprep.subr.bf16.mxu0 0
        %5340 = vmatpush1.bf16.msra.mxu0 %v5278
        %5341 = vmatprep.mubr.bf16.mxu0 %v5181
        %5342 = vmatmul.mubr.bf16.gmra.mrb[0].mxu0 %v5180
        %v5343 = vpop.f32.mrb[0].mxu0
        %v5344 = vadd.f32 0.0, %v5343
        %v5345 = vpop.f32.mrb[0].mxu0
        %v5346 = vpop.f32.mrb[0].mxu0
        %v5347 = vpop.f32.mrb[0].mxu0
        %5348 = vdwg.mxu0
        %5349 = vmatprep.subr.bf16.mxu0 0
        %5350 = vmatpush1.bf16.msra.mxu0 %v5279
        %5351 = vmatprep.subr.bf16.mxu0 0
        %5352 = vmatpush1.bf16.msra.mxu0 %v5280
        %5353 = vmatprep.subr.bf16.mxu0 0
        %5354 = vmatpush1.bf16.msra.mxu0 %v5281
        %5355 = vmatprep.subr.bf16.mxu0 0
        %5356 = vmatpush1.bf16.msra.mxu0 %v5307
        %5357 = vmatprep.subr.bf16.mxu0 0
        %5358 = vmatpush1.bf16.msra.mxu0 0
        %5359 = vmatprep.subr.bf16.mxu0 0
        %5360 = vmatpush1.bf16.msra.mxu0 0
        %5361 = vmatprep.subr.bf16.mxu0 0
        %5362 = vmatpush1.bf16.msra.mxu0 0
        %5363 = vmatprep.subr.bf16.mxu0 0
        %5364 = vmatpush1.bf16.msra.mxu0 0
        %5365 = vmatprep.subr.bf16.mxu0 0
        %5366 = vmatpush1.bf16.msra.mxu0 0
        %5367 = vmatprep.subr.bf16.mxu0 0
        %5368 = vmatpush1.bf16.msra.mxu0 0
        %5369 = vmatprep.subr.bf16.mxu0 0
        %5370 = vmatpush1.bf16.msra.mxu0 0
        %5371 = vmatprep.subr.bf16.mxu0 0
        %5372 = vmatpush1.bf16.msra.mxu0 0
        %5373 = vmatprep.subr.bf16.mxu0 0
        %5374 = vmatpush1.bf16.msra.mxu0 0
        %5375 = vmatprep.subr.bf16.mxu0 0
        %5376 = vmatpush1.bf16.msra.mxu0 0
        %5377 = vmatprep.subr.bf16.mxu0 0
        %5378 = vmatpush1.bf16.msra.mxu0 0
        %5379 = vmatprep.subr.bf16.mxu0 0
        %5380 = vmatpush1.bf16.msra.mxu0 0
        %5381 = vmatprep.mubr.bf16.mxu0 0
        %5382 = vmatmul.mubr.bf16.gmra.mrb[0].mxu0 %v5304
        %v5383 = vpop.f32.mrb[0].mxu0
        %v5384 = vadd.f32 %v5344, %v5383
        %v5385 = vpop.f32.mrb[0].mxu0
        %v5386 = vpop.f32.mrb[0].mxu0
        %v5387 = vpop.f32.mrb[0].mxu0
        %5388 = vdwg.mxu0
        %v5428 = vunpack.c.l.b16 %v5098
        %v5429 = vunpack.c.l.b16 %v5099
        %v5430 = vunpack.c.l.b16 %v5100
        %v5431 = vunpack.c.l.b16 %v5101
        %v5432 = vunpack.c.l.b16 %v5102
        %v5433 = vunpack.c.l.b16 %v5103
        %v5434 = vunpack.c.l.b16 %v5104
        %v5435 = vunpack.c.l.b16 %v5105
        %v5436 = vunpack.c.l.b16 %v5106
        %v5437 = vunpack.c.l.b16 %v5107
        %v5438 = vunpack.c.l.b16 %v5108
        %v5439 = vunpack.c.l.b16 %v5109
        %v5440 = vunpack.c.l.b16 %v5110
        %v5441 = vunpack.c.l.b16 %v5111
        %v5442 = vunpack.c.l.b16 %v5112
        %v5443 = vunpack.c.l.b16 %v5113
        %v5444 = vunpack.c.l.b16 %v5114
        %v5445 = vunpack.c.l.b16 %v5115
        %v5446 = vunpack.c.l.b16 %v5116
        %v5447 = vunpack.c.l.b16 %v5117
        %v5448 = vunpack.c.l.b16 %v5118
        %v5449 = vunpack.c.l.b16 %v5119
        %v5450 = vunpack.c.l.b16 %v5120
        %v5451 = vunpack.c.l.b16 %v5121
        %v5452 = vunpack.c.l.b16 %v5122
        %v5453 = vunpack.c.l.b16 %v5123
        %v5454 = vunpack.c.l.b16 %v5124
        %v5455 = vunpack.c.l.b16 %v5125
        %v5456 = vunpack.c.l.b16 %v5126
        %v5457 = vunpack.c.l.b16 %v5127
        %v5458 = vunpack.c.l.b16 %v5128
        %v5459 = vunpack.c.l.b16 %v5129
        %v5460 = vunpack.c.l.b16 %v5130
        %v5461 = vunpack.c.l.b16 %v5131
        %v5462 = vunpack.c.l.b16 %v5132
        %v5463 = vunpack.c.l.b16 %v5133
        %v5464 = vunpack.c.l.b16 %v5134
        %v5465 = vunpack.c.l.b16 %v5135
        %v5466 = vunpack.c.l.b16 %v5136
        %v5467 = vpack.c.b16 %v5429, %v5428
        %v5468 = vpack.c.b16 %v5431, %v5430
        %v5469 = vpack.c.b16 %v5433, %v5432
        %v5470 = vpack.c.b16 %v5435, %v5434
        %v5471 = vpack.c.b16 %v5437, %v5436
        %v5472 = vpack.c.b16 %v5439, %v5438
        %v5473 = vpack.c.b16 %v5441, %v5440
        %v5474 = vpack.c.b16 %v5443, %v5442
        %v5475 = vpack.c.b16 %v5445, %v5444
        %v5476 = vpack.c.b16 %v5447, %v5446
        %v5477 = vpack.c.b16 %v5449, %v5448
        %v5478 = vpack.c.b16 %v5451, %v5450
        %v5479 = vpack.c.b16 %v5453, %v5452
        %v5480 = vpack.c.b16 %v5455, %v5454
        %v5481 = vpack.c.b16 %v5457, %v5456
        %v5482 = vpack.c.b16 %v5459, %v5458
        %v5483 = vpack.c.b16 %v5461, %v5460
        %v5484 = vpack.c.b16 %v5463, %v5462
        %v5485 = vpack.c.b16 %v5465, %v5464
        %v5486 = vpack.c.b16 %v5466, %v5466
        %v5507 = vsel %vm5302, %v5097, 0
        %v5510 = vsel %vm470, %v5486, 0
        %5512 = vmatprep.subr.bf16.mxu0 0
        %5513 = vmatpush1.bf16.msra.mxu0 %v5467
        %5514 = vmatprep.subr.bf16.mxu0 0
        %5515 = vmatpush1.bf16.msra.mxu0 %v5468
        %5516 = vmatprep.subr.bf16.mxu0 0
        %5517 = vmatpush1.bf16.msra.mxu0 %v5469
        %5518 = vmatprep.subr.bf16.mxu0 0
        %5519 = vmatpush1.bf16.msra.mxu0 %v5470
        %5520 = vmatprep.subr.bf16.mxu0 0
        %5521 = vmatpush1.bf16.msra.mxu0 %v5471
        %5522 = vmatprep.subr.bf16.mxu0 0
        %5523 = vmatpush1.bf16.msra.mxu0 %v5472
        %5524 = vmatprep.subr.bf16.mxu0 0
        %5525 = vmatpush1.bf16.msra.mxu0 %v5473
        %5526 = vmatprep.subr.bf16.mxu0 0
        %5527 = vmatpush1.bf16.msra.mxu0 %v5474
        %5528 = vmatprep.subr.bf16.mxu0 0
        %5529 = vmatpush1.bf16.msra.mxu0 %v5475
        %5530 = vmatprep.subr.bf16.mxu0 0
        %5531 = vmatpush1.bf16.msra.mxu0 %v5476
        %5532 = vmatprep.subr.bf16.mxu0 0
        %5533 = vmatpush1.bf16.msra.mxu0 %v5477
        %5534 = vmatprep.subr.bf16.mxu0 0
        %5535 = vmatpush1.bf16.msra.mxu0 %v5478
        %5536 = vmatprep.subr.bf16.mxu0 0
        %5537 = vmatpush1.bf16.msra.mxu0 %v5479
        %5538 = vmatprep.subr.bf16.mxu0 0
        %5539 = vmatpush1.bf16.msra.mxu0 %v5480
        %5540 = vmatprep.subr.bf16.mxu0 0
        %5541 = vmatpush1.bf16.msra.mxu0 %v5481
        %5542 = vmatprep.subr.bf16.mxu0 0
        %5543 = vmatpush1.bf16.msra.mxu0 %v5482
        %5544 = vmatprep.mubr.bf16.mxu0 %v5096
        %5545 = vmatmul.mubr.bf16.gmra.mrb[0].mxu0 %v5095
        %v5546 = vpop.f32.mrb[0].mxu0
        %v5547 = vadd.f32 %v5384, %v5546
        %v5548 = vpop.f32.mrb[0].mxu0
        %v5549 = vpop.f32.mrb[0].mxu0
        %v5550 = vpop.f32.mrb[0].mxu0
        %5551 = vdwg.mxu0
        %5552 = vmatprep.subr.bf16.mxu0 0
        %5553 = vmatpush1.bf16.msra.mxu0 %v5483
        %5554 = vmatprep.subr.bf16.mxu0 0
        %5555 = vmatpush1.bf16.msra.mxu0 %v5484
        %5556 = vmatprep.subr.bf16.mxu0 0
        %5557 = vmatpush1.bf16.msra.mxu0 %v5485
        %5558 = vmatprep.subr.bf16.mxu0 0
        %5559 = vmatpush1.bf16.msra.mxu0 %v5510
        %5560 = vmatprep.subr.bf16.mxu0 0
        %5561 = vmatpush1.bf16.msra.mxu0 0
        %5562 = vmatprep.subr.bf16.mxu0 0
        %5563 = vmatpush1.bf16.msra.mxu0 0
        %5564 = vmatprep.subr.bf16.mxu0 0
        %5565 = vmatpush1.bf16.msra.mxu0 0
        %5566 = vmatprep.subr.bf16.mxu0 0
        %5567 = vmatpush1.bf16.msra.mxu0 0
        %5568 = vmatprep.subr.bf16.mxu0 0
        %5569 = vmatpush1.bf16.msra.mxu0 0
        %5570 = vmatprep.subr.bf16.mxu0 0
        %5571 = vmatpush1.bf16.msra.mxu0 0
        %5572 = vmatprep.subr.bf16.mxu0 0
        %5573 = vmatpush1.bf16.msra.mxu0 0
        %5574 = vmatprep.subr.bf16.mxu0 0
        %5575 = vmatpush1.bf16.msra.mxu0 0
        %5576 = vmatprep.subr.bf16.mxu0 0
        %5577 = vmatpush1.bf16.msra.mxu0 0
        %5578 = vmatprep.subr.bf16.mxu0 0
        %5579 = vmatpush1.bf16.msra.mxu0 0
        %5580 = vmatprep.subr.bf16.mxu0 0
        %5581 = vmatpush1.bf16.msra.mxu0 0
        %5582 = vmatprep.subr.bf16.mxu0 0
        %5583 = vmatpush1.bf16.msra.mxu0 0
        %5584 = vmatprep.mubr.bf16.mxu0 0
        %5585 = vmatmul.mubr.bf16.gmra.mrb[0].mxu0 %v5507
        %v5586 = vpop.f32.mrb[0].mxu0
        %v5587 = vadd.f32 %v5547, %v5586
        %v5588 = vpop.f32.mrb[0].mxu0
        %v5589 = vpop.f32.mrb[0].mxu0
        %v5590 = vpop.f32.mrb[0].mxu0
        %5591 = vdwg.mxu0
        %s5592 = scalar_lea.vmem %s8, 312
        %v5593 = vld [vmem:[%s5592] sm:$0xf]
        %v5594 = vld [vmem:[%s5592 + $0x4] sm:$0xf]
        %v5595 = vld [vmem:[%s5592 + $0x8] sm:$0xf]
        %v5596 = vld [vmem:[%s5592 + $0xc] sm:$0xf]
        %v5597 = vld [vmem:[%s5592 + $0x10] sm:$0xf]
        %v5598 = vld [vmem:[%s5592 + $0x14] sm:$0xf]
        %v5599 = vld [vmem:[%s5592 + $0x18] sm:$0xf]
        %v5600 = vld [vmem:[%s5592 + $0x1c] sm:$0xf]
        %v5601 = vld [vmem:[%s5592 + $0x20] sm:$0xf]
        %v5602 = vld [vmem:[%s5592 + $0x24] sm:$0xf]
        %v5603 = vld [vmem:[%s5592 + $0x28] sm:$0xf]
        %v5604 = vld [vmem:[%s5592 + $0x2c] sm:$0xf]
        %v5605 = vld [vmem:[%s5592 + $0x30] sm:$0xf]
        %v5606 = vld [vmem:[%s5592 + $0x34] sm:$0xf]
        %v5607 = vld [vmem:[%s5592 + $0x38] sm:$0xf]
        %v5608 = vld [vmem:[%s5592 + $0x3c] sm:$0xf]
        %v5609 = vld [vmem:[%s5592 + $0x40] sm:$0xf]
        %v5610 = vld [vmem:[%s5592 + $0x44] sm:$0xf]
        %v5611 = vld [vmem:[%s5592 + $0x48] sm:$0xf]
        %v5612 = vld [vmem:[%s5592 + $0x4c] sm:$0xf]
        %v5613 = vld [vmem:[%s5592 + $0x50] sm:$0xf]
        %v5614 = vld [vmem:[%s5592 + $0x54] sm:$0xf]
        %v5615 = vld [vmem:[%s5592 + $0x58] sm:$0xf]
        %v5616 = vld [vmem:[%s5592 + $0x5c] sm:$0xf]
        %v5617 = vld [vmem:[%s5592 + $0x60] sm:$0xf]
        %v5618 = vld [vmem:[%s5592 + $0x64] sm:$0xf]
        %v5619 = vld [vmem:[%s5592 + $0x68] sm:$0xf]
        %v5620 = vld [vmem:[%s5592 + $0x6c] sm:$0xf]
        %v5621 = vld [vmem:[%s5592 + $0x70] sm:$0xf]
        %v5622 = vld [vmem:[%s5592 + $0x74] sm:$0xf]
        %v5623 = vld [vmem:[%s5592 + $0x78] sm:$0xf]
        %v5624 = vld [vmem:[%s5592 + $0x7c] sm:$0xf]
        %v5625 = vld [vmem:[%s5592 + $0x80] sm:$0xf]
        %v5626 = vld [vmem:[%s5592 + $0x84] sm:$0xf]
        %v5627 = vld [vmem:[%s5592 + $0x88] sm:$0xf]
        %v5628 = vld [vmem:[%s5592 + $0x8c] sm:$0xf]
        %v5629 = vld [vmem:[%s5592 + $0x90] sm:$0xf]
        %v5630 = vld [vmem:[%s5592 + $0x94] sm:$0xf]
        %v5631 = vld [vmem:[%s5592 + $0x98] sm:$0xf]
        %v5632 = vrot.slane %v5095, 2
        %v5633 = vrot.slane %v5096, 2
        %v5634 = vrot.slane %v5097, 2
        %v5676 = vunpack.c.l.b16 %v5593
        %v5677 = vunpack.c.l.b16 %v5594
        %v5678 = vunpack.c.l.b16 %v5595
        %v5679 = vunpack.c.l.b16 %v5596
        %v5680 = vunpack.c.l.b16 %v5597
        %v5681 = vunpack.c.l.b16 %v5598
        %v5682 = vunpack.c.l.b16 %v5599
        %v5683 = vunpack.c.l.b16 %v5600
        %v5684 = vunpack.c.l.b16 %v5601
        %v5685 = vunpack.c.l.b16 %v5602
        %v5686 = vunpack.c.l.b16 %v5603
        %v5687 = vunpack.c.l.b16 %v5604
        %v5688 = vunpack.c.l.b16 %v5605
        %v5689 = vunpack.c.l.b16 %v5606
        %v5690 = vunpack.c.l.b16 %v5607
        %v5691 = vunpack.c.l.b16 %v5608
        %v5692 = vunpack.c.l.b16 %v5609
        %v5693 = vunpack.c.l.b16 %v5610
        %v5694 = vunpack.c.l.b16 %v5611
        %v5695 = vunpack.c.l.b16 %v5612
        %v5696 = vunpack.c.l.b16 %v5613
        %v5697 = vunpack.c.l.b16 %v5614
        %v5698 = vunpack.c.l.b16 %v5615
        %v5699 = vunpack.c.l.b16 %v5616
        %v5700 = vunpack.c.l.b16 %v5617
        %v5701 = vunpack.c.l.b16 %v5618
        %v5702 = vunpack.c.l.b16 %v5619
        %v5703 = vunpack.c.l.b16 %v5620
        %v5704 = vunpack.c.l.b16 %v5621
        %v5705 = vunpack.c.l.b16 %v5622
        %v5706 = vunpack.c.l.b16 %v5623
        %v5707 = vunpack.c.l.b16 %v5624
        %v5708 = vunpack.c.l.b16 %v5625
        %v5709 = vunpack.c.l.b16 %v5626
        %v5710 = vunpack.c.l.b16 %v5627
        %v5711 = vunpack.c.l.b16 %v5628
        %v5712 = vunpack.c.l.b16 %v5629
        %v5713 = vunpack.c.l.b16 %v5630
        %v5714 = vunpack.c.l.b16 %v5631
        %v5715 = vpack.c.b16 %v5677, %v5676
        %v5716 = vpack.c.b16 %v5679, %v5678
        %v5717 = vpack.c.b16 %v5681, %v5680
        %v5718 = vpack.c.b16 %v5683, %v5682
        %v5719 = vpack.c.b16 %v5685, %v5684
        %v5720 = vpack.c.b16 %v5687, %v5686
        %v5721 = vpack.c.b16 %v5689, %v5688
        %v5722 = vpack.c.b16 %v5691, %v5690
        %v5723 = vpack.c.b16 %v5693, %v5692
        %v5724 = vpack.c.b16 %v5695, %v5694
        %v5725 = vpack.c.b16 %v5697, %v5696
        %v5726 = vpack.c.b16 %v5699, %v5698
        %v5727 = vpack.c.b16 %v5701, %v5700
        %v5728 = vpack.c.b16 %v5703, %v5702
        %v5729 = vpack.c.b16 %v5705, %v5704
        %v5730 = vpack.c.b16 %v5707, %v5706
        %v5731 = vpack.c.b16 %v5709, %v5708
        %v5732 = vpack.c.b16 %v5711, %v5710
        %v5733 = vpack.c.b16 %v5713, %v5712
        %v5734 = vpack.c.b16 %v5714, %v5714
        %v5755 = vsel %vm5302, %v5634, 0
        %v5758 = vsel %vm470, %v5734, 0
        %5760 = vmatprep.subr.bf16.mxu0 0
        %5761 = vmatpush1.bf16.msra.mxu0 %v5715
        %5762 = vmatprep.subr.bf16.mxu0 0
        %5763 = vmatpush1.bf16.msra.mxu0 %v5716
        %5764 = vmatprep.subr.bf16.mxu0 0
        %5765 = vmatpush1.bf16.msra.mxu0 %v5717
        %5766 = vmatprep.subr.bf16.mxu0 0
        %5767 = vmatpush1.bf16.msra.mxu0 %v5718
        %5768 = vmatprep.subr.bf16.mxu0 0
        %5769 = vmatpush1.bf16.msra.mxu0 %v5719
        %5770 = vmatprep.subr.bf16.mxu0 0
        %5771 = vmatpush1.bf16.msra.mxu0 %v5720
        %5772 = vmatprep.subr.bf16.mxu0 0
        %5773 = vmatpush1.bf16.msra.mxu0 %v5721
        %5774 = vmatprep.subr.bf16.mxu0 0
        %5775 = vmatpush1.bf16.msra.mxu0 %v5722
        %5776 = vmatprep.subr.bf16.mxu0 0
        %5777 = vmatpush1.bf16.msra.mxu0 %v5723
        %5778 = vmatprep.subr.bf16.mxu0 0
        %5779 = vmatpush1.bf16.msra.mxu0 %v5724
        %5780 = vmatprep.subr.bf16.mxu0 0
        %5781 = vmatpush1.bf16.msra.mxu0 %v5725
        %5782 = vmatprep.subr.bf16.mxu0 0
        %5783 = vmatpush1.bf16.msra.mxu0 %v5726
        %5784 = vmatprep.subr.bf16.mxu0 0
        %5785 = vmatpush1.bf16.msra.mxu0 %v5727
        %5786 = vmatprep.subr.bf16.mxu0 0
        %5787 = vmatpush1.bf16.msra.mxu0 %v5728
        %5788 = vmatprep.subr.bf16.mxu0 0
        %5789 = vmatpush1.bf16.msra.mxu0 %v5729
        %5790 = vmatprep.subr.bf16.mxu0 0
        %5791 = vmatpush1.bf16.msra.mxu0 %v5730
        %5792 = vmatprep.mubr.bf16.mxu0 %v5633
        %5793 = vmatmul.mubr.bf16.gmra.mrb[0].mxu0 %v5632
        %v5794 = vpop.f32.mrb[0].mxu0
        %v5795 = vadd.f32 0.0, %v5794
        %v5796 = vpop.f32.mrb[0].mxu0
        %v5797 = vpop.f32.mrb[0].mxu0
        %v5798 = vpop.f32.mrb[0].mxu0
        %5799 = vdwg.mxu0
        %5800 = vmatprep.subr.bf16.mxu0 0
        %5801 = vmatpush1.bf16.msra.mxu0 %v5731
        %5802 = vmatprep.subr.bf16.mxu0 0
        %5803 = vmatpush1.bf16.msra.mxu0 %v5732
        %5804 = vmatprep.subr.bf16.mxu0 0
        %5805 = vmatpush1.bf16.msra.mxu0 %v5733
        %5806 = vmatprep.subr.bf16.mxu0 0
        %5807 = vmatpush1.bf16.msra.mxu0 %v5758
        %5808 = vmatprep.subr.bf16.mxu0 0
        %5809 = vmatpush1.bf16.msra.mxu0 0
        %5810 = vmatprep.subr.bf16.mxu0 0
        %5811 = vmatpush1.bf16.msra.mxu0 0
        %5812 = vmatprep.subr.bf16.mxu0 0
        %5813 = vmatpush1.bf16.msra.mxu0 0
        %5814 = vmatprep.subr.bf16.mxu0 0
        %5815 = vmatpush1.bf16.msra.mxu0 0
        %5816 = vmatprep.subr.bf16.mxu0 0
        %5817 = vmatpush1.bf16.msra.mxu0 0
        %5818 = vmatprep.subr.bf16.mxu0 0
        %5819 = vmatpush1.bf16.msra.mxu0 0
        %5820 = vmatprep.subr.bf16.mxu0 0
        %5821 = vmatpush1.bf16.msra.mxu0 0
        %5822 = vmatprep.subr.bf16.mxu0 0
        %5823 = vmatpush1.bf16.msra.mxu0 0
        %5824 = vmatprep.subr.bf16.mxu0 0
        %5825 = vmatpush1.bf16.msra.mxu0 0
        %5826 = vmatprep.subr.bf16.mxu0 0
        %5827 = vmatpush1.bf16.msra.mxu0 0
        %5828 = vmatprep.subr.bf16.mxu0 0
        %5829 = vmatpush1.bf16.msra.mxu0 0
        %5830 = vmatprep.subr.bf16.mxu0 0
        %5831 = vmatpush1.bf16.msra.mxu0 0
        %5832 = vmatprep.mubr.bf16.mxu0 0
        %5833 = vmatmul.mubr.bf16.gmra.mrb[0].mxu0 %v5755
        %v5834 = vpop.f32.mrb[0].mxu0
        %v5835 = vadd.f32 %v5795, %v5834
        %v5836 = vpop.f32.mrb[0].mxu0
        %v5837 = vpop.f32.mrb[0].mxu0
        %v5838 = vpop.f32.mrb[0].mxu0
        %5839 = vdwg.mxu0
        %v5840 = vadd.f32 %v5587, %v5835
        %s5841 = scalar_lea.vmem %s8, 468
        %v5842 = vld [vmem:[%s5841] sm:$0xf]
        %v5843 = vld [vmem:[%s5841 + $0x4] sm:$0xf]
        %v5844 = vld [vmem:[%s5841 + $0x8] sm:$0xf]
        %v5845 = vld [vmem:[%s5841 + $0xc] sm:$0xf]
        %v5846 = vld [vmem:[%s5841 + $0x10] sm:$0xf]
        %v5847 = vld [vmem:[%s5841 + $0x14] sm:$0xf]
        %v5848 = vld [vmem:[%s5841 + $0x18] sm:$0xf]
        %v5849 = vld [vmem:[%s5841 + $0x1c] sm:$0xf]
        %v5850 = vld [vmem:[%s5841 + $0x20] sm:$0xf]
        %v5851 = vld [vmem:[%s5841 + $0x24] sm:$0xf]
        %v5852 = vld [vmem:[%s5841 + $0x28] sm:$0xf]
        %v5853 = vld [vmem:[%s5841 + $0x2c] sm:$0xf]
        %v5854 = vld [vmem:[%s5841 + $0x30] sm:$0xf]
        %v5855 = vld [vmem:[%s5841 + $0x34] sm:$0xf]
        %v5856 = vld [vmem:[%s5841 + $0x38] sm:$0xf]
        %v5857 = vld [vmem:[%s5841 + $0x3c] sm:$0xf]
        %v5858 = vld [vmem:[%s5841 + $0x40] sm:$0xf]
        %v5859 = vld [vmem:[%s5841 + $0x44] sm:$0xf]
        %v5860 = vld [vmem:[%s5841 + $0x48] sm:$0xf]
        %v5861 = vld [vmem:[%s5841 + $0x4c] sm:$0xf]
        %v5862 = vld [vmem:[%s5841 + $0x50] sm:$0xf]
        %v5863 = vld [vmem:[%s5841 + $0x54] sm:$0xf]
        %v5864 = vld [vmem:[%s5841 + $0x58] sm:$0xf]
        %v5865 = vld [vmem:[%s5841 + $0x5c] sm:$0xf]
        %v5866 = vld [vmem:[%s5841 + $0x60] sm:$0xf]
        %v5867 = vld [vmem:[%s5841 + $0x64] sm:$0xf]
        %v5868 = vld [vmem:[%s5841 + $0x68] sm:$0xf]
        %v5869 = vld [vmem:[%s5841 + $0x6c] sm:$0xf]
        %v5870 = vld [vmem:[%s5841 + $0x70] sm:$0xf]
        %v5871 = vld [vmem:[%s5841 + $0x74] sm:$0xf]
        %v5872 = vld [vmem:[%s5841 + $0x78] sm:$0xf]
        %v5873 = vld [vmem:[%s5841 + $0x7c] sm:$0xf]
        %v5874 = vld [vmem:[%s5841 + $0x80] sm:$0xf]
        %v5875 = vld [vmem:[%s5841 + $0x84] sm:$0xf]
        %v5876 = vld [vmem:[%s5841 + $0x88] sm:$0xf]
        %v5877 = vld [vmem:[%s5841 + $0x8c] sm:$0xf]
        %v5878 = vld [vmem:[%s5841 + $0x90] sm:$0xf]
        %v5879 = vld [vmem:[%s5841 + $0x94] sm:$0xf]
        %v5880 = vld [vmem:[%s5841 + $0x98] sm:$0xf]
        %v5881 = vrot.slane %v5095, 3
        %v5882 = vrot.slane %v5096, 3
        %v5883 = vrot.slane %v5097, 3
        %v5925 = vunpack.c.l.b16 %v5842
        %v5926 = vunpack.c.l.b16 %v5843
        %v5927 = vunpack.c.l.b16 %v5844
        %v5928 = vunpack.c.l.b16 %v5845
        %v5929 = vunpack.c.l.b16 %v5846
        %v5930 = vunpack.c.l.b16 %v5847
        %v5931 = vunpack.c.l.b16 %v5848
        %v5932 = vunpack.c.l.b16 %v5849
        %v5933 = vunpack.c.l.b16 %v5850
        %v5934 = vunpack.c.l.b16 %v5851
        %v5935 = vunpack.c.l.b16 %v5852
        %v5936 = vunpack.c.l.b16 %v5853
        %v5937 = vunpack.c.l.b16 %v5854
        %v5938 = vunpack.c.l.b16 %v5855
        %v5939 = vunpack.c.l.b16 %v5856
        %v5940 = vunpack.c.l.b16 %v5857
        %v5941 = vunpack.c.l.b16 %v5858
        %v5942 = vunpack.c.l.b16 %v5859
        %v5943 = vunpack.c.l.b16 %v5860
        %v5944 = vunpack.c.l.b16 %v5861
        %v5945 = vunpack.c.l.b16 %v5862
        %v5946 = vunpack.c.l.b16 %v5863
        %v5947 = vunpack.c.l.b16 %v5864
        %v5948 = vunpack.c.l.b16 %v5865
        %v5949 = vunpack.c.l.b16 %v5866
        %v5950 = vunpack.c.l.b16 %v5867
        %v5951 = vunpack.c.l.b16 %v5868
        %v5952 = vunpack.c.l.b16 %v5869
        %v5953 = vunpack.c.l.b16 %v5870
        %v5954 = vunpack.c.l.b16 %v5871
        %v5955 = vunpack.c.l.b16 %v5872
        %v5956 = vunpack.c.l.b16 %v5873
        %v5957 = vunpack.c.l.b16 %v5874
        %v5958 = vunpack.c.l.b16 %v5875
        %v5959 = vunpack.c.l.b16 %v5876
        %v5960 = vunpack.c.l.b16 %v5877
        %v5961 = vunpack.c.l.b16 %v5878
        %v5962 = vunpack.c.l.b16 %v5879
        %v5963 = vunpack.c.l.b16 %v5880
        %v5964 = vpack.c.b16 %v5926, %v5925
        %v5965 = vpack.c.b16 %v5928, %v5927
        %v5966 = vpack.c.b16 %v5930, %v5929
        %v5967 = vpack.c.b16 %v5932, %v5931
        %v5968 = vpack.c.b16 %v5934, %v5933
        %v5969 = vpack.c.b16 %v5936, %v5935
        %v5970 = vpack.c.b16 %v5938, %v5937
        %v5971 = vpack.c.b16 %v5940, %v5939
        %v5972 = vpack.c.b16 %v5942, %v5941
        %v5973 = vpack.c.b16 %v5944, %v5943
        %v5974 = vpack.c.b16 %v5946, %v5945
        %v5975 = vpack.c.b16 %v5948, %v5947
        %v5976 = vpack.c.b16 %v5950, %v5949
        %v5977 = vpack.c.b16 %v5952, %v5951
        %v5978 = vpack.c.b16 %v5954, %v5953
        %v5979 = vpack.c.b16 %v5956, %v5955
        %v5980 = vpack.c.b16 %v5958, %v5957
        %v5981 = vpack.c.b16 %v5960, %v5959
        %v5982 = vpack.c.b16 %v5962, %v5961
        %v5983 = vpack.c.b16 %v5963, %v5963
        %v6004 = vsel %vm5302, %v5883, 0
        %v6007 = vsel %vm470, %v5983, 0
        %6009 = vmatprep.subr.bf16.mxu0 0
        %6010 = vmatpush1.bf16.msra.mxu0 %v5964
        %6011 = vmatprep.subr.bf16.mxu0 0
        %6012 = vmatpush1.bf16.msra.mxu0 %v5965
        %6013 = vmatprep.subr.bf16.mxu0 0
        %6014 = vmatpush1.bf16.msra.mxu0 %v5966
        %6015 = vmatprep.subr.bf16.mxu0 0
        %6016 = vmatpush1.bf16.msra.mxu0 %v5967
        %6017 = vmatprep.subr.bf16.mxu0 0
        %6018 = vmatpush1.bf16.msra.mxu0 %v5968
        %6019 = vmatprep.subr.bf16.mxu0 0
        %6020 = vmatpush1.bf16.msra.mxu0 %v5969
        %6021 = vmatprep.subr.bf16.mxu0 0
        %6022 = vmatpush1.bf16.msra.mxu0 %v5970
        %6023 = vmatprep.subr.bf16.mxu0 0
        %6024 = vmatpush1.bf16.msra.mxu0 %v5971
        %6025 = vmatprep.subr.bf16.mxu0 0
        %6026 = vmatpush1.bf16.msra.mxu0 %v5972
        %6027 = vmatprep.subr.bf16.mxu0 0
        %6028 = vmatpush1.bf16.msra.mxu0 %v5973
        %6029 = vmatprep.subr.bf16.mxu0 0
        %6030 = vmatpush1.bf16.msra.mxu0 %v5974
        %6031 = vmatprep.subr.bf16.mxu0 0
        %6032 = vmatpush1.bf16.msra.mxu0 %v5975
        %6033 = vmatprep.subr.bf16.mxu0 0
        %6034 = vmatpush1.bf16.msra.mxu0 %v5976
        %6035 = vmatprep.subr.bf16.mxu0 0
        %6036 = vmatpush1.bf16.msra.mxu0 %v5977
        %6037 = vmatprep.subr.bf16.mxu0 0
        %6038 = vmatpush1.bf16.msra.mxu0 %v5978
        %6039 = vmatprep.subr.bf16.mxu0 0
        %6040 = vmatpush1.bf16.msra.mxu0 %v5979
        %6041 = vmatprep.mubr.bf16.mxu0 %v5882
        %6042 = vmatmul.mubr.bf16.gmra.mrb[0].mxu0 %v5881
        %v6043 = vpop.f32.mrb[0].mxu0
        %v6044 = vadd.f32 0.0, %v6043
        %v6045 = vpop.f32.mrb[0].mxu0
        %v6046 = vpop.f32.mrb[0].mxu0
        %v6047 = vpop.f32.mrb[0].mxu0
        %6048 = vdwg.mxu0
        %6049 = vmatprep.subr.bf16.mxu0 0
        %6050 = vmatpush1.bf16.msra.mxu0 %v5980
        %6051 = vmatprep.subr.bf16.mxu0 0
        %6052 = vmatpush1.bf16.msra.mxu0 %v5981
        %6053 = vmatprep.subr.bf16.mxu0 0
        %6054 = vmatpush1.bf16.msra.mxu0 %v5982
        %6055 = vmatprep.subr.bf16.mxu0 0
        %6056 = vmatpush1.bf16.msra.mxu0 %v6007
        %6057 = vmatprep.subr.bf16.mxu0 0
        %6058 = vmatpush1.bf16.msra.mxu0 0
        %6059 = vmatprep.subr.bf16.mxu0 0
        %6060 = vmatpush1.bf16.msra.mxu0 0
        %6061 = vmatprep.subr.bf16.mxu0 0
        %6062 = vmatpush1.bf16.msra.mxu0 0
        %6063 = vmatprep.subr.bf16.mxu0 0
        %6064 = vmatpush1.bf16.msra.mxu0 0
        %6065 = vmatprep.subr.bf16.mxu0 0
        %6066 = vmatpush1.bf16.msra.mxu0 0
        %6067 = vmatprep.subr.bf16.mxu0 0
        %6068 = vmatpush1.bf16.msra.mxu0 0
        %6069 = vmatprep.subr.bf16.mxu0 0
        %6070 = vmatpush1.bf16.msra.mxu0 0
        %6071 = vmatprep.subr.bf16.mxu0 0
        %6072 = vmatpush1.bf16.msra.mxu0 0
        %6073 = vmatprep.subr.bf16.mxu0 0
        %6074 = vmatpush1.bf16.msra.mxu0 0
        %6075 = vmatprep.subr.bf16.mxu0 0
        %6076 = vmatpush1.bf16.msra.mxu0 0
        %6077 = vmatprep.subr.bf16.mxu0 0
        %6078 = vmatpush1.bf16.msra.mxu0 0
        %6079 = vmatprep.subr.bf16.mxu0 0
        %6080 = vmatpush1.bf16.msra.mxu0 0
        %6081 = vmatprep.mubr.bf16.mxu0 0
        %6082 = vmatmul.mubr.bf16.gmra.mrb[0].mxu0 %v6004
        %v6083 = vpop.f32.mrb[0].mxu0
        %v6084 = vadd.f32 %v6044, %v6083
        %v6085 = vpop.f32.mrb[0].mxu0
        %v6086 = vpop.f32.mrb[0].mxu0
        %v6087 = vpop.f32.mrb[0].mxu0
        %6088 = vdwg.mxu0
        %v6089 = vadd.f32 %v5840, %v6084
        %s6090 = scalar_lea.vmem %s8, 624
        %v6091 = vld [vmem:[%s6090] sm:$0xf]
        %v6092 = vld [vmem:[%s6090 + $0x4] sm:$0xf]
        %v6093 = vld [vmem:[%s6090 + $0x8] sm:$0xf]
        %v6094 = vld [vmem:[%s6090 + $0xc] sm:$0xf]
        %v6095 = vld [vmem:[%s6090 + $0x10] sm:$0xf]
        %v6096 = vld [vmem:[%s6090 + $0x14] sm:$0xf]
        %v6097 = vld [vmem:[%s6090 + $0x18] sm:$0xf]
        %v6098 = vld [vmem:[%s6090 + $0x1c] sm:$0xf]
        %v6099 = vld [vmem:[%s6090 + $0x20] sm:$0xf]
        %v6100 = vld [vmem:[%s6090 + $0x24] sm:$0xf]
        %v6101 = vld [vmem:[%s6090 + $0x28] sm:$0xf]
        %v6102 = vld [vmem:[%s6090 + $0x2c] sm:$0xf]
        %v6103 = vld [vmem:[%s6090 + $0x30] sm:$0xf]
        %v6104 = vld [vmem:[%s6090 + $0x34] sm:$0xf]
        %v6105 = vld [vmem:[%s6090 + $0x38] sm:$0xf]
        %v6106 = vld [vmem:[%s6090 + $0x3c] sm:$0xf]
        %v6107 = vld [vmem:[%s6090 + $0x40] sm:$0xf]
        %v6108 = vld [vmem:[%s6090 + $0x44] sm:$0xf]
        %v6109 = vld [vmem:[%s6090 + $0x48] sm:$0xf]
        %v6110 = vld [vmem:[%s6090 + $0x4c] sm:$0xf]
        %v6111 = vld [vmem:[%s6090 + $0x50] sm:$0xf]
        %v6112 = vld [vmem:[%s6090 + $0x54] sm:$0xf]
        %v6113 = vld [vmem:[%s6090 + $0x58] sm:$0xf]
        %v6114 = vld [vmem:[%s6090 + $0x5c] sm:$0xf]
        %v6115 = vld [vmem:[%s6090 + $0x60] sm:$0xf]
        %v6116 = vld [vmem:[%s6090 + $0x64] sm:$0xf]
        %v6117 = vld [vmem:[%s6090 + $0x68] sm:$0xf]
        %v6118 = vld [vmem:[%s6090 + $0x6c] sm:$0xf]
        %v6119 = vld [vmem:[%s6090 + $0x70] sm:$0xf]
        %v6120 = vld [vmem:[%s6090 + $0x74] sm:$0xf]
        %v6121 = vld [vmem:[%s6090 + $0x78] sm:$0xf]
        %v6122 = vld [vmem:[%s6090 + $0x7c] sm:$0xf]
        %v6123 = vld [vmem:[%s6090 + $0x80] sm:$0xf]
        %v6124 = vld [vmem:[%s6090 + $0x84] sm:$0xf]
        %v6125 = vld [vmem:[%s6090 + $0x88] sm:$0xf]
        %v6126 = vld [vmem:[%s6090 + $0x8c] sm:$0xf]
        %v6127 = vld [vmem:[%s6090 + $0x90] sm:$0xf]
        %v6128 = vld [vmem:[%s6090 + $0x94] sm:$0xf]
        %v6129 = vld [vmem:[%s6090 + $0x98] sm:$0xf]
        %v6130 = vrot.slane %v5095, 4
        %v6131 = vrot.slane %v5096, 4
        %v6132 = vrot.slane %v5097, 4
        %v6174 = vunpack.c.l.b16 %v6091
        %v6175 = vunpack.c.l.b16 %v6092
        %v6176 = vunpack.c.l.b16 %v6093
        %v6177 = vunpack.c.l.b16 %v6094
        %v6178 = vunpack.c.l.b16 %v6095
        %v6179 = vunpack.c.l.b16 %v6096
        %v6180 = vunpack.c.l.b16 %v6097
        %v6181 = vunpack.c.l.b16 %v6098
        %v6182 = vunpack.c.l.b16 %v6099
        %v6183 = vunpack.c.l.b16 %v6100
        %v6184 = vunpack.c.l.b16 %v6101
        %v6185 = vunpack.c.l.b16 %v6102
        %v6186 = vunpack.c.l.b16 %v6103
        %v6187 = vunpack.c.l.b16 %v6104
        %v6188 = vunpack.c.l.b16 %v6105
        %v6189 = vunpack.c.l.b16 %v6106
        %v6190 = vunpack.c.l.b16 %v6107
        %v6191 = vunpack.c.l.b16 %v6108
        %v6192 = vunpack.c.l.b16 %v6109
        %v6193 = vunpack.c.l.b16 %v6110
        %v6194 = vunpack.c.l.b16 %v6111
        %v6195 = vunpack.c.l.b16 %v6112
        %v6196 = vunpack.c.l.b16 %v6113
        %v6197 = vunpack.c.l.b16 %v6114
        %v6198 = vunpack.c.l.b16 %v6115
        %v6199 = vunpack.c.l.b16 %v6116
        %v6200 = vunpack.c.l.b16 %v6117
        %v6201 = vunpack.c.l.b16 %v6118
        %v6202 = vunpack.c.l.b16 %v6119
        %v6203 = vunpack.c.l.b16 %v6120
        %v6204 = vunpack.c.l.b16 %v6121
        %v6205 = vunpack.c.l.b16 %v6122
        %v6206 = vunpack.c.l.b16 %v6123
        %v6207 = vunpack.c.l.b16 %v6124
        %v6208 = vunpack.c.l.b16 %v6125
        %v6209 = vunpack.c.l.b16 %v6126
        %v6210 = vunpack.c.l.b16 %v6127
        %v6211 = vunpack.c.l.b16 %v6128
        %v6212 = vunpack.c.l.b16 %v6129
        %v6213 = vpack.c.b16 %v6175, %v6174
        %v6214 = vpack.c.b16 %v6177, %v6176
        %v6215 = vpack.c.b16 %v6179, %v6178
        %v6216 = vpack.c.b16 %v6181, %v6180
        %v6217 = vpack.c.b16 %v6183, %v6182
        %v6218 = vpack.c.b16 %v6185, %v6184
        %v6219 = vpack.c.b16 %v6187, %v6186
        %v6220 = vpack.c.b16 %v6189, %v6188
        %v6221 = vpack.c.b16 %v6191, %v6190
        %v6222 = vpack.c.b16 %v6193, %v6192
        %v6223 = vpack.c.b16 %v6195, %v6194
        %v6224 = vpack.c.b16 %v6197, %v6196
        %v6225 = vpack.c.b16 %v6199, %v6198
        %v6226 = vpack.c.b16 %v6201, %v6200
        %v6227 = vpack.c.b16 %v6203, %v6202
        %v6228 = vpack.c.b16 %v6205, %v6204
        %v6229 = vpack.c.b16 %v6207, %v6206
        %v6230 = vpack.c.b16 %v6209, %v6208
        %v6231 = vpack.c.b16 %v6211, %v6210
        %v6232 = vpack.c.b16 %v6212, %v6212
        %v6253 = vsel %vm5302, %v6132, 0
        %v6256 = vsel %vm470, %v6232, 0
        %6258 = vmatprep.subr.bf16.mxu0 0
        %6259 = vmatpush1.bf16.msra.mxu0 %v6213
        %6260 = vmatprep.subr.bf16.mxu0 0
        %6261 = vmatpush1.bf16.msra.mxu0 %v6214
        %6262 = vmatprep.subr.bf16.mxu0 0
        %6263 = vmatpush1.bf16.msra.mxu0 %v6215
        %6264 = vmatprep.subr.bf16.mxu0 0
        %6265 = vmatpush1.bf16.msra.mxu0 %v6216
        %6266 = vmatprep.subr.bf16.mxu0 0
        %6267 = vmatpush1.bf16.msra.mxu0 %v6217
        %6268 = vmatprep.subr.bf16.mxu0 0
        %6269 = vmatpush1.bf16.msra.mxu0 %v6218
        %6270 = vmatprep.subr.bf16.mxu0 0
        %6271 = vmatpush1.bf16.msra.mxu0 %v6219
        %6272 = vmatprep.subr.bf16.mxu0 0
        %6273 = vmatpush1.bf16.msra.mxu0 %v6220
        %6274 = vmatprep.subr.bf16.mxu0 0
        %6275 = vmatpush1.bf16.msra.mxu0 %v6221
        %6276 = vmatprep.subr.bf16.mxu0 0
        %6277 = vmatpush1.bf16.msra.mxu0 %v6222
        %6278 = vmatprep.subr.bf16.mxu0 0
        %6279 = vmatpush1.bf16.msra.mxu0 %v6223
        %6280 = vmatprep.subr.bf16.mxu0 0
        %6281 = vmatpush1.bf16.msra.mxu0 %v6224
        %6282 = vmatprep.subr.bf16.mxu0 0
        %6283 = vmatpush1.bf16.msra.mxu0 %v6225
        %6284 = vmatprep.subr.bf16.mxu0 0
        %6285 = vmatpush1.bf16.msra.mxu0 %v6226
        %6286 = vmatprep.subr.bf16.mxu0 0
        %6287 = vmatpush1.bf16.msra.mxu0 %v6227
        %6288 = vmatprep.subr.bf16.mxu0 0
        %6289 = vmatpush1.bf16.msra.mxu0 %v6228
        %6290 = vmatprep.mubr.bf16.mxu0 %v6131
        %6291 = vmatmul.mubr.bf16.gmra.mrb[0].mxu0 %v6130
        %v6292 = vpop.f32.mrb[0].mxu0
        %v6293 = vadd.f32 0.0, %v6292
        %v6294 = vpop.f32.mrb[0].mxu0
        %v6295 = vpop.f32.mrb[0].mxu0
        %v6296 = vpop.f32.mrb[0].mxu0
        %6297 = vdwg.mxu0
        %6298 = vmatprep.subr.bf16.mxu0 0
        %6299 = vmatpush1.bf16.msra.mxu0 %v6229
        %6300 = vmatprep.subr.bf16.mxu0 0
        %6301 = vmatpush1.bf16.msra.mxu0 %v6230
        %6302 = vmatprep.subr.bf16.mxu0 0
        %6303 = vmatpush1.bf16.msra.mxu0 %v6231
        %6304 = vmatprep.subr.bf16.mxu0 0
        %6305 = vmatpush1.bf16.msra.mxu0 %v6256
        %6306 = vmatprep.subr.bf16.mxu0 0
        %6307 = vmatpush1.bf16.msra.mxu0 0
        %6308 = vmatprep.subr.bf16.mxu0 0
        %6309 = vmatpush1.bf16.msra.mxu0 0
        %6310 = vmatprep.subr.bf16.mxu0 0
        %6311 = vmatpush1.bf16.msra.mxu0 0
        %6312 = vmatprep.subr.bf16.mxu0 0
        %6313 = vmatpush1.bf16.msra.mxu0 0
        %6314 = vmatprep.subr.bf16.mxu0 0
        %6315 = vmatpush1.bf16.msra.mxu0 0
        %6316 = vmatprep.subr.bf16.mxu0 0
        %6317 = vmatpush1.bf16.msra.mxu0 0
        %6318 = vmatprep.subr.bf16.mxu0 0
        %6319 = vmatpush1.bf16.msra.mxu0 0
        %6320 = vmatprep.subr.bf16.mxu0 0
        %6321 = vmatpush1.bf16.msra.mxu0 0
        %6322 = vmatprep.subr.bf16.mxu0 0
        %6323 = vmatpush1.bf16.msra.mxu0 0
        %6324 = vmatprep.subr.bf16.mxu0 0
        %6325 = vmatpush1.bf16.msra.mxu0 0
        %6326 = vmatprep.subr.bf16.mxu0 0
        %6327 = vmatpush1.bf16.msra.mxu0 0
        %6328 = vmatprep.subr.bf16.mxu0 0
        %6329 = vmatpush1.bf16.msra.mxu0 0
        %6330 = vmatprep.mubr.bf16.mxu0 0
        %6331 = vmatmul.mubr.bf16.gmra.mrb[0].mxu0 %v6253
        %v6332 = vpop.f32.mrb[0].mxu0
        %v6333 = vadd.f32 %v6293, %v6332
        %v6334 = vpop.f32.mrb[0].mxu0
        %v6335 = vpop.f32.mrb[0].mxu0
        %v6336 = vpop.f32.mrb[0].mxu0
        %6337 = vdwg.mxu0
        %v6338 = vadd.f32 %v6089, %v6333
        %v6339 = vld [vmem:[%s9] sm:$0x1]
        %v6341 = vlaneseq
        %v6342 = vshrl.u32 %v6341, 7
        %v6343 = vsub.s32 0, %v6342
        %v6344 = vrot.slane %v6339, %v6343
        %v6346 = vadd.f32 %v6338, %v6344
        %v6347 = vmax.f32 %v6346, 0.0
        %v6348 = vpack.c.bf16 %v6347, %v6347
        %v6349 = vld [vmem:[%s11] sm:$0x1]
        %v6350 = vld [vmem:[%s10] sm:$0xf]
        %v6351 = vld [vmem:[%s10 + $0x4] sm:$0xf]
        %v6352 = vld [vmem:[%s10 + $0x8] sm:$0xf]
        %v6353 = vld [vmem:[%s10 + $0xc] sm:$0xf]
        %v6354 = vld [vmem:[%s10 + $0x10] sm:$0xf]
        %v6355 = vld [vmem:[%s10 + $0x14] sm:$0xf]
        %v6356 = vld [vmem:[%s10 + $0x18] sm:$0xf]
        %v6357 = vld [vmem:[%s10 + $0x1c] sm:$0xf]
        %v6358 = vld [vmem:[%s10 + $0x20] sm:$0xf]
        %v6359 = vld [vmem:[%s10 + $0x24] sm:$0xf]
        %v6360 = vld [vmem:[%s10 + $0x28] sm:$0xf]
        %v6361 = vld [vmem:[%s10 + $0x2c] sm:$0xf]
        %v6362 = vld [vmem:[%s10 + $0x30] sm:$0xf]
        %v6363 = vld [vmem:[%s10 + $0x34] sm:$0xf]
        %v6364 = vld [vmem:[%s10 + $0x38] sm:$0xf]
        %v6380 = vunpack.c.l.b16 %v6350
        %v6381 = vunpack.c.l.b16 %v6351
        %v6382 = vunpack.c.l.b16 %v6352
        %v6383 = vunpack.c.l.b16 %v6353
        %v6384 = vunpack.c.l.b16 %v6354
        %v6385 = vunpack.c.l.b16 %v6355
        %v6386 = vunpack.c.l.b16 %v6356
        %v6387 = vunpack.c.l.b16 %v6357
        %v6388 = vunpack.c.l.b16 %v6358
        %v6389 = vunpack.c.l.b16 %v6359
        %v6390 = vunpack.c.l.b16 %v6360
        %v6391 = vunpack.c.l.b16 %v6361
        %v6392 = vunpack.c.l.b16 %v6362
        %v6393 = vunpack.c.l.b16 %v6363
        %v6394 = vunpack.c.l.b16 %v6364
        %v6395 = vpack.c.b16 %v6381, %v6380
        %v6396 = vpack.c.b16 %v6383, %v6382
        %v6397 = vpack.c.b16 %v6385, %v6384
        %v6398 = vpack.c.b16 %v6387, %v6386
        %v6399 = vpack.c.b16 %v6389, %v6388
        %v6400 = vpack.c.b16 %v6391, %v6390
        %v6401 = vpack.c.b16 %v6393, %v6392
        %v6402 = vpack.c.b16 %v6394, %v6394
        %vm6410 = vcmask 982016
        %v6412 = vsel %vm6410, %v6348, 0
        %v6415 = vsel %vm470, %v6402, 0
        %6417 = vmatprep.subr.bf16.mxu0 0
        %6418 = vmatpush1.bf16.msra.mxu0 %v6395
        %6419 = vmatprep.subr.bf16.mxu0 0
        %6420 = vmatpush1.bf16.msra.mxu0 %v6396
        %6421 = vmatprep.subr.bf16.mxu0 0
        %6422 = vmatpush1.bf16.msra.mxu0 %v6397
        %6423 = vmatprep.subr.bf16.mxu0 0
        %6424 = vmatpush1.bf16.msra.mxu0 %v6398
        %6425 = vmatprep.subr.bf16.mxu0 0
        %6426 = vmatpush1.bf16.msra.mxu0 %v6399
        %6427 = vmatprep.subr.bf16.mxu0 0
        %6428 = vmatpush1.bf16.msra.mxu0 %v6400
        %6429 = vmatprep.subr.bf16.mxu0 0
        %6430 = vmatpush1.bf16.msra.mxu0 %v6401
        %6431 = vmatprep.subr.bf16.mxu0 0
        %6432 = vmatpush1.bf16.msra.mxu0 %v6415
        %6433 = vmatprep.subr.bf16.mxu0 0
        %6434 = vmatpush1.bf16.msra.mxu0 0
        %6435 = vmatprep.subr.bf16.mxu0 0
        %6436 = vmatpush1.bf16.msra.mxu0 0
        %6437 = vmatprep.subr.bf16.mxu0 0
        %6438 = vmatpush1.bf16.msra.mxu0 0
        %6439 = vmatprep.subr.bf16.mxu0 0
        %6440 = vmatpush1.bf16.msra.mxu0 0
        %6441 = vmatprep.subr.bf16.mxu0 0
        %6442 = vmatpush1.bf16.msra.mxu0 0
        %6443 = vmatprep.subr.bf16.mxu0 0
        %6444 = vmatpush1.bf16.msra.mxu0 0
        %6445 = vmatprep.subr.bf16.mxu0 0
        %6446 = vmatpush1.bf16.msra.mxu0 0
        %6447 = vmatprep.subr.bf16.mxu0 0
        %6448 = vmatpush1.bf16.msra.mxu0 0
        %6449 = vmatprep.mubr.bf16.mxu0 0
        %6450 = vmatmul.mubr.bf16.gmra.mrb[0].mxu0 %v6412
        %v6451 = vpop.f32.mrb[0].mxu0
        %v6452 = vadd.f32 0.0, %v6451
        %v6453 = vpop.f32.mrb[0].mxu0
        %v6454 = vpop.f32.mrb[0].mxu0
        %v6455 = vpop.f32.mrb[0].mxu0
        %6456 = vdwg.mxu0
        %v6457 = vadd.f32 %v6349, %v6452
        %s6458 = scalar_lea.vmem %s10, 60
        %v6459 = vld [vmem:[%s6458] sm:$0xf]
        %v6460 = vld [vmem:[%s6458 + $0x4] sm:$0xf]
        %v6461 = vld [vmem:[%s6458 + $0x8] sm:$0xf]
        %v6462 = vld [vmem:[%s6458 + $0xc] sm:$0xf]
        %v6463 = vld [vmem:[%s6458 + $0x10] sm:$0xf]
        %v6464 = vld [vmem:[%s6458 + $0x14] sm:$0xf]
        %v6465 = vld [vmem:[%s6458 + $0x18] sm:$0xf]
        %v6466 = vld [vmem:[%s6458 + $0x1c] sm:$0xf]
        %v6467 = vld [vmem:[%s6458 + $0x20] sm:$0xf]
        %v6468 = vld [vmem:[%s6458 + $0x24] sm:$0xf]
        %v6469 = vld [vmem:[%s6458 + $0x28] sm:$0xf]
        %v6470 = vld [vmem:[%s6458 + $0x2c] sm:$0xf]
        %v6471 = vld [vmem:[%s6458 + $0x30] sm:$0xf]
        %v6472 = vld [vmem:[%s6458 + $0x34] sm:$0xf]
        %v6473 = vld [vmem:[%s6458 + $0x38] sm:$0xf]
        %v6474 = vshrl.u32 %v6348, 16
        %v6491 = vunpack.c.l.b16 %v6459
        %v6492 = vunpack.c.l.b16 %v6460
        %v6493 = vunpack.c.l.b16 %v6461
        %v6494 = vunpack.c.l.b16 %v6462
        %v6495 = vunpack.c.l.b16 %v6463
        %v6496 = vunpack.c.l.b16 %v6464
        %v6497 = vunpack.c.l.b16 %v6465
        %v6498 = vunpack.c.l.b16 %v6466
        %v6499 = vunpack.c.l.b16 %v6467
        %v6500 = vunpack.c.l.b16 %v6468
        %v6501 = vunpack.c.l.b16 %v6469
        %v6502 = vunpack.c.l.b16 %v6470
        %v6503 = vunpack.c.l.b16 %v6471
        %v6504 = vunpack.c.l.b16 %v6472
        %v6505 = vunpack.c.l.b16 %v6473
        %v6506 = vpack.c.b16 %v6492, %v6491
        %v6507 = vpack.c.b16 %v6494, %v6493
        %v6508 = vpack.c.b16 %v6496, %v6495
        %v6509 = vpack.c.b16 %v6498, %v6497
        %v6510 = vpack.c.b16 %v6500, %v6499
        %v6511 = vpack.c.b16 %v6502, %v6501
        %v6512 = vpack.c.b16 %v6504, %v6503
        %v6513 = vpack.c.b16 %v6505, %v6505
        %v6522 = vsel %vm6410, %v6474, 0
        %v6525 = vsel %vm470, %v6513, 0
        %6527 = vmatprep.subr.bf16.mxu0 0
        %6528 = vmatpush1.bf16.msra.mxu0 %v6506
        %6529 = vmatprep.subr.bf16.mxu0 0
        %6530 = vmatpush1.bf16.msra.mxu0 %v6507
        %6531 = vmatprep.subr.bf16.mxu0 0
        %6532 = vmatpush1.bf16.msra.mxu0 %v6508
        %6533 = vmatprep.subr.bf16.mxu0 0
        %6534 = vmatpush1.bf16.msra.mxu0 %v6509
        %6535 = vmatprep.subr.bf16.mxu0 0
        %6536 = vmatpush1.bf16.msra.mxu0 %v6510
        %6537 = vmatprep.subr.bf16.mxu0 0
        %6538 = vmatpush1.bf16.msra.mxu0 %v6511
        %6539 = vmatprep.subr.bf16.mxu0 0
        %6540 = vmatpush1.bf16.msra.mxu0 %v6512
        %6541 = vmatprep.subr.bf16.mxu0 0
        %6542 = vmatpush1.bf16.msra.mxu0 %v6525
        %6543 = vmatprep.subr.bf16.mxu0 0
        %6544 = vmatpush1.bf16.msra.mxu0 0
        %6545 = vmatprep.subr.bf16.mxu0 0
        %6546 = vmatpush1.bf16.msra.mxu0 0
        %6547 = vmatprep.subr.bf16.mxu0 0
        %6548 = vmatpush1.bf16.msra.mxu0 0
        %6549 = vmatprep.subr.bf16.mxu0 0
        %6550 = vmatpush1.bf16.msra.mxu0 0
        %6551 = vmatprep.subr.bf16.mxu0 0
        %6552 = vmatpush1.bf16.msra.mxu0 0
        %6553 = vmatprep.subr.bf16.mxu0 0
        %6554 = vmatpush1.bf16.msra.mxu0 0
        %6555 = vmatprep.subr.bf16.mxu0 0
        %6556 = vmatpush1.bf16.msra.mxu0 0
        %6557 = vmatprep.subr.bf16.mxu0 0
        %6558 = vmatpush1.bf16.msra.mxu0 0
        %6559 = vmatprep.mubr.bf16.mxu0 0
        %6560 = vmatmul.mubr.bf16.gmra.mrb[0].mxu0 %v6522
        %v6561 = vpop.f32.mrb[0].mxu0
        %v6562 = vadd.f32 0.0, %v6561
        %v6563 = vpop.f32.mrb[0].mxu0
        %v6564 = vpop.f32.mrb[0].mxu0
        %v6565 = vpop.f32.mrb[0].mxu0
        %6566 = vdwg.mxu0
        %v6567 = vadd.f32 %v6457, %v6562
        %s6568 = scalar_lea.vmem [#allocation2], %s24
        %vm6569 = vcmask 16384
        %6570 = vst.msk [vmem:[%s6568] sm:$0x1] %vm6569, %v6567
        // Predicated region
        $region69: #{model_forward.1} parent=67 // pred_check
          %p6571 = pneg %p294
        $region70: #{model_forward.1} parent=67 // pred_check_branch
          %6573 = sbr.rel (%p6571) target = $region72
        $region71: #{model_forward.1} parent=67 // pred_region
          %s6575 = ssub.s32 32, 32
          %6576 = vsyncadd [#allocation3], %s6575
          %s6578 = sshll.u32 [#allocation2], 4
          %s6579 = int_to_ptr.vmem [resolvable:$true] %s6578
          %6581 = dma.vmem_to_hbm [thread:$0]  %s6579, 32, %s12, [#allocation3]
        $region72: #{model_forward.1} parent=67 // pred_fallthru
          _
        // Predicated region
        $region73: #{model_forward.1} parent=67 // pred_check
          %p6582 = pneg %p294
        $region74: #{model_forward.1} parent=67 // pred_check_branch
          %6584 = sbr.rel (%p6582) target = $region76
        $region75: #{model_forward.1} parent=67 // pred_region
          %6585 = dma.done [#allocation3], 32
        $region76: #{model_forward.1} parent=67 // pred_fallthru
          _
      $region68: #{model_forward.1} parent=5 // pred_fallthru
        _
      %p6586 = scmp.le.s32.totalorder 2, %s19
      // Predicated region
      $region77: #{model_forward.1} parent=5 // pred_check
        %p6587 = pneg %p6586
      $region78: #{model_forward.1} parent=5 // pred_check_branch
        %6589 = sbr.rel (%p6587) target = $region80
      $region79: #{model_forward.1} parent=5 // pred_region
        %s6590 = ssub.s32 %s19, 2
      $region80: #{model_forward.1} parent=5 // pred_fallthru
        _
    $region6: #{model_forward.1} parent=1 // loop_footer
      %s23 = sadd.s32 1, %s19
    $region7: #{model_forward.1} parent=1 // loop_footer_branch
      %18 = sbr.rel target = $region3
    $region8: #{model_forward.1} parent=1 // loop_exit
      _
    %6591 = vsyncpa [#allocation3], 1
    %s6592 = scalar_lea.sflag [#allocation3], 1
    %6593 = vsyncpa %s6592, 1

</llo_original>
